<compile_context>
chip_gen: v7x
topology: tpu7x:2x2x1
jax: 0.10.0
libtpu: 0.0.40
codegen_flags: <defaults>
</compile_context>

<pallas_src>
from functools import partial

import numpy as np

import jax
import jax.numpy as jnp
from jax.experimental import pallas as pl
from jax.experimental.pallas import tpu as pltpu


# Sizes fixed by the PyTorch module (fc1.in_features == 2592 => 84x84, batch=1)
_C1_OUT = 16            # conv1 out channels
_C2_OUT = 32            # conv2 out channels
_FC1_IN = 2592          # 32 * 9 * 9
_FC1_OUT = 256
_K_STEPS = 3            # fc1 K-split grid; 2592/3 = 864 = 27*32 (int8-tile friendly)
_K_BLK = _FC1_IN // _K_STEPS
_OUT_PAD = 128          # lane-dense padded q-value row


# ---------------------------------------------------------------------------
# Fused kernel: conv1 + conv2 + flatten at k==0, fc1 K-partial every step,
# out layer at the last step.  All intermediates live in VMEM scratch.
# ---------------------------------------------------------------------------
def _dqn_fused_kernel(p1_ref, w1_ref, b1_ref, w2_ref, b2_ref,
                      w3_ref, s3_ref, b3_ref, w4_ref, b4_ref,
                      o_ref, a1_ref, f_ref, acc_ref):
    cdt = w1_ref.dtype                       # MXU operand dtype (bfloat16)
    k = pl.program_id(0)

    # -------------------------------------------------------------- k == 0
    # conv1 + conv2 + flatten; later steps only consume f_ref / acc_ref.
    # (Scratch persists across grid steps, so this MUST be guarded.)
    @pl.when(k == 0)
    def _():
        # conv1: one MXU matmul over host-built patches (400,256)@(256,16).
        a1 = jnp.dot(p1_ref[...], w1_ref[...],
                     preferred_element_type=jnp.float32)
        a1 = jnp.maximum(a1 + b1_ref[...], 0.0)
        # Rows of a1 are ordered (h%2, w%2, h//2, w//2) so every conv2
        # kernel-offset gather below is a single contiguous row range.
        a1_ref[0:400, :] = a1
        a1_ref[400:408, :] = jnp.zeros((8, _C1_OUT), jnp.float32)   # pad rows

        # conv2 im2col built as an in-register value (no p2 scratch round
        # trip): 16 contiguous row-range loads concatenated along lanes.
        # Rows t = 10*h2 + w2 ; rows with w2 == 9 are don't-care padding.
        cols = []
        for i in range(4):
            for j in range(4):
                ai2, pi2 = i // 2, i % 2
                bj2, qj2 = j // 2, j % 2
                base = (pi2 * 2 + qj2) * 100 + ai2 * 10 + bj2
                cols.append(a1_ref[base:base + 90, :])
        p2 = jnp.concatenate(cols, axis=1).astype(cdt)              # (90, 256)

        # conv2: (90, 256) @ (256, 32)
        a2 = jnp.dot(p2, w2_ref[...], preferred_element_type=jnp.float32)
        a2 = jnp.maximum(a2 + b2_ref[...], 0.0)                     # (90, 32)

        # Flatten the 81 valid rows into fc1's LHS.  f_ref is laid out per
        # K-block (3, 864) so every grid step reads one full row (dynamic
        # sublane index only — no dynamic lane slicing).  fc1's weight rows
        # were pre-permuted to this (h2, w2, oc) order at prepare time.
        for h2 in range(9):
            for w2 in range(9):
                row = h2 * 10 + w2
                col = (h2 * 9 + w2) * _C2_OUT
                blk, off = col // _K_BLK, col % _K_BLK
                f_ref[blk:blk + 1, off:off + _C2_OUT] = a2[row:row + 1, :]

        acc_ref[...] = jnp.zeros_like(acc_ref)

    # ---------------------------------------------------------- every step
    # fc1 partial for this K block.  The int8 weight block is dequantized to
    # bf16 on the VPU (via f32 for a portable lowering); the per-column scale
    # is applied after the full K accumulation, so this is exact.
    lhs = f_ref[pl.ds(k, 1), :].astype(cdt)                         # (1, 864)
    w3b = w3_ref[...].astype(jnp.float32).astype(cdt)               # (864, 256)
    acc_ref[...] += jnp.dot(lhs, w3b, preferred_element_type=jnp.float32)

    # ------------------------------------------------------------ last step
    @pl.when(k == pl.num_programs(0) - 1)
    def _():
        a3 = acc_ref[...] * s3_ref[...] + b3_ref[...]   # per-column int8 scale
        a3 = jnp.maximum(a3, 0.0)
        # out: (1, 256) @ (256, 128)  (columns >= n_actions are zero-padded)
        q = jnp.dot(a3.astype(cdt), w4_ref[...],
                    preferred_element_type=jnp.float32)
        o_ref[...] = q + b4_ref[...]


# ---------------------------------------------------------------------------
# Host-side layout plumbing (single space-to-depth + contiguous slices)
# ---------------------------------------------------------------------------
def _conv1_patches(x_chw, dtype):
    """im2col for conv1 (k=8, s=4).

    Rows are ordered r = (p*2+q)*100 + a*10 + b with h = 2a+p, w = 2b+q.
    Columns are ordered ((ai*2+bj), pi, qj, c) with i = 4*ai+pi, j = 4*bj+qj.
    conv1's weight matrix is permuted at prepare time to match.
    """
    c = x_chw.shape[0]
    # xt[A, B, pi, qj, ch] = x[ch, 4*A + pi, 4*B + qj]
    xt = x_chw.reshape(c, 21, 4, 21, 4).transpose(1, 3, 2, 4, 0)
    col_blocks = []
    for ai in range(2):
        for bj in range(2):
            row_blocks = []
            for p in range(2):
                for q in range(2):
                    slab = xt[p + ai:p + ai + 20:2, q + bj:q + bj + 20:2]
                    row_blocks.append(slab.reshape(100, -1))     # (100, 16*c)
            col_blocks.append(jnp.concatenate(row_blocks, axis=0))  # (400, 16*c)
    return jnp.concatenate(col_blocks, axis=1).astype(dtype)        # (400, 64*c)


# ---------------------------------------------------------------------------
# Parameters: deterministic init + one-time re-layout (outside the hot path)
# ---------------------------------------------------------------------------
def init_params(key, n_frames=4, n_actions=3):
    ks = jax.random.split(key, 8)
    scale = 0.05
    return {
        "conv1_w": scale * jax.random.normal(ks[0], (16, n_frames, 8, 8), jnp.float32),
        "conv1_b": scale * jax.random.normal(ks[1], (16,), jnp.float32),
        "conv2_w": scale * jax.random.normal(ks[2], (32, 16, 4, 4), jnp.float32),
        "conv2_b": scale * jax.random.normal(ks[3], (32,), jnp.float32),
        "fc1_w":   scale * jax.random.normal(ks[4], (256, 2592), jnp.float32),
        "fc1_b":   scale * jax.random.normal(ks[5], (256,), jnp.float32),
        "out_w":   scale * jax.random.normal(ks[6], (n_actions, 256), jnp.float32),
        "out_b":   scale * jax.random.normal(ks[7], (n_actions,), jnp.float32),
    }


def prepare_params(params, compute_dtype=jnp.bfloat16):
    """One-time weight re-layout + fc1 int8 quantization."""
    w1 = params["conv1_w"]                      # (16, C, 8, 8)
    oc1, c, _, _ = w1.shape
    # rows ordered (ai, bj, pi, qj, c) to match _conv1_patches' columns
    w1p = (w1.reshape(oc1, c, 2, 4, 2, 4)
             .transpose(2, 4, 3, 5, 1, 0)
             .reshape(2 * 2 * 4 * 4 * c, oc1))
    w2 = params["conv2_w"]                      # (32, 16, 4, 4)
    oc2, c2, _, _ = w2.shape
    # rows ordered (i, j, c1) to match the in-kernel conv2 patch columns
    w2p = w2.transpose(2, 3, 1, 0).reshape(16 * c2, oc2)
    w3 = params["fc1_w"]                        # (256, 2592)
    n3 = w3.shape[0]
    # rows ordered (h2, w2, oc2) to match the in-kernel flatten
    w3p = (w3.reshape(n3, oc2, 9, 9)
             .transpose(2, 3, 1, 0)
             .reshape(oc2 * 81, n3))            # (2592, 256)
    # int8 compression of the dominant fc1 weight (halves its HBM DMA),
    # per-output-column scales (applied post-accumulation in-kernel -> exact).
    s3 = jnp.maximum(jnp.max(jnp.abs(w3p), axis=0, keepdims=True) / 127.0,
                     1e-12)                     # (1, 256)
    w3q = jnp.clip(jnp.round(w3p / s3), -127.0, 127.0).astype(jnp.int8)

    n_actions = params["out_w"].shape[0]
    assert n_actions <= _OUT_PAD
    # out layer zero-padded to a lane-dense 128-column block
    w4p = jnp.zeros((n3, _OUT_PAD), jnp.float32).at[:, :n_actions].set(
        params["out_w"].T)
    b4p = jnp.zeros((1, _OUT_PAD), jnp.float32).at[0, :n_actions].set(
        params["out_b"])
    return {
        "w1": w1p.astype(compute_dtype),
        "b1": params["conv1_b"].reshape(1, -1).astype(jnp.float32),
        "w2": w2p.astype(compute_dtype),
        "b2": params["conv2_b"].reshape(1, -1).astype(jnp.float32),
        "w3q": w3q,                              # (2592, 256) int8
        "s3": s3.astype(jnp.float32),            # (1, 256)
        "b3": params["fc1_b"].reshape(1, -1).astype(jnp.float32),
        "w4": w4p.astype(compute_dtype),         # (256, 128)
        "b4": b4p,                               # (1, 128)
    }


# ---------------------------------------------------------------------------
# Forward pass (mirrors _network.forward for a (1, n_frames, 84, 84) input)
# ---------------------------------------------------------------------------
@partial(jax.jit, static_argnames=("n_actions",))
def network_forward(prep, x, *, n_actions=3):
    patches = _conv1_patches(x[0], prep["w1"].dtype)          # (400, 256) bf16

    def const2d(shape):
        return pl.BlockSpec(shape, lambda k: (0, 0))

    args = (patches, prep["w1"], prep["b1"], prep["w2"], prep["b2"],
            prep["w3q"], prep["s3"], prep["b3"], prep["w4"], prep["b4"])
    flops = 2 * (400 * 256 * _C1_OUT + 90 * 256 * _C2_OUT
                 + _FC1_IN * _FC1_OUT + _FC1_OUT * _OUT_PAD)
    bytes_accessed = sum(a.size * a.dtype.itemsize for a in args) + _OUT_PAD * 4

    out = pl.pallas_call(
        _dqn_fused_kernel,
        out_shape=jax.ShapeDtypeStruct((1, _OUT_PAD), jnp.float32),
        grid_spec=pltpu.PrefetchScalarGridSpec(
            num_scalar_prefetch=0,
            grid=(_K_STEPS,),
            in_specs=[
                const2d((400, 256)),                         # conv1 patches
                const2d((256, _C1_OUT)),                     # w1
                const2d((1, _C1_OUT)),                       # b1
                const2d((16 * _C1_OUT, _C2_OUT)),            # w2
                const2d((1, _C2_OUT)),                       # b2
                # fc1 weight streamed per K block -> DMA overlapped with conv
                pl.BlockSpec((_K_BLK, _FC1_OUT), lambda k: (k, 0)),
                const2d((1, _FC1_OUT)),                      # s3
                const2d((1, _FC1_OUT)),                      # b3
                const2d((_FC1_OUT, _OUT_PAD)),               # w4 (padded)
                const2d((1, _OUT_PAD)),                      # b4 (padded)
            ],
            out_specs=pl.BlockSpec((1, _OUT_PAD), lambda k: (0, 0)),
            scratch_shapes=[
                pltpu.VMEM((408, _C1_OUT), jnp.float32),     # conv1 out (+pad)
                pltpu.VMEM((_K_STEPS, _K_BLK), jnp.float32),  # flattened fc1 LHS
                pltpu.VMEM((1, _FC1_OUT), jnp.float32),      # fc1 accumulator
            ],
        ),
        compiler_params=pltpu.CompilerParams(
            dimension_semantics=("arbitrary",)),
        cost_estimate=pl.CostEstimate(flops=flops, transcendentals=0,
                                      bytes_accessed=int(bytes_accessed)),
    )(*args)
    return out[0, :n_actions]                                # (n_actions,)


# ---------------------------------------------------------------------------
# Pure-JAX float32 reference (mirrors the PyTorch module exactly)
# ---------------------------------------------------------------------------
def reference_forward(params, x):
    dn1 = jax.lax.conv_dimension_numbers(x.shape, params["conv1_w"].shape,
                                         ("NCHW", "OIHW", "NCHW"))
    t = jax.lax.conv_general_dilated(x, params["conv1_w"], (4, 4), "VALID",
                                     dimension_numbers=dn1,
                                     precision=jax.lax.Precision.HIGHEST)
    t = jnp.maximum(t + params["conv1_b"][None, :, None, None], 0.0)
    dn2 = jax.lax.conv_dimension_numbers(t.shape, params["conv2_w"].shape,
                                         ("NCHW", "OIHW", "NCHW"))
    t = jax.lax.conv_general_dilated(t, params["conv2_w"], (2, 2), "VALID",
                                     dimension_numbers=dn2,
                                     precision=jax.lax.Precision.HIGHEST)
    t = jnp.maximum(t + params["conv2_b"][None, :, None, None], 0.0)
    t = t.reshape(-1)                                        # torch .flatten()
    t = jnp.maximum(params["fc1_w"] @ t + params["fc1_b"], 0.0)
    return params["out_w"] @ t + params["out_b"]


if __name__ == "__main__":
    key = jax.random.PRNGKey(0)
    pkey, xkey = jax.random.split(key)
    n_actions = 3
    params = init_params(pkey, n_frames=4, n_actions=n_actions)
    prep = prepare_params(params)

    # 84x84 / batch=1 are required by fc1's in_features=2592 and t.flatten().
    x = jax.random.normal(xkey, (1, 4, 84, 84), jnp.float32)

    q_values = network_forward(prep, x, n_actions=n_actions)
    jax.block_until_ready(q_values)
    assert q_values.shape == (n_actions,), q_values.shape

    # Numerical check against the f32 reference.  bf16 MXU operands plus int8
    # fc1 weights (per-column scales) => slightly looser tolerance than a pure
    # bf16 kernel; measured error is ~1-2% of the ~0.3-magnitude q-values.
    q_ref = reference_forward(params, x)
    np.testing.assert_allclose(np.asarray(q_values), np.asarray(q_ref),
                               atol=7.5e-2, rtol=7.5e-2)

    print("KERNEL_OK")
</pallas_src>

<mosaic_0001>
module attributes {stable_mosaic.version = 11 : i64} {
  func.func @_dqn_fused_kernel(%arg0: i32, %arg1: memref<400x256xbf16, #tpu.memory_space<vmem>>, %arg2: memref<256x16xbf16, #tpu.memory_space<vmem>>, %arg3: memref<1x16xf32, #tpu.memory_space<vmem>>, %arg4: memref<256x32xbf16, #tpu.memory_space<vmem>>, %arg5: memref<1x32xf32, #tpu.memory_space<vmem>>, %arg6: memref<864x256xi8, #tpu.memory_space<vmem>>, %arg7: memref<1x256xf32, #tpu.memory_space<vmem>>, %arg8: memref<1x256xf32, #tpu.memory_space<vmem>>, %arg9: memref<256x128xbf16, #tpu.memory_space<vmem>>, %arg10: memref<1x128xf32, #tpu.memory_space<vmem>>, %arg11: memref<1x128xf32, #tpu.memory_space<vmem>>, %arg12: memref<408x16xf32, #tpu.memory_space<vmem>>, %arg13: memref<3x864xf32, #tpu.memory_space<vmem>>, %arg14: memref<1x256xf32, #tpu.memory_space<vmem>>) attributes {dimension_semantics = [#tpu.dimension_semantics<arbitrary>], iteration_bounds = array<i64: 3>, scalar_prefetch = 0 : i64, scratch_operands = 3 : i64, tpu.core_type = #tpu.core_type<tc>, window_params = [{pipeline_mode = #tpu.pipeline_mode<synchronous>, transform_indices = @transform_0, window_bounds = array<i64: 400, 256>}, {pipeline_mode = #tpu.pipeline_mode<synchronous>, transform_indices = @transform_1, window_bounds = array<i64: 256, 16>}, {pipeline_mode = #tpu.pipeline_mode<synchronous>, transform_indices = @transform_2, window_bounds = array<i64: 1, 16>}, {pipeline_mode = #tpu.pipeline_mode<synchronous>, transform_indices = @transform_3, window_bounds = array<i64: 256, 32>}, {pipeline_mode = #tpu.pipeline_mode<synchronous>, transform_indices = @transform_4, window_bounds = array<i64: 1, 32>}, {transform_indices = @transform_5, window_bounds = array<i64: 864, 256>}, {pipeline_mode = #tpu.pipeline_mode<synchronous>, transform_indices = @transform_6, window_bounds = array<i64: 1, 256>}, {pipeline_mode = #tpu.pipeline_mode<synchronous>, transform_indices = @transform_7, window_bounds = array<i64: 1, 256>}, {pipeline_mode = #tpu.pipeline_mode<synchronous>, transform_indices = @transform_8, window_bounds = array<i64: 256, 128>}, {pipeline_mode = #tpu.pipeline_mode<synchronous>, transform_indices = @transform_9, window_bounds = array<i64: 1, 128>}, {pipeline_mode = #tpu.pipeline_mode<synchronous>, transform_indices = @transform_10, window_bounds = array<i64: 1, 128>}]} {
    %c0_i32 = arith.constant 0 : i32
    %0 = arith.cmpi eq, %arg0, %c0_i32 : i32
    %1 = arith.extui %0 : i1 to i32
    %c0_i32_0 = arith.constant 0 : i32
    %2 = arith.cmpi ne, %1, %c0_i32_0 : i32
    scf.if %2 {
      %c0_8 = arith.constant 0 : index
      %c0_9 = arith.constant 0 : index
      %16 = vector.load %arg1[%c0_8, %c0_9] : memref<400x256xbf16, #tpu.memory_space<vmem>>, vector<400x256xbf16>
      %c0_10 = arith.constant 0 : index
      %c0_11 = arith.constant 0 : index
      %17 = vector.load %arg2[%c0_10, %c0_11] : memref<256x16xbf16, #tpu.memory_space<vmem>>, vector<256x16xbf16>
      %cst_12 = arith.constant dense<0.000000e+00> : vector<400x16xf32>
      %18 = tpu.matmul %16, %17, %cst_12 {dimension_numbers = #tpu.dot_dimension_numbers<[1], [0], [0], [1], [0, 0, 1, 1], [], []>} : vector<400x256xbf16>, vector<256x16xbf16>, vector<400x16xf32> -> vector<400x16xf32>
      %c0_13 = arith.constant 0 : index
      %c0_14 = arith.constant 0 : index
      %19 = vector.load %arg3[%c0_13, %c0_14] : memref<1x16xf32, #tpu.memory_space<vmem>>, vector<1x16xf32>
      %20 = vector.broadcast %19 : vector<1x16xf32> to vector<400x16xf32>
      %21 = arith.addf %18, %20 : vector<400x16xf32>
      %cst_15 = arith.constant 0.000000e+00 : f32
      %22 = vector.broadcast %cst_15 : f32 to vector<400x16xf32>
      %23 = arith.maximumf %21, %22 : vector<400x16xf32>
      %c0_16 = arith.constant 0 : index
      %c0_17 = arith.constant 0 : index
      %24 = vector.load %arg12[%c0_16, %c0_17] : memref<408x16xf32, #tpu.memory_space<vmem>>, vector<400x16xf32>
      tpu.vector_store %arg12[%c0_16, %c0_17], %23 {strides = array<i32>} : memref<408x16xf32, #tpu.memory_space<vmem>>, vector<400x16xf32>,
      %cst_18 = arith.constant 0.000000e+00 : f32
      %25 = vector.broadcast %cst_18 : f32 to vector<8x16xf32>
      %c400 = arith.constant 400 : index
      %c0_19 = arith.constant 0 : index
      %26 = vector.load %arg12[%c400, %c0_19] : memref<408x16xf32, #tpu.memory_space<vmem>>, vector<8x16xf32>
      tpu.vector_store %arg12[%c400, %c0_19], %25 {strides = array<i32>} : memref<408x16xf32, #tpu.memory_space<vmem>>, vector<8x16xf32>,
      %c0_20 = arith.constant 0 : index
      %c0_21 = arith.constant 0 : index
      %27 = vector.load %arg12[%c0_20, %c0_21] : memref<408x16xf32, #tpu.memory_space<vmem>>, vector<90x16xf32>
      %c100 = arith.constant 100 : index
      %c0_22 = arith.constant 0 : index
      %28 = vector.load %arg12[%c100, %c0_22] : memref<408x16xf32, #tpu.memory_space<vmem>>, vector<90x16xf32>
      %c1 = arith.constant 1 : index
      %c0_23 = arith.constant 0 : index
      %29 = vector.load %arg12[%c1, %c0_23] : memref<408x16xf32, #tpu.memory_space<vmem>>, vector<90x16xf32>
      %c101 = arith.constant 101 : index
      %c0_24 = arith.constant 0 : index
      %30 = vector.load %arg12[%c101, %c0_24] : memref<408x16xf32, #tpu.memory_space<vmem>>, vector<90x16xf32>
      %c200 = arith.constant 200 : index
      %c0_25 = arith.constant 0 : index
      %31 = vector.load %arg12[%c200, %c0_25] : memref<408x16xf32, #tpu.memory_space<vmem>>, vector<90x16xf32>
      %c300 = arith.constant 300 : index
      %c0_26 = arith.constant 0 : index
      %32 = vector.load %arg12[%c300, %c0_26] : memref<408x16xf32, #tpu.memory_space<vmem>>, vector<90x16xf32>
      %c201 = arith.constant 201 : index
      %c0_27 = arith.constant 0 : index
      %33 = vector.load %arg12[%c201, %c0_27] : memref<408x16xf32, #tpu.memory_space<vmem>>, vector<90x16xf32>
      %c301 = arith.constant 301 : index
      %c0_28 = arith.constant 0 : index
      %34 = vector.load %arg12[%c301, %c0_28] : memref<408x16xf32, #tpu.memory_space<vmem>>, vector<90x16xf32>
      %c10 = arith.constant 10 : index
      %c0_29 = arith.constant 0 : index
      %35 = vector.load %arg12[%c10, %c0_29] : memref<408x16xf32, #tpu.memory_space<vmem>>, vector<90x16xf32>
      %c110 = arith.constant 110 : index
      %c0_30 = arith.constant 0 : index
      %36 = vector.load %arg12[%c110, %c0_30] : memref<408x16xf32, #tpu.memory_space<vmem>>, vector<90x16xf32>
      %c11 = arith.constant 11 : index
      %c0_31 = arith.constant 0 : index
      %37 = vector.load %arg12[%c11, %c0_31] : memref<408x16xf32, #tpu.memory_space<vmem>>, vector<90x16xf32>
      %c111 = arith.constant 111 : index
      %c0_32 = arith.constant 0 : index
      %38 = vector.load %arg12[%c111, %c0_32] : memref<408x16xf32, #tpu.memory_space<vmem>>, vector<90x16xf32>
      %c210 = arith.constant 210 : index
      %c0_33 = arith.constant 0 : index
      %39 = vector.load %arg12[%c210, %c0_33] : memref<408x16xf32, #tpu.memory_space<vmem>>, vector<90x16xf32>
      %c310 = arith.constant 310 : index
      %c0_34 = arith.constant 0 : index
      %40 = vector.load %arg12[%c310, %c0_34] : memref<408x16xf32, #tpu.memory_space<vmem>>, vector<90x16xf32>
      %c211 = arith.constant 211 : index
      %c0_35 = arith.constant 0 : index
      %41 = vector.load %arg12[%c211, %c0_35] : memref<408x16xf32, #tpu.memory_space<vmem>>, vector<90x16xf32>
      %c311 = arith.constant 311 : index
      %c0_36 = arith.constant 0 : index
      %42 = vector.load %arg12[%c311, %c0_36] : memref<408x16xf32, #tpu.memory_space<vmem>>, vector<90x16xf32>
      %43 = tpu.concatenate %27, %28, %29, %30, %31, %32, %33, %34, %35, %36, %37, %38, %39, %40, %41, %42 in 1 : vector<90x16xf32>, vector<90x16xf32>, vector<90x16xf32>, vector<90x16xf32>, vector<90x16xf32>, vector<90x16xf32>, vector<90x16xf32>, vector<90x16xf32>, vector<90x16xf32>, vector<90x16xf32>, vector<90x16xf32>, vector<90x16xf32>, vector<90x16xf32>, vector<90x16xf32>, vector<90x16xf32>, vector<90x16xf32> -> vector<90x256xf32>
      %44 = arith.truncf %43 : vector<90x256xf32> to vector<90x256xbf16>
      %c0_37 = arith.constant 0 : index
      %c0_38 = arith.constant 0 : index
      %45 = vector.load %arg4[%c0_37, %c0_38] : memref<256x32xbf16, #tpu.memory_space<vmem>>, vector<256x32xbf16>
      %cst_39 = arith.constant dense<0.000000e+00> : vector<90x32xf32>
      %46 = tpu.matmul %44, %45, %cst_39 {dimension_numbers = #tpu.dot_dimension_numbers<[1], [0], [0], [1], [0, 0, 1, 1], [], []>} : vector<90x256xbf16>, vector<256x32xbf16>, vector<90x32xf32> -> vector<90x32xf32>
      %c0_40 = arith.constant 0 : index
      %c0_41 = arith.constant 0 : index
      %47 = vector.load %arg5[%c0_40, %c0_41] : memref<1x32xf32, #tpu.memory_space<vmem>>, vector<1x32xf32>
      %48 = vector.broadcast %47 : vector<1x32xf32> to vector<90x32xf32>
      %49 = arith.addf %46, %48 : vector<90x32xf32>
      %cst_42 = arith.constant 0.000000e+00 : f32
      %50 = vector.broadcast %cst_42 : f32 to vector<90x32xf32>
      %51 = arith.maximumf %49, %50 : vector<90x32xf32>
      %52 = vector.extract_strided_slice %51 {offsets = [0, 0], sizes = [1, 32], strides = [1, 1]} : vector<90x32xf32> to vector<1x32xf32>
      %c0_43 = arith.constant 0 : index
      %c0_44 = arith.constant 0 : index
      %53 = vector.load %arg13[%c0_43, %c0_44] : memref<3x864xf32, #tpu.memory_space<vmem>>, vector<1x32xf32>
      tpu.vector_store %arg13[%c0_43, %c0_44], %52 {strides = array<i32>} : memref<3x864xf32, #tpu.memory_space<vmem>>, vector<1x32xf32>,
      %54 = vector.extract_strided_slice %51 {offsets = [1, 0], sizes = [1, 32], strides = [1, 1]} : vector<90x32xf32> to vector<1x32xf32>
      %c0_45 = arith.constant 0 : index
      %c32 = arith.constant 32 : index
      %55 = vector.load %arg13[%c0_45, %c32] : memref<3x864xf32, #tpu.memory_space<vmem>>, vector<1x32xf32>
      tpu.vector_store %arg13[%c0_45, %c32], %54 {strides = array<i32>} : memref<3x864xf32, #tpu.memory_space<vmem>>, vector<1x32xf32>,
      %56 = vector.extract_strided_slice %51 {offsets = [2, 0], sizes = [1, 32], strides = [1, 1]} : vector<90x32xf32> to vector<1x32xf32>
      %c0_46 = arith.constant 0 : index
      %c64 = arith.constant 64 : index
      %57 = vector.load %arg13[%c0_46, %c64] : memref<3x864xf32, #tpu.memory_space<vmem>>, vector<1x32xf32>
      tpu.vector_store %arg13[%c0_46, %c64], %56 {strides = array<i32>} : memref<3x864xf32, #tpu.memory_space<vmem>>, vector<1x32xf32>,
      %58 = vector.extract_strided_slice %51 {offsets = [3, 0], sizes = [1, 32], strides = [1, 1]} : vector<90x32xf32> to vector<1x32xf32>
      %c0_47 = arith.constant 0 : index
      %c96 = arith.constant 96 : index
      %59 = vector.load %arg13[%c0_47, %c96] : memref<3x864xf32, #tpu.memory_space<vmem>>, vector<1x32xf32>
      tpu.vector_store %arg13[%c0_47, %c96], %58 {strides = array<i32>} : memref<3x864xf32, #tpu.memory_space<vmem>>, vector<1x32xf32>,
      %60 = vector.extract_strided_slice %51 {offsets = [4, 0], sizes = [1, 32], strides = [1, 1]} : vector<90x32xf32> to vector<1x32xf32>
      %c0_48 = arith.constant 0 : index
      %c128 = arith.constant 128 : index
      %61 = vector.load %arg13[%c0_48, %c128] : memref<3x864xf32, #tpu.memory_space<vmem>>, vector<1x32xf32>
      tpu.vector_store %arg13[%c0_48, %c128], %60 {strides = array<i32>} : memref<3x864xf32, #tpu.memory_space<vmem>>, vector<1x32xf32>,
      %62 = vector.extract_strided_slice %51 {offsets = [5, 0], sizes = [1, 32], strides = [1, 1]} : vector<90x32xf32> to vector<1x32xf32>
      %c0_49 = arith.constant 0 : index
      %c160 = arith.constant 160 : index
      %63 = vector.load %arg13[%c0_49, %c160] : memref<3x864xf32, #tpu.memory_space<vmem>>, vector<1x32xf32>
      tpu.vector_store %arg13[%c0_49, %c160], %62 {strides = array<i32>} : memref<3x864xf32, #tpu.memory_space<vmem>>, vector<1x32xf32>,
      %64 = vector.extract_strided_slice %51 {offsets = [6, 0], sizes = [1, 32], strides = [1, 1]} : vector<90x32xf32> to vector<1x32xf32>
      %c0_50 = arith.constant 0 : index
      %c192 = arith.constant 192 : index
      %65 = vector.load %arg13[%c0_50, %c192] : memref<3x864xf32, #tpu.memory_space<vmem>>, vector<1x32xf32>
      tpu.vector_store %arg13[%c0_50, %c192], %64 {strides = array<i32>} : memref<3x864xf32, #tpu.memory_space<vmem>>, vector<1x32xf32>,
      %66 = vector.extract_strided_slice %51 {offsets = [7, 0], sizes = [1, 32], strides = [1, 1]} : vector<90x32xf32> to vector<1x32xf32>
      %c0_51 = arith.constant 0 : index
      %c224 = arith.constant 224 : index
      %67 = vector.load %arg13[%c0_51, %c224] : memref<3x864xf32, #tpu.memory_space<vmem>>, vector<1x32xf32>
      tpu.vector_store %arg13[%c0_51, %c224], %66 {strides = array<i32>} : memref<3x864xf32, #tpu.memory_space<vmem>>, vector<1x32xf32>,
      %68 = vector.extract_strided_slice %51 {offsets = [8, 0], sizes = [1, 32], strides = [1, 1]} : vector<90x32xf32> to vector<1x32xf32>
      %c0_52 = arith.constant 0 : index
      %c256 = arith.constant 256 : index
      %69 = vector.load %arg13[%c0_52, %c256] : memref<3x864xf32, #tpu.memory_space<vmem>>, vector<1x32xf32>
      tpu.vector_store %arg13[%c0_52, %c256], %68 {strides = array<i32>} : memref<3x864xf32, #tpu.memory_space<vmem>>, vector<1x32xf32>,
      %70 = vector.extract_strided_slice %51 {offsets = [10, 0], sizes = [1, 32], strides = [1, 1]} : vector<90x32xf32> to vector<1x32xf32>
      %c0_53 = arith.constant 0 : index
      %c288 = arith.constant 288 : index
      %71 = vector.load %arg13[%c0_53, %c288] : memref<3x864xf32, #tpu.memory_space<vmem>>, vector<1x32xf32>
      tpu.vector_store %arg13[%c0_53, %c288], %70 {strides = array<i32>} : memref<3x864xf32, #tpu.memory_space<vmem>>, vector<1x32xf32>,
      %72 = vector.extract_strided_slice %51 {offsets = [11, 0], sizes = [1, 32], strides = [1, 1]} : vector<90x32xf32> to vector<1x32xf32>
      %c0_54 = arith.constant 0 : index
      %c320 = arith.constant 320 : index
      %73 = vector.load %arg13[%c0_54, %c320] : memref<3x864xf32, #tpu.memory_space<vmem>>, vector<1x32xf32>
      tpu.vector_store %arg13[%c0_54, %c320], %72 {strides = array<i32>} : memref<3x864xf32, #tpu.memory_space<vmem>>, vector<1x32xf32>,
      %74 = vector.extract_strided_slice %51 {offsets = [12, 0], sizes = [1, 32], strides = [1, 1]} : vector<90x32xf32> to vector<1x32xf32>
      %c0_55 = arith.constant 0 : index
      %c352 = arith.constant 352 : index
      %75 = vector.load %arg13[%c0_55, %c352] : memref<3x864xf32, #tpu.memory_space<vmem>>, vector<1x32xf32>
      tpu.vector_store %arg13[%c0_55, %c352], %74 {strides = array<i32>} : memref<3x864xf32, #tpu.memory_space<vmem>>, vector<1x32xf32>,
      %76 = vector.extract_strided_slice %51 {offsets = [13, 0], sizes = [1, 32], strides = [1, 1]} : vector<90x32xf32> to vector<1x32xf32>
      %c0_56 = arith.constant 0 : index
      %c384 = arith.constant 384 : index
      %77 = vector.load %arg13[%c0_56, %c384] : memref<3x864xf32, #tpu.memory_space<vmem>>, vector<1x32xf32>
      tpu.vector_store %arg13[%c0_56, %c384], %76 {strides = array<i32>} : memref<3x864xf32, #tpu.memory_space<vmem>>, vector<1x32xf32>,
      %78 = vector.extract_strided_slice %51 {offsets = [14, 0], sizes = [1, 32], strides = [1, 1]} : vector<90x32xf32> to vector<1x32xf32>
      %c0_57 = arith.constant 0 : index
      %c416 = arith.constant 416 : index
      %79 = vector.load %arg13[%c0_57, %c416] : memref<3x864xf32, #tpu.memory_space<vmem>>, vector<1x32xf32>
      tpu.vector_store %arg13[%c0_57, %c416], %78 {strides = array<i32>} : memref<3x864xf32, #tpu.memory_space<vmem>>, vector<1x32xf32>,
      %80 = vector.extract_strided_slice %51 {offsets = [15, 0], sizes = [1, 32], strides = [1, 1]} : vector<90x32xf32> to vector<1x32xf32>
      %c0_58 = arith.constant 0 : index
      %c448 = arith.constant 448 : index
      %81 = vector.load %arg13[%c0_58, %c448] : memref<3x864xf32, #tpu.memory_space<vmem>>, vector<1x32xf32>
      tpu.vector_store %arg13[%c0_58, %c448], %80 {strides = array<i32>} : memref<3x864xf32, #tpu.memory_space<vmem>>, vector<1x32xf32>,
      %82 = vector.extract_strided_slice %51 {offsets = [16, 0], sizes = [1, 32], strides = [1, 1]} : vector<90x32xf32> to vector<1x32xf32>
      %c0_59 = arith.constant 0 : index
      %c480 = arith.constant 480 : index
      %83 = vector.load %arg13[%c0_59, %c480] : memref<3x864xf32, #tpu.memory_space<vmem>>, vector<1x32xf32>
      tpu.vector_store %arg13[%c0_59, %c480], %82 {strides = array<i32>} : memref<3x864xf32, #tpu.memory_space<vmem>>, vector<1x32xf32>,
      %84 = vector.extract_strided_slice %51 {offsets = [17, 0], sizes = [1, 32], strides = [1, 1]} : vector<90x32xf32> to vector<1x32xf32>
      %c0_60 = arith.constant 0 : index
      %c512 = arith.constant 512 : index
      %85 = vector.load %arg13[%c0_60, %c512] : memref<3x864xf32, #tpu.memory_space<vmem>>, vector<1x32xf32>
      tpu.vector_store %arg13[%c0_60, %c512], %84 {strides = array<i32>} : memref<3x864xf32, #tpu.memory_space<vmem>>, vector<1x32xf32>,
      %86 = vector.extract_strided_slice %51 {offsets = [18, 0], sizes = [1, 32], strides = [1, 1]} : vector<90x32xf32> to vector<1x32xf32>
      %c0_61 = arith.constant 0 : index
      %c544 = arith.constant 544 : index
      %87 = vector.load %arg13[%c0_61, %c544] : memref<3x864xf32, #tpu.memory_space<vmem>>, vector<1x32xf32>
      tpu.vector_store %arg13[%c0_61, %c544], %86 {strides = array<i32>} : memref<3x864xf32, #tpu.memory_space<vmem>>, vector<1x32xf32>,
      %88 = vector.extract_strided_slice %51 {offsets = [20, 0], sizes = [1, 32], strides = [1, 1]} : vector<90x32xf32> to vector<1x32xf32>
      %c0_62 = arith.constant 0 : index
      %c576 = arith.constant 576 : index
      %89 = vector.load %arg13[%c0_62, %c576] : memref<3x864xf32, #tpu.memory_space<vmem>>, vector<1x32xf32>
      tpu.vector_store %arg13[%c0_62, %c576], %88 {strides = array<i32>} : memref<3x864xf32, #tpu.memory_space<vmem>>, vector<1x32xf32>,
      %90 = vector.extract_strided_slice %51 {offsets = [21, 0], sizes = [1, 32], strides = [1, 1]} : vector<90x32xf32> to vector<1x32xf32>
      %c0_63 = arith.constant 0 : index
      %c608 = arith.constant 608 : index
      %91 = vector.load %arg13[%c0_63, %c608] : memref<3x864xf32, #tpu.memory_space<vmem>>, vector<1x32xf32>
      tpu.vector_store %arg13[%c0_63, %c608], %90 {strides = array<i32>} : memref<3x864xf32, #tpu.memory_space<vmem>>, vector<1x32xf32>,
      %92 = vector.extract_strided_slice %51 {offsets = [22, 0], sizes = [1, 32], strides = [1, 1]} : vector<90x32xf32> to vector<1x32xf32>
      %c0_64 = arith.constant 0 : index
      %c640 = arith.constant 640 : index
      %93 = vector.load %arg13[%c0_64, %c640] : memref<3x864xf32, #tpu.memory_space<vmem>>, vector<1x32xf32>
      tpu.vector_store %arg13[%c0_64, %c640], %92 {strides = array<i32>} : memref<3x864xf32, #tpu.memory_space<vmem>>, vector<1x32xf32>,
      %94 = vector.extract_strided_slice %51 {offsets = [23, 0], sizes = [1, 32], strides = [1, 1]} : vector<90x32xf32> to vector<1x32xf32>
      %c0_65 = arith.constant 0 : index
      %c672 = arith.constant 672 : index
      %95 = vector.load %arg13[%c0_65, %c672] : memref<3x864xf32, #tpu.memory_space<vmem>>, vector<1x32xf32>
      tpu.vector_store %arg13[%c0_65, %c672], %94 {strides = array<i32>} : memref<3x864xf32, #tpu.memory_space<vmem>>, vector<1x32xf32>,
      %96 = vector.extract_strided_slice %51 {offsets = [24, 0], sizes = [1, 32], strides = [1, 1]} : vector<90x32xf32> to vector<1x32xf32>
      %c0_66 = arith.constant 0 : index
      %c704 = arith.constant 704 : index
      %97 = vector.load %arg13[%c0_66, %c704] : memref<3x864xf32, #tpu.memory_space<vmem>>, vector<1x32xf32>
      tpu.vector_store %arg13[%c0_66, %c704], %96 {strides = array<i32>} : memref<3x864xf32, #tpu.memory_space<vmem>>, vector<1x32xf32>,
      %98 = vector.extract_strided_slice %51 {offsets = [25, 0], sizes = [1, 32], strides = [1, 1]} : vector<90x32xf32> to vector<1x32xf32>
      %c0_67 = arith.constant 0 : index
      %c736 = arith.constant 736 : index
      %99 = vector.load %arg13[%c0_67, %c736] : memref<3x864xf32, #tpu.memory_space<vmem>>, vector<1x32xf32>
      tpu.vector_store %arg13[%c0_67, %c736], %98 {strides = array<i32>} : memref<3x864xf32, #tpu.memory_space<vmem>>, vector<1x32xf32>,
      %100 = vector.extract_strided_slice %51 {offsets = [26, 0], sizes = [1, 32], strides = [1, 1]} : vector<90x32xf32> to vector<1x32xf32>
      %c0_68 = arith.constant 0 : index
      %c768 = arith.constant 768 : index
      %101 = vector.load %arg13[%c0_68, %c768] : memref<3x864xf32, #tpu.memory_space<vmem>>, vector<1x32xf32>
      tpu.vector_store %arg13[%c0_68, %c768], %100 {strides = array<i32>} : memref<3x864xf32, #tpu.memory_space<vmem>>, vector<1x32xf32>,
      %102 = vector.extract_strided_slice %51 {offsets = [27, 0], sizes = [1, 32], strides = [1, 1]} : vector<90x32xf32> to vector<1x32xf32>
      %c0_69 = arith.constant 0 : index
      %c800 = arith.constant 800 : index
      %103 = vector.load %arg13[%c0_69, %c800] : memref<3x864xf32, #tpu.memory_space<vmem>>, vector<1x32xf32>
      tpu.vector_store %arg13[%c0_69, %c800], %102 {strides = array<i32>} : memref<3x864xf32, #tpu.memory_space<vmem>>, vector<1x32xf32>,
      %104 = vector.extract_strided_slice %51 {offsets = [28, 0], sizes = [1, 32], strides = [1, 1]} : vector<90x32xf32> to vector<1x32xf32>
      %c0_70 = arith.constant 0 : index
      %c832 = arith.constant 832 : index
      %105 = vector.load %arg13[%c0_70, %c832] : memref<3x864xf32, #tpu.memory_space<vmem>>, vector<1x32xf32>
      tpu.vector_store %arg13[%c0_70, %c832], %104 {strides = array<i32>} : memref<3x864xf32, #tpu.memory_space<vmem>>, vector<1x32xf32>,
      %106 = vector.extract_strided_slice %51 {offsets = [30, 0], sizes = [1, 32], strides = [1, 1]} : vector<90x32xf32> to vector<1x32xf32>
      %c1_71 = arith.constant 1 : index
      %c0_72 = arith.constant 0 : index
      %107 = vector.load %arg13[%c1_71, %c0_72] : memref<3x864xf32, #tpu.memory_space<vmem>>, vector<1x32xf32>
      tpu.vector_store %arg13[%c1_71, %c0_72], %106 {strides = array<i32>} : memref<3x864xf32, #tpu.memory_space<vmem>>, vector<1x32xf32>,
      %108 = vector.extract_strided_slice %51 {offsets = [31, 0], sizes = [1, 32], strides = [1, 1]} : vector<90x32xf32> to vector<1x32xf32>
      %c1_73 = arith.constant 1 : index
      %c32_74 = arith.constant 32 : index
      %109 = vector.load %arg13[%c1_73, %c32_74] : memref<3x864xf32, #tpu.memory_space<vmem>>, vector<1x32xf32>
      tpu.vector_store %arg13[%c1_73, %c32_74], %108 {strides = array<i32>} : memref<3x864xf32, #tpu.memory_space<vmem>>, vector<1x32xf32>,
      %110 = vector.extract_strided_slice %51 {offsets = [32, 0], sizes = [1, 32], strides = [1, 1]} : vector<90x32xf32> to vector<1x32xf32>
      %c1_75 = arith.constant 1 : index
      %c64_76 = arith.constant 64 : index
      %111 = vector.load %arg13[%c1_75, %c64_76] : memref<3x864xf32, #tpu.memory_space<vmem>>, vector<1x32xf32>
      tpu.vector_store %arg13[%c1_75, %c64_76], %110 {strides = array<i32>} : memref<3x864xf32, #tpu.memory_space<vmem>>, vector<1x32xf32>,
      %112 = vector.extract_strided_slice %51 {offsets = [33, 0], sizes = [1, 32], strides = [1, 1]} : vector<90x32xf32> to vector<1x32xf32>
      %c1_77 = arith.constant 1 : index
      %c96_78 = arith.constant 96 : index
      %113 = vector.load %arg13[%c1_77, %c96_78] : memref<3x864xf32, #tpu.memory_space<vmem>>, vector<1x32xf32>
      tpu.vector_store %arg13[%c1_77, %c96_78], %112 {strides = array<i32>} : memref<3x864xf32, #tpu.memory_space<vmem>>, vector<1x32xf32>,
      %114 = vector.extract_strided_slice %51 {offsets = [34, 0], sizes = [1, 32], strides = [1, 1]} : vector<90x32xf32> to vector<1x32xf32>
      %c1_79 = arith.constant 1 : index
      %c128_80 = arith.constant 128 : index
      %115 = vector.load %arg13[%c1_79, %c128_80] : memref<3x864xf32, #tpu.memory_space<vmem>>, vector<1x32xf32>
      tpu.vector_store %arg13[%c1_79, %c128_80], %114 {strides = array<i32>} : memref<3x864xf32, #tpu.memory_space<vmem>>, vector<1x32xf32>,
      %116 = vector.extract_strided_slice %51 {offsets = [35, 0], sizes = [1, 32], strides = [1, 1]} : vector<90x32xf32> to vector<1x32xf32>
      %c1_81 = arith.constant 1 : index
      %c160_82 = arith.constant 160 : index
      %117 = vector.load %arg13[%c1_81, %c160_82] : memref<3x864xf32, #tpu.memory_space<vmem>>, vector<1x32xf32>
      tpu.vector_store %arg13[%c1_81, %c160_82], %116 {strides = array<i32>} : memref<3x864xf32, #tpu.memory_space<vmem>>, vector<1x32xf32>,
      %118 = vector.extract_strided_slice %51 {offsets = [36, 0], sizes = [1, 32], strides = [1, 1]} : vector<90x32xf32> to vector<1x32xf32>
      %c1_83 = arith.constant 1 : index
      %c192_84 = arith.constant 192 : index
      %119 = vector.load %arg13[%c1_83, %c192_84] : memref<3x864xf32, #tpu.memory_space<vmem>>, vector<1x32xf32>
      tpu.vector_store %arg13[%c1_83, %c192_84], %118 {strides = array<i32>} : memref<3x864xf32, #tpu.memory_space<vmem>>, vector<1x32xf32>,
      %120 = vector.extract_strided_slice %51 {offsets = [37, 0], sizes = [1, 32], strides = [1, 1]} : vector<90x32xf32> to vector<1x32xf32>
      %c1_85 = arith.constant 1 : index
      %c224_86 = arith.constant 224 : index
      %121 = vector.load %arg13[%c1_85, %c224_86] : memref<3x864xf32, #tpu.memory_space<vmem>>, vector<1x32xf32>
      tpu.vector_store %arg13[%c1_85, %c224_86], %120 {strides = array<i32>} : memref<3x864xf32, #tpu.memory_space<vmem>>, vector<1x32xf32>,
      %122 = vector.extract_strided_slice %51 {offsets = [38, 0], sizes = [1, 32], strides = [1, 1]} : vector<90x32xf32> to vector<1x32xf32>
      %c1_87 = arith.constant 1 : index
      %c256_88 = arith.constant 256 : index
      %123 = vector.load %arg13[%c1_87, %c256_88] : memref<3x864xf32, #tpu.memory_space<vmem>>, vector<1x32xf32>
      tpu.vector_store %arg13[%c1_87, %c256_88], %122 {strides = array<i32>} : memref<3x864xf32, #tpu.memory_space<vmem>>, vector<1x32xf32>,
      %124 = vector.extract_strided_slice %51 {offsets = [40, 0], sizes = [1, 32], strides = [1, 1]} : vector<90x32xf32> to vector<1x32xf32>
      %c1_89 = arith.constant 1 : index
      %c288_90 = arith.constant 288 : index
      %125 = vector.load %arg13[%c1_89, %c288_90] : memref<3x864xf32, #tpu.memory_space<vmem>>, vector<1x32xf32>
      tpu.vector_store %arg13[%c1_89, %c288_90], %124 {strides = array<i32>} : memref<3x864xf32, #tpu.memory_space<vmem>>, vector<1x32xf32>,
      %126 = vector.extract_strided_slice %51 {offsets = [41, 0], sizes = [1, 32], strides = [1, 1]} : vector<90x32xf32> to vector<1x32xf32>
      %c1_91 = arith.constant 1 : index
      %c320_92 = arith.constant 320 : index
      %127 = vector.load %arg13[%c1_91, %c320_92] : memref<3x864xf32, #tpu.memory_space<vmem>>, vector<1x32xf32>
      tpu.vector_store %arg13[%c1_91, %c320_92], %126 {strides = array<i32>} : memref<3x864xf32, #tpu.memory_space<vmem>>, vector<1x32xf32>,
      %128 = vector.extract_strided_slice %51 {offsets = [42, 0], sizes = [1, 32], strides = [1, 1]} : vector<90x32xf32> to vector<1x32xf32>
      %c1_93 = arith.constant 1 : index
      %c352_94 = arith.constant 352 : index
      %129 = vector.load %arg13[%c1_93, %c352_94] : memref<3x864xf32, #tpu.memory_space<vmem>>, vector<1x32xf32>
      tpu.vector_store %arg13[%c1_93, %c352_94], %128 {strides = array<i32>} : memref<3x864xf32, #tpu.memory_space<vmem>>, vector<1x32xf32>,
      %130 = vector.extract_strided_slice %51 {offsets = [43, 0], sizes = [1, 32], strides = [1, 1]} : vector<90x32xf32> to vector<1x32xf32>
      %c1_95 = arith.constant 1 : index
      %c384_96 = arith.constant 384 : index
      %131 = vector.load %arg13[%c1_95, %c384_96] : memref<3x864xf32, #tpu.memory_space<vmem>>, vector<1x32xf32>
      tpu.vector_store %arg13[%c1_95, %c384_96], %130 {strides = array<i32>} : memref<3x864xf32, #tpu.memory_space<vmem>>, vector<1x32xf32>,
      %132 = vector.extract_strided_slice %51 {offsets = [44, 0], sizes = [1, 32], strides = [1, 1]} : vector<90x32xf32> to vector<1x32xf32>
      %c1_97 = arith.constant 1 : index
      %c416_98 = arith.constant 416 : index
      %133 = vector.load %arg13[%c1_97, %c416_98] : memref<3x864xf32, #tpu.memory_space<vmem>>, vector<1x32xf32>
      tpu.vector_store %arg13[%c1_97, %c416_98], %132 {strides = array<i32>} : memref<3x864xf32, #tpu.memory_space<vmem>>, vector<1x32xf32>,
      %134 = vector.extract_strided_slice %51 {offsets = [45, 0], sizes = [1, 32], strides = [1, 1]} : vector<90x32xf32> to vector<1x32xf32>
      %c1_99 = arith.constant 1 : index
      %c448_100 = arith.constant 448 : index
      %135 = vector.load %arg13[%c1_99, %c448_100] : memref<3x864xf32, #tpu.memory_space<vmem>>, vector<1x32xf32>
      tpu.vector_store %arg13[%c1_99, %c448_100], %134 {strides = array<i32>} : memref<3x864xf32, #tpu.memory_space<vmem>>, vector<1x32xf32>,
      %136 = vector.extract_strided_slice %51 {offsets = [46, 0], sizes = [1, 32], strides = [1, 1]} : vector<90x32xf32> to vector<1x32xf32>
      %c1_101 = arith.constant 1 : index
      %c480_102 = arith.constant 480 : index
      %137 = vector.load %arg13[%c1_101, %c480_102] : memref<3x864xf32, #tpu.memory_space<vmem>>, vector<1x32xf32>
      tpu.vector_store %arg13[%c1_101, %c480_102], %136 {strides = array<i32>} : memref<3x864xf32, #tpu.memory_space<vmem>>, vector<1x32xf32>,
      %138 = vector.extract_strided_slice %51 {offsets = [47, 0], sizes = [1, 32], strides = [1, 1]} : vector<90x32xf32> to vector<1x32xf32>
      %c1_103 = arith.constant 1 : index
      %c512_104 = arith.constant 512 : index
      %139 = vector.load %arg13[%c1_103, %c512_104] : memref<3x864xf32, #tpu.memory_space<vmem>>, vector<1x32xf32>
      tpu.vector_store %arg13[%c1_103, %c512_104], %138 {strides = array<i32>} : memref<3x864xf32, #tpu.memory_space<vmem>>, vector<1x32xf32>,
      %140 = vector.extract_strided_slice %51 {offsets = [48, 0], sizes = [1, 32], strides = [1, 1]} : vector<90x32xf32> to vector<1x32xf32>
      %c1_105 = arith.constant 1 : index
      %c544_106 = arith.constant 544 : index
      %141 = vector.load %arg13[%c1_105, %c544_106] : memref<3x864xf32, #tpu.memory_space<vmem>>, vector<1x32xf32>
      tpu.vector_store %arg13[%c1_105, %c544_106], %140 {strides = array<i32>} : memref<3x864xf32, #tpu.memory_space<vmem>>, vector<1x32xf32>,
      %142 = vector.extract_strided_slice %51 {offsets = [50, 0], sizes = [1, 32], strides = [1, 1]} : vector<90x32xf32> to vector<1x32xf32>
      %c1_107 = arith.constant 1 : index
      %c576_108 = arith.constant 576 : index
      %143 = vector.load %arg13[%c1_107, %c576_108] : memref<3x864xf32, #tpu.memory_space<vmem>>, vector<1x32xf32>
      tpu.vector_store %arg13[%c1_107, %c576_108], %142 {strides = array<i32>} : memref<3x864xf32, #tpu.memory_space<vmem>>, vector<1x32xf32>,
      %144 = vector.extract_strided_slice %51 {offsets = [51, 0], sizes = [1, 32], strides = [1, 1]} : vector<90x32xf32> to vector<1x32xf32>
      %c1_109 = arith.constant 1 : index
      %c608_110 = arith.constant 608 : index
      %145 = vector.load %arg13[%c1_109, %c608_110] : memref<3x864xf32, #tpu.memory_space<vmem>>, vector<1x32xf32>
      tpu.vector_store %arg13[%c1_109, %c608_110], %144 {strides = array<i32>} : memref<3x864xf32, #tpu.memory_space<vmem>>, vector<1x32xf32>,
      %146 = vector.extract_strided_slice %51 {offsets = [52, 0], sizes = [1, 32], strides = [1, 1]} : vector<90x32xf32> to vector<1x32xf32>
      %c1_111 = arith.constant 1 : index
      %c640_112 = arith.constant 640 : index
      %147 = vector.load %arg13[%c1_111, %c640_112] : memref<3x864xf32, #tpu.memory_space<vmem>>, vector<1x32xf32>
      tpu.vector_store %arg13[%c1_111, %c640_112], %146 {strides = array<i32>} : memref<3x864xf32, #tpu.memory_space<vmem>>, vector<1x32xf32>,
      %148 = vector.extract_strided_slice %51 {offsets = [53, 0], sizes = [1, 32], strides = [1, 1]} : vector<90x32xf32> to vector<1x32xf32>
      %c1_113 = arith.constant 1 : index
      %c672_114 = arith.constant 672 : index
      %149 = vector.load %arg13[%c1_113, %c672_114] : memref<3x864xf32, #tpu.memory_space<vmem>>, vector<1x32xf32>
      tpu.vector_store %arg13[%c1_113, %c672_114], %148 {strides = array<i32>} : memref<3x864xf32, #tpu.memory_space<vmem>>, vector<1x32xf32>,
      %150 = vector.extract_strided_slice %51 {offsets = [54, 0], sizes = [1, 32], strides = [1, 1]} : vector<90x32xf32> to vector<1x32xf32>
      %c1_115 = arith.constant 1 : index
      %c704_116 = arith.constant 704 : index
      %151 = vector.load %arg13[%c1_115, %c704_116] : memref<3x864xf32, #tpu.memory_space<vmem>>, vector<1x32xf32>
      tpu.vector_store %arg13[%c1_115, %c704_116], %150 {strides = array<i32>} : memref<3x864xf32, #tpu.memory_space<vmem>>, vector<1x32xf32>,
      %152 = vector.extract_strided_slice %51 {offsets = [55, 0], sizes = [1, 32], strides = [1, 1]} : vector<90x32xf32> to vector<1x32xf32>
      %c1_117 = arith.constant 1 : index
      %c736_118 = arith.constant 736 : index
      %153 = vector.load %arg13[%c1_117, %c736_118] : memref<3x864xf32, #tpu.memory_space<vmem>>, vector<1x32xf32>
      tpu.vector_store %arg13[%c1_117, %c736_118], %152 {strides = array<i32>} : memref<3x864xf32, #tpu.memory_space<vmem>>, vector<1x32xf32>,
      %154 = vector.extract_strided_slice %51 {offsets = [56, 0], sizes = [1, 32], strides = [1, 1]} : vector<90x32xf32> to vector<1x32xf32>
      %c1_119 = arith.constant 1 : index
      %c768_120 = arith.constant 768 : index
      %155 = vector.load %arg13[%c1_119, %c768_120] : memref<3x864xf32, #tpu.memory_space<vmem>>, vector<1x32xf32>
      tpu.vector_store %arg13[%c1_119, %c768_120], %154 {strides = array<i32>} : memref<3x864xf32, #tpu.memory_space<vmem>>, vector<1x32xf32>,
      %156 = vector.extract_strided_slice %51 {offsets = [57, 0], sizes = [1, 32], strides = [1, 1]} : vector<90x32xf32> to vector<1x32xf32>
      %c1_121 = arith.constant 1 : index
      %c800_122 = arith.constant 800 : index
      %157 = vector.load %arg13[%c1_121, %c800_122] : memref<3x864xf32, #tpu.memory_space<vmem>>, vector<1x32xf32>
      tpu.vector_store %arg13[%c1_121, %c800_122], %156 {strides = array<i32>} : memref<3x864xf32, #tpu.memory_space<vmem>>, vector<1x32xf32>,
      %158 = vector.extract_strided_slice %51 {offsets = [58, 0], sizes = [1, 32], strides = [1, 1]} : vector<90x32xf32> to vector<1x32xf32>
      %c1_123 = arith.constant 1 : index
      %c832_124 = arith.constant 832 : index
      %159 = vector.load %arg13[%c1_123, %c832_124] : memref<3x864xf32, #tpu.memory_space<vmem>>, vector<1x32xf32>
      tpu.vector_store %arg13[%c1_123, %c832_124], %158 {strides = array<i32>} : memref<3x864xf32, #tpu.memory_space<vmem>>, vector<1x32xf32>,
      %160 = vector.extract_strided_slice %51 {offsets = [60, 0], sizes = [1, 32], strides = [1, 1]} : vector<90x32xf32> to vector<1x32xf32>
      %c2 = arith.constant 2 : index
      %c0_125 = arith.constant 0 : index
      %161 = vector.load %arg13[%c2, %c0_125] : memref<3x864xf32, #tpu.memory_space<vmem>>, vector<1x32xf32>
      tpu.vector_store %arg13[%c2, %c0_125], %160 {strides = array<i32>} : memref<3x864xf32, #tpu.memory_space<vmem>>, vector<1x32xf32>,
      %162 = vector.extract_strided_slice %51 {offsets = [61, 0], sizes = [1, 32], strides = [1, 1]} : vector<90x32xf32> to vector<1x32xf32>
      %c2_126 = arith.constant 2 : index
      %c32_127 = arith.constant 32 : index
      %163 = vector.load %arg13[%c2_126, %c32_127] : memref<3x864xf32, #tpu.memory_space<vmem>>, vector<1x32xf32>
      tpu.vector_store %arg13[%c2_126, %c32_127], %162 {strides = array<i32>} : memref<3x864xf32, #tpu.memory_space<vmem>>, vector<1x32xf32>,
      %164 = vector.extract_strided_slice %51 {offsets = [62, 0], sizes = [1, 32], strides = [1, 1]} : vector<90x32xf32> to vector<1x32xf32>
      %c2_128 = arith.constant 2 : index
      %c64_129 = arith.constant 64 : index
      %165 = vector.load %arg13[%c2_128, %c64_129] : memref<3x864xf32, #tpu.memory_space<vmem>>, vector<1x32xf32>
      tpu.vector_store %arg13[%c2_128, %c64_129], %164 {strides = array<i32>} : memref<3x864xf32, #tpu.memory_space<vmem>>, vector<1x32xf32>,
      %166 = vector.extract_strided_slice %51 {offsets = [63, 0], sizes = [1, 32], strides = [1, 1]} : vector<90x32xf32> to vector<1x32xf32>
      %c2_130 = arith.constant 2 : index
      %c96_131 = arith.constant 96 : index
      %167 = vector.load %arg13[%c2_130, %c96_131] : memref<3x864xf32, #tpu.memory_space<vmem>>, vector<1x32xf32>
      tpu.vector_store %arg13[%c2_130, %c96_131], %166 {strides = array<i32>} : memref<3x864xf32, #tpu.memory_space<vmem>>, vector<1x32xf32>,
      %168 = vector.extract_strided_slice %51 {offsets = [64, 0], sizes = [1, 32], strides = [1, 1]} : vector<90x32xf32> to vector<1x32xf32>
      %c2_132 = arith.constant 2 : index
      %c128_133 = arith.constant 128 : index
      %169 = vector.load %arg13[%c2_132, %c128_133] : memref<3x864xf32, #tpu.memory_space<vmem>>, vector<1x32xf32>
      tpu.vector_store %arg13[%c2_132, %c128_133], %168 {strides = array<i32>} : memref<3x864xf32, #tpu.memory_space<vmem>>, vector<1x32xf32>,
      %170 = vector.extract_strided_slice %51 {offsets = [65, 0], sizes = [1, 32], strides = [1, 1]} : vector<90x32xf32> to vector<1x32xf32>
      %c2_134 = arith.constant 2 : index
      %c160_135 = arith.constant 160 : index
      %171 = vector.load %arg13[%c2_134, %c160_135] : memref<3x864xf32, #tpu.memory_space<vmem>>, vector<1x32xf32>
      tpu.vector_store %arg13[%c2_134, %c160_135], %170 {strides = array<i32>} : memref<3x864xf32, #tpu.memory_space<vmem>>, vector<1x32xf32>,
      %172 = vector.extract_strided_slice %51 {offsets = [66, 0], sizes = [1, 32], strides = [1, 1]} : vector<90x32xf32> to vector<1x32xf32>
      %c2_136 = arith.constant 2 : index
      %c192_137 = arith.constant 192 : index
      %173 = vector.load %arg13[%c2_136, %c192_137] : memref<3x864xf32, #tpu.memory_space<vmem>>, vector<1x32xf32>
      tpu.vector_store %arg13[%c2_136, %c192_137], %172 {strides = array<i32>} : memref<3x864xf32, #tpu.memory_space<vmem>>, vector<1x32xf32>,
      %174 = vector.extract_strided_slice %51 {offsets = [67, 0], sizes = [1, 32], strides = [1, 1]} : vector<90x32xf32> to vector<1x32xf32>
      %c2_138 = arith.constant 2 : index
      %c224_139 = arith.constant 224 : index
      %175 = vector.load %arg13[%c2_138, %c224_139] : memref<3x864xf32, #tpu.memory_space<vmem>>, vector<1x32xf32>
      tpu.vector_store %arg13[%c2_138, %c224_139], %174 {strides = array<i32>} : memref<3x864xf32, #tpu.memory_space<vmem>>, vector<1x32xf32>,
      %176 = vector.extract_strided_slice %51 {offsets = [68, 0], sizes = [1, 32], strides = [1, 1]} : vector<90x32xf32> to vector<1x32xf32>
      %c2_140 = arith.constant 2 : index
      %c256_141 = arith.constant 256 : index
      %177 = vector.load %arg13[%c2_140, %c256_141] : memref<3x864xf32, #tpu.memory_space<vmem>>, vector<1x32xf32>
      tpu.vector_store %arg13[%c2_140, %c256_141], %176 {strides = array<i32>} : memref<3x864xf32, #tpu.memory_space<vmem>>, vector<1x32xf32>,
      %178 = vector.extract_strided_slice %51 {offsets = [70, 0], sizes = [1, 32], strides = [1, 1]} : vector<90x32xf32> to vector<1x32xf32>
      %c2_142 = arith.constant 2 : index
      %c288_143 = arith.constant 288 : index
      %179 = vector.load %arg13[%c2_142, %c288_143] : memref<3x864xf32, #tpu.memory_space<vmem>>, vector<1x32xf32>
      tpu.vector_store %arg13[%c2_142, %c288_143], %178 {strides = array<i32>} : memref<3x864xf32, #tpu.memory_space<vmem>>, vector<1x32xf32>,
      %180 = vector.extract_strided_slice %51 {offsets = [71, 0], sizes = [1, 32], strides = [1, 1]} : vector<90x32xf32> to vector<1x32xf32>
      %c2_144 = arith.constant 2 : index
      %c320_145 = arith.constant 320 : index
      %181 = vector.load %arg13[%c2_144, %c320_145] : memref<3x864xf32, #tpu.memory_space<vmem>>, vector<1x32xf32>
      tpu.vector_store %arg13[%c2_144, %c320_145], %180 {strides = array<i32>} : memref<3x864xf32, #tpu.memory_space<vmem>>, vector<1x32xf32>,
      %182 = vector.extract_strided_slice %51 {offsets = [72, 0], sizes = [1, 32], strides = [1, 1]} : vector<90x32xf32> to vector<1x32xf32>
      %c2_146 = arith.constant 2 : index
      %c352_147 = arith.constant 352 : index
      %183 = vector.load %arg13[%c2_146, %c352_147] : memref<3x864xf32, #tpu.memory_space<vmem>>, vector<1x32xf32>
      tpu.vector_store %arg13[%c2_146, %c352_147], %182 {strides = array<i32>} : memref<3x864xf32, #tpu.memory_space<vmem>>, vector<1x32xf32>,
      %184 = vector.extract_strided_slice %51 {offsets = [73, 0], sizes = [1, 32], strides = [1, 1]} : vector<90x32xf32> to vector<1x32xf32>
      %c2_148 = arith.constant 2 : index
      %c384_149 = arith.constant 384 : index
      %185 = vector.load %arg13[%c2_148, %c384_149] : memref<3x864xf32, #tpu.memory_space<vmem>>, vector<1x32xf32>
      tpu.vector_store %arg13[%c2_148, %c384_149], %184 {strides = array<i32>} : memref<3x864xf32, #tpu.memory_space<vmem>>, vector<1x32xf32>,
      %186 = vector.extract_strided_slice %51 {offsets = [74, 0], sizes = [1, 32], strides = [1, 1]} : vector<90x32xf32> to vector<1x32xf32>
      %c2_150 = arith.constant 2 : index
      %c416_151 = arith.constant 416 : index
      %187 = vector.load %arg13[%c2_150, %c416_151] : memref<3x864xf32, #tpu.memory_space<vmem>>, vector<1x32xf32>
      tpu.vector_store %arg13[%c2_150, %c416_151], %186 {strides = array<i32>} : memref<3x864xf32, #tpu.memory_space<vmem>>, vector<1x32xf32>,
      %188 = vector.extract_strided_slice %51 {offsets = [75, 0], sizes = [1, 32], strides = [1, 1]} : vector<90x32xf32> to vector<1x32xf32>
      %c2_152 = arith.constant 2 : index
      %c448_153 = arith.constant 448 : index
      %189 = vector.load %arg13[%c2_152, %c448_153] : memref<3x864xf32, #tpu.memory_space<vmem>>, vector<1x32xf32>
      tpu.vector_store %arg13[%c2_152, %c448_153], %188 {strides = array<i32>} : memref<3x864xf32, #tpu.memory_space<vmem>>, vector<1x32xf32>,
      %190 = vector.extract_strided_slice %51 {offsets = [76, 0], sizes = [1, 32], strides = [1, 1]} : vector<90x32xf32> to vector<1x32xf32>
      %c2_154 = arith.constant 2 : index
      %c480_155 = arith.constant 480 : index
      %191 = vector.load %arg13[%c2_154, %c480_155] : memref<3x864xf32, #tpu.memory_space<vmem>>, vector<1x32xf32>
      tpu.vector_store %arg13[%c2_154, %c480_155], %190 {strides = array<i32>} : memref<3x864xf32, #tpu.memory_space<vmem>>, vector<1x32xf32>,
      %192 = vector.extract_strided_slice %51 {offsets = [77, 0], sizes = [1, 32], strides = [1, 1]} : vector<90x32xf32> to vector<1x32xf32>
      %c2_156 = arith.constant 2 : index
      %c512_157 = arith.constant 512 : index
      %193 = vector.load %arg13[%c2_156, %c512_157] : memref<3x864xf32, #tpu.memory_space<vmem>>, vector<1x32xf32>
      tpu.vector_store %arg13[%c2_156, %c512_157], %192 {strides = array<i32>} : memref<3x864xf32, #tpu.memory_space<vmem>>, vector<1x32xf32>,
      %194 = vector.extract_strided_slice %51 {offsets = [78, 0], sizes = [1, 32], strides = [1, 1]} : vector<90x32xf32> to vector<1x32xf32>
      %c2_158 = arith.constant 2 : index
      %c544_159 = arith.constant 544 : index
      %195 = vector.load %arg13[%c2_158, %c544_159] : memref<3x864xf32, #tpu.memory_space<vmem>>, vector<1x32xf32>
      tpu.vector_store %arg13[%c2_158, %c544_159], %194 {strides = array<i32>} : memref<3x864xf32, #tpu.memory_space<vmem>>, vector<1x32xf32>,
      %196 = vector.extract_strided_slice %51 {offsets = [80, 0], sizes = [1, 32], strides = [1, 1]} : vector<90x32xf32> to vector<1x32xf32>
      %c2_160 = arith.constant 2 : index
      %c576_161 = arith.constant 576 : index
      %197 = vector.load %arg13[%c2_160, %c576_161] : memref<3x864xf32, #tpu.memory_space<vmem>>, vector<1x32xf32>
      tpu.vector_store %arg13[%c2_160, %c576_161], %196 {strides = array<i32>} : memref<3x864xf32, #tpu.memory_space<vmem>>, vector<1x32xf32>,
      %198 = vector.extract_strided_slice %51 {offsets = [81, 0], sizes = [1, 32], strides = [1, 1]} : vector<90x32xf32> to vector<1x32xf32>
      %c2_162 = arith.constant 2 : index
      %c608_163 = arith.constant 608 : index
      %199 = vector.load %arg13[%c2_162, %c608_163] : memref<3x864xf32, #tpu.memory_space<vmem>>, vector<1x32xf32>
      tpu.vector_store %arg13[%c2_162, %c608_163], %198 {strides = array<i32>} : memref<3x864xf32, #tpu.memory_space<vmem>>, vector<1x32xf32>,
      %200 = vector.extract_strided_slice %51 {offsets = [82, 0], sizes = [1, 32], strides = [1, 1]} : vector<90x32xf32> to vector<1x32xf32>
      %c2_164 = arith.constant 2 : index
      %c640_165 = arith.constant 640 : index
      %201 = vector.load %arg13[%c2_164, %c640_165] : memref<3x864xf32, #tpu.memory_space<vmem>>, vector<1x32xf32>
      tpu.vector_store %arg13[%c2_164, %c640_165], %200 {strides = array<i32>} : memref<3x864xf32, #tpu.memory_space<vmem>>, vector<1x32xf32>,
      %202 = vector.extract_strided_slice %51 {offsets = [83, 0], sizes = [1, 32], strides = [1, 1]} : vector<90x32xf32> to vector<1x32xf32>
      %c2_166 = arith.constant 2 : index
      %c672_167 = arith.constant 672 : index
      %203 = vector.load %arg13[%c2_166, %c672_167] : memref<3x864xf32, #tpu.memory_space<vmem>>, vector<1x32xf32>
      tpu.vector_store %arg13[%c2_166, %c672_167], %202 {strides = array<i32>} : memref<3x864xf32, #tpu.memory_space<vmem>>, vector<1x32xf32>,
      %204 = vector.extract_strided_slice %51 {offsets = [84, 0], sizes = [1, 32], strides = [1, 1]} : vector<90x32xf32> to vector<1x32xf32>
      %c2_168 = arith.constant 2 : index
      %c704_169 = arith.constant 704 : index
      %205 = vector.load %arg13[%c2_168, %c704_169] : memref<3x864xf32, #tpu.memory_space<vmem>>, vector<1x32xf32>
      tpu.vector_store %arg13[%c2_168, %c704_169], %204 {strides = array<i32>} : memref<3x864xf32, #tpu.memory_space<vmem>>, vector<1x32xf32>,
      %206 = vector.extract_strided_slice %51 {offsets = [85, 0], sizes = [1, 32], strides = [1, 1]} : vector<90x32xf32> to vector<1x32xf32>
      %c2_170 = arith.constant 2 : index
      %c736_171 = arith.constant 736 : index
      %207 = vector.load %arg13[%c2_170, %c736_171] : memref<3x864xf32, #tpu.memory_space<vmem>>, vector<1x32xf32>
      tpu.vector_store %arg13[%c2_170, %c736_171], %206 {strides = array<i32>} : memref<3x864xf32, #tpu.memory_space<vmem>>, vector<1x32xf32>,
      %208 = vector.extract_strided_slice %51 {offsets = [86, 0], sizes = [1, 32], strides = [1, 1]} : vector<90x32xf32> to vector<1x32xf32>
      %c2_172 = arith.constant 2 : index
      %c768_173 = arith.constant 768 : index
      %209 = vector.load %arg13[%c2_172, %c768_173] : memref<3x864xf32, #tpu.memory_space<vmem>>, vector<1x32xf32>
      tpu.vector_store %arg13[%c2_172, %c768_173], %208 {strides = array<i32>} : memref<3x864xf32, #tpu.memory_space<vmem>>, vector<1x32xf32>,
      %210 = vector.extract_strided_slice %51 {offsets = [87, 0], sizes = [1, 32], strides = [1, 1]} : vector<90x32xf32> to vector<1x32xf32>
      %c2_174 = arith.constant 2 : index
      %c800_175 = arith.constant 800 : index
      %211 = vector.load %arg13[%c2_174, %c800_175] : memref<3x864xf32, #tpu.memory_space<vmem>>, vector<1x32xf32>
      tpu.vector_store %arg13[%c2_174, %c800_175], %210 {strides = array<i32>} : memref<3x864xf32, #tpu.memory_space<vmem>>, vector<1x32xf32>,
      %212 = vector.extract_strided_slice %51 {offsets = [88, 0], sizes = [1, 32], strides = [1, 1]} : vector<90x32xf32> to vector<1x32xf32>
      %c2_176 = arith.constant 2 : index
      %c832_177 = arith.constant 832 : index
      %213 = vector.load %arg13[%c2_176, %c832_177] : memref<3x864xf32, #tpu.memory_space<vmem>>, vector<1x32xf32>
      tpu.vector_store %arg13[%c2_176, %c832_177], %212 {strides = array<i32>} : memref<3x864xf32, #tpu.memory_space<vmem>>, vector<1x32xf32>,
      %cst_178 = arith.constant 0.000000e+00 : f32
      %214 = vector.broadcast %cst_178 : f32 to vector<1x256xf32>
      %c0_179 = arith.constant 0 : index
      %c0_180 = arith.constant 0 : index
      %215 = vector.load %arg14[%c0_179, %c0_180] : memref<1x256xf32, #tpu.memory_space<vmem>>, vector<1x256xf32>
      tpu.vector_store %arg14[%c0_179, %c0_180], %214 {strides = array<i32>} : memref<1x256xf32, #tpu.memory_space<vmem>>, vector<1x256xf32>,
    } else {
    }
    %3 = arith.index_cast %arg0 : i32 to index
    %c0 = arith.constant 0 : index
    %4 = vector.load %arg13[%3, %c0] : memref<3x864xf32, #tpu.memory_space<vmem>>, vector<1x864xf32>
    %5 = arith.truncf %4 : vector<1x864xf32> to vector<1x864xbf16>
    %c0_1 = arith.constant 0 : index
    %c0_2 = arith.constant 0 : index
    %6 = vector.load %arg6[%c0_1, %c0_2] : memref<864x256xi8, #tpu.memory_space<vmem>>, vector<864x256xi8>
    %7 = arith.sitofp %6 : vector<864x256xi8> to vector<864x256xf32>
    %8 = arith.truncf %7 : vector<864x256xf32> to vector<864x256xbf16>
    %c0_3 = arith.constant 0 : index
    %c0_4 = arith.constant 0 : index
    %9 = vector.load %arg14[%c0_3, %c0_4] : memref<1x256xf32, #tpu.memory_space<vmem>>, vector<1x256xf32>
    %cst = arith.constant dense<0.000000e+00> : vector<1x256xf32>
    %10 = tpu.matmul %5, %8, %cst {dimension_numbers = #tpu.dot_dimension_numbers<[1], [0], [0], [1], [0, 0, 1, 1], [], []>} : vector<1x864xbf16>, vector<864x256xbf16>, vector<1x256xf32> -> vector<1x256xf32>
    %11 = arith.addf %9, %10 : vector<1x256xf32>
    %c0_5 = arith.constant 0 : index
    %c0_6 = arith.constant 0 : index
    %12 = vector.load %arg14[%c0_5, %c0_6] : memref<1x256xf32, #tpu.memory_space<vmem>>, vector<1x256xf32>
    tpu.vector_store %arg14[%c0_5, %c0_6], %11 {strides = array<i32>} : memref<1x256xf32, #tpu.memory_space<vmem>>, vector<1x256xf32>,
    %c2_i32 = arith.constant 2 : i32
    %13 = arith.cmpi eq, %arg0, %c2_i32 : i32
    %14 = arith.extui %13 : i1 to i32
    %c0_i32_7 = arith.constant 0 : i32
    %15 = arith.cmpi ne, %14, %c0_i32_7 : i32
    scf.if %15 {
      %c0_8 = arith.constant 0 : index
      %c0_9 = arith.constant 0 : index
      %16 = vector.load %arg14[%c0_8, %c0_9] : memref<1x256xf32, #tpu.memory_space<vmem>>, vector<1x256xf32>
      %c0_10 = arith.constant 0 : index
      %c0_11 = arith.constant 0 : index
      %17 = vector.load %arg7[%c0_10, %c0_11] : memref<1x256xf32, #tpu.memory_space<vmem>>, vector<1x256xf32>
      %18 = arith.mulf %16, %17 : vector<1x256xf32>
      %c0_12 = arith.constant 0 : index
      %c0_13 = arith.constant 0 : index
      %19 = vector.load %arg8[%c0_12, %c0_13] : memref<1x256xf32, #tpu.memory_space<vmem>>, vector<1x256xf32>
      %20 = arith.addf %18, %19 : vector<1x256xf32>
      %cst_14 = arith.constant 0.000000e+00 : f32
      %21 = vector.broadcast %cst_14 : f32 to vector<1x256xf32>
      %22 = arith.maximumf %20, %21 : vector<1x256xf32>
      %23 = arith.truncf %22 : vector<1x256xf32> to vector<1x256xbf16>
      %c0_15 = arith.constant 0 : index
      %c0_16 = arith.constant 0 : index
      %24 = vector.load %arg9[%c0_15, %c0_16] : memref<256x128xbf16, #tpu.memory_space<vmem>>, vector<256x128xbf16>
      %cst_17 = arith.constant dense<0.000000e+00> : vector<1x128xf32>
      %25 = tpu.matmul %23, %24, %cst_17 {dimension_numbers = #tpu.dot_dimension_numbers<[1], [0], [0], [1], [0, 0, 1, 1], [], []>} : vector<1x256xbf16>, vector<256x128xbf16>, vector<1x128xf32> -> vector<1x128xf32>
      %c0_18 = arith.constant 0 : index
      %c0_19 = arith.constant 0 : index
      %26 = vector.load %arg10[%c0_18, %c0_19] : memref<1x128xf32, #tpu.memory_space<vmem>>, vector<1x128xf32>
      %27 = arith.addf %25, %26 : vector<1x128xf32>
      %c0_20 = arith.constant 0 : index
      %c0_21 = arith.constant 0 : index
      %28 = vector.load %arg11[%c0_20, %c0_21] : memref<1x128xf32, #tpu.memory_space<vmem>>, vector<1x128xf32>
      tpu.vector_store %arg11[%c0_20, %c0_21], %27 {strides = array<i32>} : memref<1x128xf32, #tpu.memory_space<vmem>>, vector<1x128xf32>,
    } else {
    }
    return
  }
  func.func @transform_0(%arg0: i32) -> (i32, i32) {
    %c0_i32 = arith.constant 0 : i32
    %c0_i32_0 = arith.constant 0 : i32
    %c0_i32_1 = arith.constant 0 : i32
    return %c0_i32, %c0_i32_0 : i32, i32
  }
  func.func @transform_1(%arg0: i32) -> (i32, i32) {
    %c0_i32 = arith.constant 0 : i32
    %c0_i32_0 = arith.constant 0 : i32
    %c0_i32_1 = arith.constant 0 : i32
    return %c0_i32, %c0_i32_0 : i32, i32
  }
  func.func @transform_2(%arg0: i32) -> (i32, i32) {
    %c0_i32 = arith.constant 0 : i32
    %c0_i32_0 = arith.constant 0 : i32
    %c0_i32_1 = arith.constant 0 : i32
    return %c0_i32, %c0_i32_0 : i32, i32
  }
  func.func @transform_3(%arg0: i32) -> (i32, i32) {
    %c0_i32 = arith.constant 0 : i32
    %c0_i32_0 = arith.constant 0 : i32
    %c0_i32_1 = arith.constant 0 : i32
    return %c0_i32, %c0_i32_0 : i32, i32
  }
  func.func @transform_4(%arg0: i32) -> (i32, i32) {
    %c0_i32 = arith.constant 0 : i32
    %c0_i32_0 = arith.constant 0 : i32
    %c0_i32_1 = arith.constant 0 : i32
    return %c0_i32, %c0_i32_0 : i32, i32
  }
  func.func @transform_5(%arg0: i32) -> (i32, i32) {
    %c0_i32 = arith.constant 0 : i32
    %c0_i32_0 = arith.constant 0 : i32
    return %arg0, %c0_i32 : i32, i32
  }
  func.func @transform_6(%arg0: i32) -> (i32, i32) {
    %c0_i32 = arith.constant 0 : i32
    %c0_i32_0 = arith.constant 0 : i32
    %c0_i32_1 = arith.constant 0 : i32
    return %c0_i32, %c0_i32_0 : i32, i32
  }
  func.func @transform_7(%arg0: i32) -> (i32, i32) {
    %c0_i32 = arith.constant 0 : i32
    %c0_i32_0 = arith.constant 0 : i32
    %c0_i32_1 = arith.constant 0 : i32
    return %c0_i32, %c0_i32_0 : i32, i32
  }
  func.func @transform_8(%arg0: i32) -> (i32, i32) {
    %c0_i32 = arith.constant 0 : i32
    %c0_i32_0 = arith.constant 0 : i32
    %c0_i32_1 = arith.constant 0 : i32
    return %c0_i32, %c0_i32_0 : i32, i32
  }
  func.func @transform_9(%arg0: i32) -> (i32, i32) {
    %c0_i32 = arith.constant 0 : i32
    %c0_i32_0 = arith.constant 0 : i32
    %c0_i32_1 = arith.constant 0 : i32
    return %c0_i32, %c0_i32_0 : i32, i32
  }
  func.func @transform_10(%arg0: i32) -> (i32, i32) {
    %c0_i32 = arith.constant 0 : i32
    %c0_i32_0 = arith.constant 0 : i32
    %c0_i32_1 = arith.constant 0 : i32
    return %c0_i32, %c0_i32_0 : i32, i32
  }
}

</mosaic_0001>

<llo_original>
// kernel: network_forward.1
$region0: #{network_forward.1}
  #allocation0 [shape = 'u32[]', space=smem, size = 0x4, offset = 0x4, fixed_abs, tag = 'smem constant byte address 0x4 - core index']
  #allocation1 [shape = 'u32[144,128]{1,0:T(1,128)}', space=vmem, size = 0x12000, scoped, tag = 'internal scratch']
  #allocation2 [shape = 'f32[408,16]{1,0:T(8,128)}', space=vmem, size = 0x33000, scoped, tag = 'scratch operand']
  #allocation3 [shape = 'f32[3,864]{1,0:T(4,128)}', space=vmem, size = 0x3800, scoped, tag = 'scratch operand']
  #allocation4 [shape = 'f32[1,256]{1,0:T(1,128)}', space=vmem, size = 0x400, scoped, tag = 'scratch operand']
  %s0 = inlined_call_operand.vmem [shape: bf16[400,256], index: 0, kind: input, shape index: {}]
  %s1 = inlined_call_operand.vmem [shape: bf16[256,16], index: 1, kind: input, shape index: {}]
  %s2 = inlined_call_operand.vmem [shape: f32[1,16], index: 2, kind: input, shape index: {}]
  %s3 = inlined_call_operand.vmem [shape: bf16[256,32], index: 3, kind: input, shape index: {}]
  %s4 = inlined_call_operand.vmem [shape: f32[1,32], index: 4, kind: input, shape index: {}]
  %s5 = inlined_call_operand.vmem [shape: s8[2592,256], index: 5, kind: input, shape index: {}]
  %s6 = inlined_call_operand.vmem [shape: f32[1,256], index: 6, kind: input, shape index: {}]
  %s7 = inlined_call_operand.vmem [shape: f32[1,256], index: 7, kind: input, shape index: {}]
  %s8 = inlined_call_operand.vmem [shape: bf16[256,128], index: 8, kind: input, shape index: {}]
  %s9 = inlined_call_operand.vmem [shape: f32[1,128], index: 9, kind: input, shape index: {}]
  %s10 = inlined_call_operand.vmem [shape: f32[1,128], index: 10, kind: output, shape index: {}]
  %s11 = sld [smem:[#allocation0]]
  $region81: #{network_forward.1} parent=0
    _
  %s13 = ssub.s32 1, %s11
  %s14 = scalar_select 0, %s13, %s11
  loop: start=0, step=1, limit=5
  $region2: #{network_forward.1} parent=0 // loop_pre_header
    _
  $region3: #{network_forward.1} parent=0 // loop_header
    %s16 = sphi 0, %s20
    %p17 = scmp.ge.s32.totalorder %s16, 5
    %s24 = sphi 0, %s24
    %s26 = sphi 0, %s24
    %s27 = sphi 0, %s26
    %s41 = sphi 0, %s27
    %s45 = sphi 0, %s45
    %s47 = sphi 0, %s45
    %s48 = sphi 0, %s47
    %s62 = sphi 0, %s48
    %s66 = sphi 0, %s66
    %s68 = sphi 0, %s66
    %s69 = sphi 0, %s68
    %s83 = sphi 0, %s69
    %s87 = sphi 0, %s87
    %s89 = sphi 0, %s87
    %s90 = sphi 0, %s89
    %s104 = sphi 0, %s90
    %s108 = sphi 0, %s108
    %s110 = sphi 0, %s108
    %s111 = sphi 0, %s110
    %s125 = sphi 0, %s111
    %s131 = sphi 0, %s133
    %s134 = sphi 0, %s131
    %s135 = sphi 0, %s134
    %s151 = sphi 0, %s135
    %s155 = sphi 0, %s155
    %s157 = sphi 0, %s155
    %s158 = sphi 0, %s157
    %s172 = sphi 0, %s158
    %s176 = sphi 0, %s176
    %s178 = sphi 0, %s176
    %s179 = sphi 0, %s178
    %s193 = sphi 0, %s179
    %s197 = sphi 0, %s197
    %s199 = sphi 0, %s197
    %s200 = sphi 0, %s199
    %s214 = sphi 0, %s200
    %s218 = sphi 0, %s218
    %s220 = sphi 0, %s218
    %s221 = sphi 0, %s220
    %s235 = sphi 0, %s221
    %s239 = sphi 0, %s239
    %s241 = sphi 0, %s239
    %s242 = sphi 0, %s241
    %s256 = sphi 0, %s242
  $region4: #{network_forward.1} parent=0 // loop_header_branch
    %19 = sbr.rel (%p17) target = $region8
  $region5: #{network_forward.1} parent=0 // loop_body
    %s21 = ssub.s32 %s16, 1
    %s22 = ssub.s32 %s16, 2
    %s23 = sadd.s32 %s16, 1
    %s25 = sadd.s32 %s24, 1
    %p28 = scmp.eq.s32.totalorder %s16, 2
    %p29 = scmp.ne.s32.totalorder %s24, %s26
    %p30 = scmp.eq.s32.totalorder %s16, 0
    %p31 = por %p29, %p30
    %p32 = scmp.ne.s32.totalorder %s24, %s26
    %p33 = scmp.eq.s32.totalorder %s21, 2
    %p34 = por %p32, %p33
    %p35 = scmp.ne.s32.totalorder %s26, %s27
    %p36 = scmp.eq.s32.totalorder %s21, 0
    %p37 = por %p35, %p36
    %p38 = scmp.ne.s32.totalorder %s26, %s27
    %p39 = scmp.eq.s32.totalorder %s22, 2
    %p40 = por %p38, %p39
    %p42 = scmp.ne.s32.totalorder %s27, %s41
    %p43 = scmp.eq.s32.totalorder %s22, 0
    %p44 = por %p42, %p43
    %s46 = sadd.s32 %s45, 1
    %p49 = scmp.eq.s32.totalorder %s16, 2
    %p50 = scmp.ne.s32.totalorder %s45, %s47
    %p51 = scmp.eq.s32.totalorder %s16, 0
    %p52 = por %p50, %p51
    %p53 = scmp.ne.s32.totalorder %s45, %s47
    %p54 = scmp.eq.s32.totalorder %s21, 2
    %p55 = por %p53, %p54
    %p56 = scmp.ne.s32.totalorder %s47, %s48
    %p57 = scmp.eq.s32.totalorder %s21, 0
    %p58 = por %p56, %p57
    %p59 = scmp.ne.s32.totalorder %s47, %s48
    %p60 = scmp.eq.s32.totalorder %s22, 2
    %p61 = por %p59, %p60
    %p63 = scmp.ne.s32.totalorder %s48, %s62
    %p64 = scmp.eq.s32.totalorder %s22, 0
    %p65 = por %p63, %p64
    %s67 = sadd.s32 %s66, 1
    %p70 = scmp.eq.s32.totalorder %s16, 2
    %p71 = scmp.ne.s32.totalorder %s66, %s68
    %p72 = scmp.eq.s32.totalorder %s16, 0
    %p73 = por %p71, %p72
    %p74 = scmp.ne.s32.totalorder %s66, %s68
    %p75 = scmp.eq.s32.totalorder %s21, 2
    %p76 = por %p74, %p75
    %p77 = scmp.ne.s32.totalorder %s68, %s69
    %p78 = scmp.eq.s32.totalorder %s21, 0
    %p79 = por %p77, %p78
    %p80 = scmp.ne.s32.totalorder %s68, %s69
    %p81 = scmp.eq.s32.totalorder %s22, 2
    %p82 = por %p80, %p81
    %p84 = scmp.ne.s32.totalorder %s69, %s83
    %p85 = scmp.eq.s32.totalorder %s22, 0
    %p86 = por %p84, %p85
    %s88 = sadd.s32 %s87, 1
    %p91 = scmp.eq.s32.totalorder %s16, 2
    %p92 = scmp.ne.s32.totalorder %s87, %s89
    %p93 = scmp.eq.s32.totalorder %s16, 0
    %p94 = por %p92, %p93
    %p95 = scmp.ne.s32.totalorder %s87, %s89
    %p96 = scmp.eq.s32.totalorder %s21, 2
    %p97 = por %p95, %p96
    %p98 = scmp.ne.s32.totalorder %s89, %s90
    %p99 = scmp.eq.s32.totalorder %s21, 0
    %p100 = por %p98, %p99
    %p101 = scmp.ne.s32.totalorder %s89, %s90
    %p102 = scmp.eq.s32.totalorder %s22, 2
    %p103 = por %p101, %p102
    %p105 = scmp.ne.s32.totalorder %s90, %s104
    %p106 = scmp.eq.s32.totalorder %s22, 0
    %p107 = por %p105, %p106
    %s109 = sadd.s32 %s108, 1
    %p112 = scmp.eq.s32.totalorder %s16, 2
    %p113 = scmp.ne.s32.totalorder %s108, %s110
    %p114 = scmp.eq.s32.totalorder %s16, 0
    %p115 = por %p113, %p114
    %p116 = scmp.ne.s32.totalorder %s108, %s110
    %p117 = scmp.eq.s32.totalorder %s21, 2
    %p118 = por %p116, %p117
    %p119 = scmp.ne.s32.totalorder %s110, %s111
    %p120 = scmp.eq.s32.totalorder %s21, 0
    %p121 = por %p119, %p120
    %p122 = scmp.ne.s32.totalorder %s110, %s111
    %p123 = scmp.eq.s32.totalorder %s22, 2
    %p124 = por %p122, %p123
    %p126 = scmp.ne.s32.totalorder %s111, %s125
    %p127 = scmp.eq.s32.totalorder %s22, 0
    %p128 = por %p126, %p127
    %s129 = ssub.s32 %s16, %s23
    %p130 = scmp.eq.s32.totalorder %s129, 0
    %s132 = sadd.s32 %s131, 1
    %s133 = scalar_select %p130, %s131, %s132
    %p136 = pneg %p130
    %p137 = scmp.eq.s32.totalorder %s16, 2
    %p138 = por %p136, %p137
    %p139 = scmp.ne.s32.totalorder %s131, %s134
    %p140 = scmp.eq.s32.totalorder %s16, 0
    %p141 = por %p139, %p140
    %p142 = scmp.ne.s32.totalorder %s131, %s134
    %p143 = scmp.eq.s32.totalorder %s21, 2
    %p144 = por %p142, %p143
    %p145 = scmp.ne.s32.totalorder %s134, %s135
    %p146 = scmp.eq.s32.totalorder %s21, 0
    %p147 = por %p145, %p146
    %p148 = scmp.ne.s32.totalorder %s134, %s135
    %p149 = scmp.eq.s32.totalorder %s22, 2
    %p150 = por %p148, %p149
    %p152 = scmp.ne.s32.totalorder %s135, %s151
    %p153 = scmp.eq.s32.totalorder %s22, 0
    %p154 = por %p152, %p153
    %s156 = sadd.s32 %s155, 1
    %p159 = scmp.eq.s32.totalorder %s16, 2
    %p160 = scmp.ne.s32.totalorder %s155, %s157
    %p161 = scmp.eq.s32.totalorder %s16, 0
    %p162 = por %p160, %p161
    %p163 = scmp.ne.s32.totalorder %s155, %s157
    %p164 = scmp.eq.s32.totalorder %s21, 2
    %p165 = por %p163, %p164
    %p166 = scmp.ne.s32.totalorder %s157, %s158
    %p167 = scmp.eq.s32.totalorder %s21, 0
    %p168 = por %p166, %p167
    %p169 = scmp.ne.s32.totalorder %s157, %s158
    %p170 = scmp.eq.s32.totalorder %s22, 2
    %p171 = por %p169, %p170
    %p173 = scmp.ne.s32.totalorder %s158, %s172
    %p174 = scmp.eq.s32.totalorder %s22, 0
    %p175 = por %p173, %p174
    %s177 = sadd.s32 %s176, 1
    %p180 = scmp.eq.s32.totalorder %s16, 2
    %p181 = scmp.ne.s32.totalorder %s176, %s178
    %p182 = scmp.eq.s32.totalorder %s16, 0
    %p183 = por %p181, %p182
    %p184 = scmp.ne.s32.totalorder %s176, %s178
    %p185 = scmp.eq.s32.totalorder %s21, 2
    %p186 = por %p184, %p185
    %p187 = scmp.ne.s32.totalorder %s178, %s179
    %p188 = scmp.eq.s32.totalorder %s21, 0
    %p189 = por %p187, %p188
    %p190 = scmp.ne.s32.totalorder %s178, %s179
    %p191 = scmp.eq.s32.totalorder %s22, 2
    %p192 = por %p190, %p191
    %p194 = scmp.ne.s32.totalorder %s179, %s193
    %p195 = scmp.eq.s32.totalorder %s22, 0
    %p196 = por %p194, %p195
    %s198 = sadd.s32 %s197, 1
    %p201 = scmp.eq.s32.totalorder %s16, 2
    %p202 = scmp.ne.s32.totalorder %s197, %s199
    %p203 = scmp.eq.s32.totalorder %s16, 0
    %p204 = por %p202, %p203
    %p205 = scmp.ne.s32.totalorder %s197, %s199
    %p206 = scmp.eq.s32.totalorder %s21, 2
    %p207 = por %p205, %p206
    %p208 = scmp.ne.s32.totalorder %s199, %s200
    %p209 = scmp.eq.s32.totalorder %s21, 0
    %p210 = por %p208, %p209
    %p211 = scmp.ne.s32.totalorder %s199, %s200
    %p212 = scmp.eq.s32.totalorder %s22, 2
    %p213 = por %p211, %p212
    %p215 = scmp.ne.s32.totalorder %s200, %s214
    %p216 = scmp.eq.s32.totalorder %s22, 0
    %p217 = por %p215, %p216
    %s219 = sadd.s32 %s218, 1
    %p222 = scmp.eq.s32.totalorder %s16, 2
    %p223 = scmp.ne.s32.totalorder %s218, %s220
    %p224 = scmp.eq.s32.totalorder %s16, 0
    %p225 = por %p223, %p224
    %p226 = scmp.ne.s32.totalorder %s218, %s220
    %p227 = scmp.eq.s32.totalorder %s21, 2
    %p228 = por %p226, %p227
    %p229 = scmp.ne.s32.totalorder %s220, %s221
    %p230 = scmp.eq.s32.totalorder %s21, 0
    %p231 = por %p229, %p230
    %p232 = scmp.ne.s32.totalorder %s220, %s221
    %p233 = scmp.eq.s32.totalorder %s22, 2
    %p234 = por %p232, %p233
    %p236 = scmp.ne.s32.totalorder %s221, %s235
    %p237 = scmp.eq.s32.totalorder %s22, 0
    %p238 = por %p236, %p237
    %s240 = sadd.s32 %s239, 1
    %p243 = scmp.eq.s32.totalorder %s16, 2
    %p244 = scmp.ne.s32.totalorder %s239, %s241
    %p245 = scmp.eq.s32.totalorder %s16, 0
    %p246 = por %p244, %p245
    %p247 = scmp.ne.s32.totalorder %s239, %s241
    %p248 = scmp.eq.s32.totalorder %s21, 2
    %p249 = por %p247, %p248
    %p250 = scmp.ne.s32.totalorder %s241, %s242
    %p251 = scmp.eq.s32.totalorder %s21, 0
    %p252 = por %p250, %p251
    %p253 = scmp.ne.s32.totalorder %s241, %s242
    %p254 = scmp.eq.s32.totalorder %s22, 2
    %p255 = por %p253, %p254
    %p257 = scmp.ne.s32.totalorder %s242, %s256
    %p258 = scmp.eq.s32.totalorder %s22, 0
    %p259 = por %p257, %p258
    %p260 = scmp.le.s32.totalorder 1, %s16
    %p261 = scmp.lt.s32.totalorder %s16, 4
    %p262 = pnand %p260, %p261
    %p263 = pneg %p262
    // Predicated region
    $region9: #{network_forward.1} parent=5 // pred_check
      _
    $region10: #{network_forward.1} parent=5 // pred_check_branch
      %265 = sbr.rel (%p262) target = $region12
    $region11: #{network_forward.1} parent=5 // pred_region
      %s266 = ssub.s32 %s16, 1
      // Predicated region
      $region13: #{network_forward.1} parent=11 // pred_check
        %p267 = pneg %p37
      $region14: #{network_forward.1} parent=11 // pred_check_branch
        %269 = sbr.rel (%p267) target = $region16
      $region15: #{network_forward.1} parent=11 // pred_region
        _
      $region16: #{network_forward.1} parent=11 // pred_fallthru
        _
      // Predicated region
      $region17: #{network_forward.1} parent=11 // pred_check
        %p270 = pneg %p58
      $region18: #{network_forward.1} parent=11 // pred_check_branch
        %272 = sbr.rel (%p270) target = $region20
      $region19: #{network_forward.1} parent=11 // pred_region
        _
      $region20: #{network_forward.1} parent=11 // pred_fallthru
        _
      // Predicated region
      $region21: #{network_forward.1} parent=11 // pred_check
        %p273 = pneg %p79
      $region22: #{network_forward.1} parent=11 // pred_check_branch
        %275 = sbr.rel (%p273) target = $region24
      $region23: #{network_forward.1} parent=11 // pred_region
        _
      $region24: #{network_forward.1} parent=11 // pred_fallthru
        _
      // Predicated region
      $region25: #{network_forward.1} parent=11 // pred_check
        %p276 = pneg %p100
      $region26: #{network_forward.1} parent=11 // pred_check_branch
        %278 = sbr.rel (%p276) target = $region28
      $region27: #{network_forward.1} parent=11 // pred_region
        _
      $region28: #{network_forward.1} parent=11 // pred_fallthru
        _
      // Predicated region
      $region29: #{network_forward.1} parent=11 // pred_check
        %p279 = pneg %p121
      $region30: #{network_forward.1} parent=11 // pred_check_branch
        %281 = sbr.rel (%p279) target = $region32
      $region31: #{network_forward.1} parent=11 // pred_region
        _
      $region32: #{network_forward.1} parent=11 // pred_fallthru
        _
      // Predicated region
      $region33: #{network_forward.1} parent=11 // pred_check
        %p282 = pneg %p168
      $region34: #{network_forward.1} parent=11 // pred_check_branch
        %284 = sbr.rel (%p282) target = $region36
      $region35: #{network_forward.1} parent=11 // pred_region
        _
      $region36: #{network_forward.1} parent=11 // pred_fallthru
        _
      // Predicated region
      $region37: #{network_forward.1} parent=11 // pred_check
        %p285 = pneg %p189
      $region38: #{network_forward.1} parent=11 // pred_check_branch
        %287 = sbr.rel (%p285) target = $region40
      $region39: #{network_forward.1} parent=11 // pred_region
        _
      $region40: #{network_forward.1} parent=11 // pred_fallthru
        _
      // Predicated region
      $region41: #{network_forward.1} parent=11 // pred_check
        %p288 = pneg %p210
      $region42: #{network_forward.1} parent=11 // pred_check_branch
        %290 = sbr.rel (%p288) target = $region44
      $region43: #{network_forward.1} parent=11 // pred_region
        _
      $region44: #{network_forward.1} parent=11 // pred_fallthru
        _
      // Predicated region
      $region45: #{network_forward.1} parent=11 // pred_check
        %p291 = pneg %p231
      $region46: #{network_forward.1} parent=11 // pred_check_branch
        %293 = sbr.rel (%p291) target = $region48
      $region47: #{network_forward.1} parent=11 // pred_region
        _
      $region48: #{network_forward.1} parent=11 // pred_fallthru
        _
    $region12: #{network_forward.1} parent=5 // pred_fallthru
      _
    %p294 = scmp.lt.s32.totalorder %s16, 3
    // Predicated region
    $region49: #{network_forward.1} parent=5 // pred_check
      %p295 = pneg %p294
    $region50: #{network_forward.1} parent=5 // pred_check_branch
      %297 = sbr.rel (%p295) target = $region52
    $region51: #{network_forward.1} parent=5 // pred_region
      // Predicated region
      $region53: #{network_forward.1} parent=51 // pred_check
        %p298 = pneg %p141
      $region54: #{network_forward.1} parent=51 // pred_check_branch
        %300 = sbr.rel (%p298) target = $region56
      $region55: #{network_forward.1} parent=51 // pred_region
        %s301 = smul.u32 27, %s16
        %p302 = scmp.lt.s32.totalorder %s301, 80
        %s303 = scalar_select %p302, %s301, 80
        %s304 = smul.addr %s303, 2
        %s305 = smul.addr %s304, 8
        %s306 = scalar_lea.vmem %s5, %s305
        %s307 = smul.u32 27, %s16
      $region56: #{network_forward.1} parent=51 // pred_fallthru
        _
    $region52: #{network_forward.1} parent=5 // pred_fallthru
      _
    %p308 = scmp.le.s32.totalorder 1, %s16
    %p309 = scmp.lt.s32.totalorder %s16, 4
    %p310 = pnand %p308, %p309
    %p311 = pneg %p310
    // Predicated region
    $region57: #{network_forward.1} parent=5 // pred_check
      _
    $region58: #{network_forward.1} parent=5 // pred_check_branch
      %313 = sbr.rel (%p310) target = $region60
    $region59: #{network_forward.1} parent=5 // pred_region
      %s314 = ssub.s32 %s16, 1
      %p315 = pneg %p37
      %p316 = pneg %p34
      %p317 = pneg %p58
      %p318 = pneg %p55
      %p319 = pneg %p79
      %p320 = pneg %p76
      %p321 = pneg %p100
      %p322 = pneg %p97
      %p323 = pneg %p121
      %p324 = pneg %p118
      %s325 = smul.u32 27, %s21
      %p326 = scmp.lt.s32.totalorder %s325, 80
      %s327 = scalar_select %p326, %s325, 80
      %s328 = smul.addr %s327, 2
      %s329 = smul.addr %s328, 8
      %s330 = scalar_lea.vmem %s5, %s329
      %p331 = pneg %p147
      %p332 = pneg %p144
      %p333 = pneg %p168
      %p334 = pneg %p165
      %p335 = pneg %p189
      %p336 = pneg %p186
      %p337 = pneg %p210
      %p338 = pneg %p207
      %p339 = pneg %p231
      %p340 = pneg %p228
      %p341 = pneg %p252
      %p342 = pneg %p249
      %s343 = smul.u32 27, %s21
      %p344 = scmp.lt.s32.totalorder %s343, 80
      %s345 = scalar_select %p344, %s343, 80
      %s346 = smul.addr %s345, 2
      %s347 = smul.addr %s346, 8
      %s348 = scalar_lea.vmem %s5, %s347
      %s349 = smul.u32 27, %s21
      %p351 = scmp.eq.s32.totalorder %s21, 0
      // Predicated region
      $region61: #{network_forward.1} parent=59 // pred_check
        %p352 = pneg %p351
      $region62: #{network_forward.1} parent=59 // pred_check_branch
        %354 = sbr.rel (%p352) target = $region64
      $region63: #{network_forward.1} parent=59 // pred_region
        %v355 = vld [vmem:[%s0] sm:$0xff]
        %v356 = vld [vmem:[%s0 + $0x8] sm:$0xff]
        %v357 = vld [vmem:[%s0 + $0x10] sm:$0xff]
        %v358 = vld [vmem:[%s0 + $0x18] sm:$0xff]
        %v359 = vld [vmem:[%s0 + $0x20] sm:$0xff]
        %v360 = vld [vmem:[%s0 + $0x28] sm:$0xff]
        %v361 = vld [vmem:[%s0 + $0x30] sm:$0xff]
        %v362 = vld [vmem:[%s0 + $0x38] sm:$0xff]
        %v363 = vld [vmem:[%s0 + $0x40] sm:$0xff]
        %v364 = vld [vmem:[%s0 + $0x48] sm:$0xff]
        %v365 = vld [vmem:[%s0 + $0x50] sm:$0xff]
        %v366 = vld [vmem:[%s0 + $0x58] sm:$0xff]
        %v367 = vld [vmem:[%s0 + $0x60] sm:$0xff]
        %v368 = vld [vmem:[%s0 + $0x68] sm:$0xff]
        %v369 = vld [vmem:[%s0 + $0x70] sm:$0xff]
        %v370 = vld [vmem:[%s0 + $0x78] sm:$0xff]
        %v371 = vld [vmem:[%s0 + $0x80] sm:$0xff]
        %v372 = vld [vmem:[%s0 + $0x88] sm:$0xff]
        %v373 = vld [vmem:[%s0 + $0x90] sm:$0xff]
        %v374 = vld [vmem:[%s0 + $0x98] sm:$0xff]
        %v375 = vld [vmem:[%s0 + $0xa0] sm:$0xff]
        %v376 = vld [vmem:[%s0 + $0xa8] sm:$0xff]
        %v377 = vld [vmem:[%s0 + $0xb0] sm:$0xff]
        %v378 = vld [vmem:[%s0 + $0xb8] sm:$0xff]
        %v379 = vld [vmem:[%s0 + $0xc0] sm:$0xff]
        %v380 = vld [vmem:[%s0 + $0xc8] sm:$0xff]
        %v381 = vld [vmem:[%s0 + $0xd0] sm:$0xff]
        %v382 = vld [vmem:[%s0 + $0xd8] sm:$0xff]
        %v383 = vld [vmem:[%s0 + $0xe0] sm:$0xff]
        %v384 = vld [vmem:[%s0 + $0xe8] sm:$0xff]
        %v385 = vld [vmem:[%s0 + $0xf0] sm:$0xff]
        %v386 = vld [vmem:[%s0 + $0xf8] sm:$0xff]
        %v387 = vld [vmem:[%s0 + $0x100] sm:$0xff]
        %v388 = vld [vmem:[%s0 + $0x108] sm:$0xff]
        %v389 = vld [vmem:[%s0 + $0x110] sm:$0xff]
        %v390 = vld [vmem:[%s0 + $0x118] sm:$0xff]
        %v391 = vld [vmem:[%s0 + $0x120] sm:$0xff]
        %v392 = vld [vmem:[%s0 + $0x128] sm:$0xff]
        %v393 = vld [vmem:[%s0 + $0x130] sm:$0xff]
        %v394 = vld [vmem:[%s0 + $0x138] sm:$0xff]
        %v395 = vld [vmem:[%s0 + $0x140] sm:$0xff]
        %v396 = vld [vmem:[%s0 + $0x148] sm:$0xff]
        %v397 = vld [vmem:[%s0 + $0x150] sm:$0xff]
        %v398 = vld [vmem:[%s0 + $0x158] sm:$0xff]
        %v399 = vld [vmem:[%s0 + $0x160] sm:$0xff]
        %v400 = vld [vmem:[%s0 + $0x168] sm:$0xff]
        %v401 = vld [vmem:[%s0 + $0x170] sm:$0xff]
        %v402 = vld [vmem:[%s0 + $0x178] sm:$0xff]
        %v403 = vld [vmem:[%s0 + $0x180] sm:$0xff]
        %v404 = vld [vmem:[%s0 + $0x188] sm:$0xff]
        %v405 = vld [vmem:[%s1] sm:$0xf]
        %v406 = vld [vmem:[%s1 + $0x4] sm:$0xf]
        %v407 = vld [vmem:[%s1 + $0x8] sm:$0xf]
        %v408 = vld [vmem:[%s1 + $0xc] sm:$0xf]
        %v409 = vld [vmem:[%s1 + $0x10] sm:$0xf]
        %v410 = vld [vmem:[%s1 + $0x14] sm:$0xf]
        %v411 = vld [vmem:[%s1 + $0x18] sm:$0xf]
        %v412 = vld [vmem:[%s1 + $0x1c] sm:$0xf]
        %v413 = vld [vmem:[%s1 + $0x20] sm:$0xf]
        %v414 = vld [vmem:[%s1 + $0x24] sm:$0xf]
        %v415 = vld [vmem:[%s1 + $0x28] sm:$0xf]
        %v416 = vld [vmem:[%s1 + $0x2c] sm:$0xf]
        %v417 = vld [vmem:[%s1 + $0x30] sm:$0xf]
        %v418 = vld [vmem:[%s1 + $0x34] sm:$0xf]
        %v419 = vld [vmem:[%s1 + $0x38] sm:$0xf]
        %v420 = vld [vmem:[%s1 + $0x3c] sm:$0xf]
        %v421 = vld [vmem:[%s1 + $0x40] sm:$0xf]
        %v422 = vld [vmem:[%s1 + $0x44] sm:$0xf]
        %v423 = vld [vmem:[%s1 + $0x48] sm:$0xf]
        %v424 = vld [vmem:[%s1 + $0x4c] sm:$0xf]
        %v425 = vld [vmem:[%s1 + $0x50] sm:$0xf]
        %v426 = vld [vmem:[%s1 + $0x54] sm:$0xf]
        %v427 = vld [vmem:[%s1 + $0x58] sm:$0xf]
        %v428 = vld [vmem:[%s1 + $0x5c] sm:$0xf]
        %v429 = vld [vmem:[%s1 + $0x60] sm:$0xf]
        %v430 = vld [vmem:[%s1 + $0x64] sm:$0xf]
        %v431 = vld [vmem:[%s1 + $0x68] sm:$0xf]
        %v432 = vld [vmem:[%s1 + $0x6c] sm:$0xf]
        %v433 = vld [vmem:[%s1 + $0x70] sm:$0xf]
        %v434 = vld [vmem:[%s1 + $0x74] sm:$0xf]
        %v435 = vld [vmem:[%s1 + $0x78] sm:$0xf]
        %v436 = vld [vmem:[%s1 + $0x7c] sm:$0xf]
        %v437 = vld [vmem:[%s2] sm:$0x1]
        %v439 = vlaneseq
        %v440 = vshrl.u32 %v439, 7
        %v441 = vsub.s32 0, %v440
        %v442 = vrot.slane %v437, %v441
        %v494 = vunpack.c.l.b16 %v355
        %v495 = vunpack.c.h.b16 %v355
        %v496 = vunpack.c.l.b16 %v356
        %v497 = vunpack.c.h.b16 %v356
        %v498 = vunpack.c.l.b16 %v357
        %v499 = vunpack.c.h.b16 %v357
        %v500 = vunpack.c.l.b16 %v358
        %v501 = vunpack.c.h.b16 %v358
        %v502 = vunpack.c.l.b16 %v359
        %v503 = vunpack.c.h.b16 %v359
        %v504 = vunpack.c.l.b16 %v360
        %v505 = vunpack.c.h.b16 %v360
        %v506 = vunpack.c.l.b16 %v361
        %v507 = vunpack.c.h.b16 %v361
        %v508 = vunpack.c.l.b16 %v362
        %v509 = vunpack.c.h.b16 %v362
        %v510 = vunpack.c.l.b16 %v363
        %v511 = vunpack.c.h.b16 %v363
        %v512 = vunpack.c.l.b16 %v364
        %v513 = vunpack.c.h.b16 %v364
        %v514 = vunpack.c.l.b16 %v365
        %v515 = vunpack.c.h.b16 %v365
        %v516 = vunpack.c.l.b16 %v366
        %v517 = vunpack.c.h.b16 %v366
        %v518 = vunpack.c.l.b16 %v367
        %v519 = vunpack.c.h.b16 %v367
        %v520 = vunpack.c.l.b16 %v368
        %v521 = vunpack.c.h.b16 %v368
        %v522 = vunpack.c.l.b16 %v369
        %v523 = vunpack.c.h.b16 %v369
        %v524 = vunpack.c.l.b16 %v370
        %v525 = vunpack.c.h.b16 %v370
        %v526 = vunpack.c.l.b16 %v371
        %v527 = vunpack.c.h.b16 %v371
        %v528 = vunpack.c.l.b16 %v372
        %v529 = vunpack.c.h.b16 %v372
        %v530 = vunpack.c.l.b16 %v373
        %v531 = vunpack.c.h.b16 %v373
        %v532 = vunpack.c.l.b16 %v374
        %v533 = vunpack.c.h.b16 %v374
        %v534 = vunpack.c.l.b16 %v375
        %v535 = vunpack.c.h.b16 %v375
        %v536 = vunpack.c.l.b16 %v376
        %v537 = vunpack.c.h.b16 %v376
        %v538 = vunpack.c.l.b16 %v377
        %v539 = vunpack.c.h.b16 %v377
        %v540 = vunpack.c.l.b16 %v378
        %v541 = vunpack.c.h.b16 %v378
        %v542 = vunpack.c.l.b16 %v379
        %v543 = vunpack.c.h.b16 %v379
        %v544 = vunpack.c.l.b16 %v380
        %v545 = vunpack.c.h.b16 %v380
        %v546 = vunpack.c.l.b16 %v381
        %v547 = vunpack.c.h.b16 %v381
        %v548 = vunpack.c.l.b16 %v382
        %v549 = vunpack.c.h.b16 %v382
        %v550 = vunpack.c.l.b16 %v383
        %v551 = vunpack.c.h.b16 %v383
        %v552 = vunpack.c.l.b16 %v384
        %v553 = vunpack.c.h.b16 %v384
        %v554 = vunpack.c.l.b16 %v385
        %v555 = vunpack.c.h.b16 %v385
        %v556 = vunpack.c.l.b16 %v386
        %v557 = vunpack.c.h.b16 %v386
        %v558 = vunpack.c.l.b16 %v387
        %v559 = vunpack.c.h.b16 %v387
        %v560 = vunpack.c.l.b16 %v388
        %v561 = vunpack.c.h.b16 %v388
        %v562 = vunpack.c.l.b16 %v389
        %v563 = vunpack.c.h.b16 %v389
        %v564 = vunpack.c.l.b16 %v390
        %v565 = vunpack.c.h.b16 %v390
        %v566 = vunpack.c.l.b16 %v391
        %v567 = vunpack.c.h.b16 %v391
        %v568 = vunpack.c.l.b16 %v392
        %v569 = vunpack.c.h.b16 %v392
        %v570 = vunpack.c.l.b16 %v393
        %v571 = vunpack.c.h.b16 %v393
        %v572 = vunpack.c.l.b16 %v394
        %v573 = vunpack.c.h.b16 %v394
        %v574 = vunpack.c.l.b16 %v395
        %v575 = vunpack.c.h.b16 %v395
        %v576 = vunpack.c.l.b16 %v396
        %v577 = vunpack.c.h.b16 %v396
        %v578 = vunpack.c.l.b16 %v397
        %v579 = vunpack.c.h.b16 %v397
        %v580 = vunpack.c.l.b16 %v398
        %v581 = vunpack.c.h.b16 %v398
        %v582 = vunpack.c.l.b16 %v399
        %v583 = vunpack.c.h.b16 %v399
        %v584 = vunpack.c.l.b16 %v400
        %v585 = vunpack.c.h.b16 %v400
        %v586 = vunpack.c.l.b16 %v401
        %v587 = vunpack.c.h.b16 %v401
        %v588 = vunpack.c.l.b16 %v402
        %v589 = vunpack.c.h.b16 %v402
        %v590 = vunpack.c.l.b16 %v403
        %v591 = vunpack.c.h.b16 %v403
        %v592 = vunpack.c.l.b16 %v404
        %v593 = vunpack.c.h.b16 %v404
        %v594 = vpack.c.b16 %v496, %v494
        %v595 = vpack.c.b16 %v497, %v495
        %v596 = vpack.c.b16 %v500, %v498
        %v597 = vpack.c.b16 %v501, %v499
        %v598 = vpack.c.b16 %v504, %v502
        %v599 = vpack.c.b16 %v505, %v503
        %v600 = vpack.c.b16 %v508, %v506
        %v601 = vpack.c.b16 %v509, %v507
        %v602 = vpack.c.b16 %v512, %v510
        %v603 = vpack.c.b16 %v513, %v511
        %v604 = vpack.c.b16 %v516, %v514
        %v605 = vpack.c.b16 %v517, %v515
        %v606 = vpack.c.b16 %v520, %v518
        %v607 = vpack.c.b16 %v521, %v519
        %v608 = vpack.c.b16 %v524, %v522
        %v609 = vpack.c.b16 %v525, %v523
        %v610 = vpack.c.b16 %v528, %v526
        %v611 = vpack.c.b16 %v529, %v527
        %v612 = vpack.c.b16 %v532, %v530
        %v613 = vpack.c.b16 %v533, %v531
        %v614 = vpack.c.b16 %v536, %v534
        %v615 = vpack.c.b16 %v537, %v535
        %v616 = vpack.c.b16 %v540, %v538
        %v617 = vpack.c.b16 %v541, %v539
        %v618 = vpack.c.b16 %v544, %v542
        %v619 = vpack.c.b16 %v545, %v543
        %v620 = vpack.c.b16 %v548, %v546
        %v621 = vpack.c.b16 %v549, %v547
        %v622 = vpack.c.b16 %v552, %v550
        %v623 = vpack.c.b16 %v553, %v551
        %v624 = vpack.c.b16 %v556, %v554
        %v625 = vpack.c.b16 %v557, %v555
        %v626 = vpack.c.b16 %v560, %v558
        %v627 = vpack.c.b16 %v561, %v559
        %v628 = vpack.c.b16 %v564, %v562
        %v629 = vpack.c.b16 %v565, %v563
        %v630 = vpack.c.b16 %v568, %v566
        %v631 = vpack.c.b16 %v569, %v567
        %v632 = vpack.c.b16 %v572, %v570
        %v633 = vpack.c.b16 %v573, %v571
        %v634 = vpack.c.b16 %v576, %v574
        %v635 = vpack.c.b16 %v577, %v575
        %v636 = vpack.c.b16 %v580, %v578
        %v637 = vpack.c.b16 %v581, %v579
        %v638 = vpack.c.b16 %v584, %v582
        %v639 = vpack.c.b16 %v585, %v583
        %v640 = vpack.c.b16 %v588, %v586
        %v641 = vpack.c.b16 %v589, %v587
        %v642 = vpack.c.b16 %v592, %v590
        %v643 = vpack.c.b16 %v593, %v591
        %v726 = vunpack.c.l.b16 %v405
        %v727 = vunpack.c.l.b16 %v406
        %v728 = vunpack.c.l.b16 %v407
        %v729 = vunpack.c.l.b16 %v408
        %v730 = vunpack.c.l.b16 %v409
        %v731 = vunpack.c.l.b16 %v410
        %v732 = vunpack.c.l.b16 %v411
        %v733 = vunpack.c.l.b16 %v412
        %v734 = vunpack.c.l.b16 %v413
        %v735 = vunpack.c.l.b16 %v414
        %v736 = vunpack.c.l.b16 %v415
        %v737 = vunpack.c.l.b16 %v416
        %v738 = vunpack.c.l.b16 %v417
        %v739 = vunpack.c.l.b16 %v418
        %v740 = vunpack.c.l.b16 %v419
        %v741 = vunpack.c.l.b16 %v420
        %v742 = vunpack.c.l.b16 %v421
        %v743 = vunpack.c.l.b16 %v422
        %v744 = vunpack.c.l.b16 %v423
        %v745 = vunpack.c.l.b16 %v424
        %v746 = vunpack.c.l.b16 %v425
        %v747 = vunpack.c.l.b16 %v426
        %v748 = vunpack.c.l.b16 %v427
        %v749 = vunpack.c.l.b16 %v428
        %v750 = vunpack.c.l.b16 %v429
        %v751 = vunpack.c.l.b16 %v430
        %v752 = vunpack.c.l.b16 %v431
        %v753 = vunpack.c.l.b16 %v432
        %v754 = vunpack.c.l.b16 %v433
        %v755 = vunpack.c.l.b16 %v434
        %v756 = vunpack.c.l.b16 %v435
        %v757 = vunpack.c.l.b16 %v436
        %v758 = vpack.c.b16 %v727, %v726
        %v759 = vpack.c.b16 %v729, %v728
        %v760 = vpack.c.b16 %v731, %v730
        %v761 = vpack.c.b16 %v733, %v732
        %v762 = vpack.c.b16 %v735, %v734
        %v763 = vpack.c.b16 %v737, %v736
        %v764 = vpack.c.b16 %v739, %v738
        %v765 = vpack.c.b16 %v741, %v740
        %v766 = vpack.c.b16 %v743, %v742
        %v767 = vpack.c.b16 %v745, %v744
        %v768 = vpack.c.b16 %v747, %v746
        %v769 = vpack.c.b16 %v749, %v748
        %v770 = vpack.c.b16 %v751, %v750
        %v771 = vpack.c.b16 %v753, %v752
        %v772 = vpack.c.b16 %v755, %v754
        %v773 = vpack.c.b16 %v757, %v756
        %790 = vmatprep.subr.bf16.mxu0 0
        %791 = vmatpush1.bf16.msra.mxu0 %v758
        %792 = vmatprep.subr.bf16.mxu0 0
        %793 = vmatpush1.bf16.msra.mxu0 %v759
        %794 = vmatprep.subr.bf16.mxu0 0
        %795 = vmatpush1.bf16.msra.mxu0 %v760
        %796 = vmatprep.subr.bf16.mxu0 0
        %797 = vmatpush1.bf16.msra.mxu0 %v761
        %798 = vmatprep.subr.bf16.mxu0 0
        %799 = vmatpush1.bf16.msra.mxu0 %v762
        %800 = vmatprep.subr.bf16.mxu0 0
        %801 = vmatpush1.bf16.msra.mxu0 %v763
        %802 = vmatprep.subr.bf16.mxu0 0
        %803 = vmatpush1.bf16.msra.mxu0 %v764
        %804 = vmatprep.subr.bf16.mxu0 0
        %805 = vmatpush1.bf16.msra.mxu0 %v765
        %806 = vmatprep.subr.bf16.mxu0 0
        %807 = vmatpush1.bf16.msra.mxu0 %v766
        %808 = vmatprep.subr.bf16.mxu0 0
        %809 = vmatpush1.bf16.msra.mxu0 %v767
        %810 = vmatprep.subr.bf16.mxu0 0
        %811 = vmatpush1.bf16.msra.mxu0 %v768
        %812 = vmatprep.subr.bf16.mxu0 0
        %813 = vmatpush1.bf16.msra.mxu0 %v769
        %814 = vmatprep.subr.bf16.mxu0 0
        %815 = vmatpush1.bf16.msra.mxu0 %v770
        %816 = vmatprep.subr.bf16.mxu0 0
        %817 = vmatpush1.bf16.msra.mxu0 %v771
        %818 = vmatprep.subr.bf16.mxu0 0
        %819 = vmatpush1.bf16.msra.mxu0 %v772
        %820 = vmatprep.subr.bf16.mxu0 0
        %821 = vmatpush1.bf16.msra.mxu0 %v773
        %822 = vmatprep.mubr.bf16.mxu0 %v595
        %823 = vmatmul.mubr.bf16.gmra.mrb[0].mxu0 %v594
        %v824 = vpop.f32.mrb[0].mxu0
        %v825 = vadd.f32 %v442, %v824
        %v826 = vpop.f32.mrb[0].mxu0
        %v827 = vpop.f32.mrb[0].mxu0
        %v828 = vadd.f32 %v442, %v827
        %v829 = vpop.f32.mrb[0].mxu0
        %830 = vmatprep.mubr.bf16.mxu0 %v597
        %831 = vmatmul.mubr.bf16.gmra.mrb[0].mxu0 %v596
        %v832 = vpop.f32.mrb[0].mxu0
        %v833 = vadd.f32 %v442, %v832
        %v834 = vpop.f32.mrb[0].mxu0
        %v835 = vpop.f32.mrb[0].mxu0
        %v836 = vadd.f32 %v442, %v835
        %v837 = vpop.f32.mrb[0].mxu0
        %838 = vmatprep.mubr.bf16.mxu0 %v599
        %839 = vmatmul.mubr.bf16.gmra.mrb[0].mxu0 %v598
        %v840 = vpop.f32.mrb[0].mxu0
        %v841 = vadd.f32 %v442, %v840
        %v842 = vpop.f32.mrb[0].mxu0
        %v843 = vpop.f32.mrb[0].mxu0
        %v844 = vadd.f32 %v442, %v843
        %v845 = vpop.f32.mrb[0].mxu0
        %846 = vmatprep.mubr.bf16.mxu0 %v601
        %847 = vmatmul.mubr.bf16.gmra.mrb[0].mxu0 %v600
        %v848 = vpop.f32.mrb[0].mxu0
        %v849 = vadd.f32 %v442, %v848
        %v850 = vpop.f32.mrb[0].mxu0
        %v851 = vpop.f32.mrb[0].mxu0
        %v852 = vadd.f32 %v442, %v851
        %v853 = vpop.f32.mrb[0].mxu0
        %854 = vmatprep.mubr.bf16.mxu0 %v603
        %855 = vmatmul.mubr.bf16.gmra.mrb[0].mxu0 %v602
        %v856 = vpop.f32.mrb[0].mxu0
        %v857 = vadd.f32 %v442, %v856
        %v858 = vpop.f32.mrb[0].mxu0
        %v859 = vpop.f32.mrb[0].mxu0
        %v860 = vadd.f32 %v442, %v859
        %v861 = vpop.f32.mrb[0].mxu0
        %862 = vmatprep.mubr.bf16.mxu0 %v605
        %863 = vmatmul.mubr.bf16.gmra.mrb[0].mxu0 %v604
        %v864 = vpop.f32.mrb[0].mxu0
        %v865 = vadd.f32 %v442, %v864
        %v866 = vpop.f32.mrb[0].mxu0
        %v867 = vpop.f32.mrb[0].mxu0
        %v868 = vadd.f32 %v442, %v867
        %v869 = vpop.f32.mrb[0].mxu0
        %870 = vmatprep.mubr.bf16.mxu0 %v607
        %871 = vmatmul.mubr.bf16.gmra.mrb[0].mxu0 %v606
        %v872 = vpop.f32.mrb[0].mxu0
        %v873 = vadd.f32 %v442, %v872
        %v874 = vpop.f32.mrb[0].mxu0
        %v875 = vpop.f32.mrb[0].mxu0
        %v876 = vadd.f32 %v442, %v875
        %v877 = vpop.f32.mrb[0].mxu0
        %878 = vmatprep.mubr.bf16.mxu0 %v609
        %879 = vmatmul.mubr.bf16.gmra.mrb[0].mxu0 %v608
        %v880 = vpop.f32.mrb[0].mxu0
        %v881 = vadd.f32 %v442, %v880
        %v882 = vpop.f32.mrb[0].mxu0
        %v883 = vpop.f32.mrb[0].mxu0
        %v884 = vadd.f32 %v442, %v883
        %v885 = vpop.f32.mrb[0].mxu0
        %886 = vmatprep.mubr.bf16.mxu0 %v611
        %887 = vmatmul.mubr.bf16.gmra.mrb[0].mxu0 %v610
        %v888 = vpop.f32.mrb[0].mxu0
        %v889 = vadd.f32 %v442, %v888
        %v890 = vpop.f32.mrb[0].mxu0
        %v891 = vpop.f32.mrb[0].mxu0
        %v892 = vadd.f32 %v442, %v891
        %v893 = vpop.f32.mrb[0].mxu0
        %894 = vmatprep.mubr.bf16.mxu0 %v613
        %895 = vmatmul.mubr.bf16.gmra.mrb[0].mxu0 %v612
        %v896 = vpop.f32.mrb[0].mxu0
        %v897 = vadd.f32 %v442, %v896
        %v898 = vpop.f32.mrb[0].mxu0
        %v899 = vpop.f32.mrb[0].mxu0
        %v900 = vadd.f32 %v442, %v899
        %v901 = vpop.f32.mrb[0].mxu0
        %902 = vmatprep.mubr.bf16.mxu0 %v615
        %903 = vmatmul.mubr.bf16.gmra.mrb[0].mxu0 %v614
        %v904 = vpop.f32.mrb[0].mxu0
        %v905 = vadd.f32 %v442, %v904
        %v906 = vpop.f32.mrb[0].mxu0
        %v907 = vpop.f32.mrb[0].mxu0
        %v908 = vadd.f32 %v442, %v907
        %v909 = vpop.f32.mrb[0].mxu0
        %910 = vmatprep.mubr.bf16.mxu0 %v617
        %911 = vmatmul.mubr.bf16.gmra.mrb[0].mxu0 %v616
        %v912 = vpop.f32.mrb[0].mxu0
        %v913 = vadd.f32 %v442, %v912
        %v914 = vpop.f32.mrb[0].mxu0
        %v915 = vpop.f32.mrb[0].mxu0
        %v916 = vadd.f32 %v442, %v915
        %v917 = vpop.f32.mrb[0].mxu0
        %918 = vmatprep.mubr.bf16.mxu0 %v619
        %919 = vmatmul.mubr.bf16.gmra.mrb[0].mxu0 %v618
        %v920 = vpop.f32.mrb[0].mxu0
        %v921 = vadd.f32 %v442, %v920
        %v922 = vpop.f32.mrb[0].mxu0
        %v923 = vpop.f32.mrb[0].mxu0
        %v924 = vadd.f32 %v442, %v923
        %v925 = vpop.f32.mrb[0].mxu0
        %926 = vmatprep.mubr.bf16.mxu0 %v621
        %927 = vmatmul.mubr.bf16.gmra.mrb[0].mxu0 %v620
        %v928 = vpop.f32.mrb[0].mxu0
        %v929 = vadd.f32 %v442, %v928
        %v930 = vpop.f32.mrb[0].mxu0
        %v931 = vpop.f32.mrb[0].mxu0
        %v932 = vadd.f32 %v442, %v931
        %v933 = vpop.f32.mrb[0].mxu0
        %934 = vmatprep.mubr.bf16.mxu0 %v623
        %935 = vmatmul.mubr.bf16.gmra.mrb[0].mxu0 %v622
        %v936 = vpop.f32.mrb[0].mxu0
        %v937 = vadd.f32 %v442, %v936
        %v938 = vpop.f32.mrb[0].mxu0
        %v939 = vpop.f32.mrb[0].mxu0
        %v940 = vadd.f32 %v442, %v939
        %v941 = vpop.f32.mrb[0].mxu0
        %942 = vmatprep.mubr.bf16.mxu0 %v625
        %943 = vmatmul.mubr.bf16.gmra.mrb[0].mxu0 %v624
        %v944 = vpop.f32.mrb[0].mxu0
        %v945 = vadd.f32 %v442, %v944
        %v946 = vpop.f32.mrb[0].mxu0
        %v947 = vpop.f32.mrb[0].mxu0
        %v948 = vadd.f32 %v442, %v947
        %v949 = vpop.f32.mrb[0].mxu0
        %950 = vmatprep.mubr.bf16.mxu0 %v627
        %951 = vmatmul.mubr.bf16.gmra.mrb[0].mxu0 %v626
        %v952 = vpop.f32.mrb[0].mxu0
        %v953 = vadd.f32 %v442, %v952
        %v954 = vpop.f32.mrb[0].mxu0
        %v955 = vpop.f32.mrb[0].mxu0
        %v956 = vadd.f32 %v442, %v955
        %v957 = vpop.f32.mrb[0].mxu0
        %958 = vmatprep.mubr.bf16.mxu0 %v629
        %959 = vmatmul.mubr.bf16.gmra.mrb[0].mxu0 %v628
        %v960 = vpop.f32.mrb[0].mxu0
        %v961 = vadd.f32 %v442, %v960
        %v962 = vpop.f32.mrb[0].mxu0
        %v963 = vpop.f32.mrb[0].mxu0
        %v964 = vadd.f32 %v442, %v963
        %v965 = vpop.f32.mrb[0].mxu0
        %966 = vmatprep.mubr.bf16.mxu0 %v631
        %967 = vmatmul.mubr.bf16.gmra.mrb[0].mxu0 %v630
        %v968 = vpop.f32.mrb[0].mxu0
        %v969 = vadd.f32 %v442, %v968
        %v970 = vpop.f32.mrb[0].mxu0
        %v971 = vpop.f32.mrb[0].mxu0
        %v972 = vadd.f32 %v442, %v971
        %v973 = vpop.f32.mrb[0].mxu0
        %974 = vmatprep.mubr.bf16.mxu0 %v633
        %975 = vmatmul.mubr.bf16.gmra.mrb[0].mxu0 %v632
        %v976 = vpop.f32.mrb[0].mxu0
        %v977 = vadd.f32 %v442, %v976
        %v978 = vpop.f32.mrb[0].mxu0
        %v979 = vpop.f32.mrb[0].mxu0
        %v980 = vadd.f32 %v442, %v979
        %v981 = vpop.f32.mrb[0].mxu0
        %982 = vmatprep.mubr.bf16.mxu0 %v635
        %983 = vmatmul.mubr.bf16.gmra.mrb[0].mxu0 %v634
        %v984 = vpop.f32.mrb[0].mxu0
        %v985 = vadd.f32 %v442, %v984
        %v986 = vpop.f32.mrb[0].mxu0
        %v987 = vpop.f32.mrb[0].mxu0
        %v988 = vadd.f32 %v442, %v987
        %v989 = vpop.f32.mrb[0].mxu0
        %990 = vmatprep.mubr.bf16.mxu0 %v637
        %991 = vmatmul.mubr.bf16.gmra.mrb[0].mxu0 %v636
        %v992 = vpop.f32.mrb[0].mxu0
        %v993 = vadd.f32 %v442, %v992
        %v994 = vpop.f32.mrb[0].mxu0
        %v995 = vpop.f32.mrb[0].mxu0
        %v996 = vadd.f32 %v442, %v995
        %v997 = vpop.f32.mrb[0].mxu0
        %998 = vmatprep.mubr.bf16.mxu0 %v639
        %999 = vmatmul.mubr.bf16.gmra.mrb[0].mxu0 %v638
        %v1000 = vpop.f32.mrb[0].mxu0
        %v1001 = vadd.f32 %v442, %v1000
        %v1002 = vpop.f32.mrb[0].mxu0
        %v1003 = vpop.f32.mrb[0].mxu0
        %v1004 = vadd.f32 %v442, %v1003
        %v1005 = vpop.f32.mrb[0].mxu0
        %1006 = vmatprep.mubr.bf16.mxu0 %v641
        %1007 = vmatmul.mubr.bf16.gmra.mrb[0].mxu0 %v640
        %v1008 = vpop.f32.mrb[0].mxu0
        %v1009 = vadd.f32 %v442, %v1008
        %v1010 = vpop.f32.mrb[0].mxu0
        %v1011 = vpop.f32.mrb[0].mxu0
        %v1012 = vadd.f32 %v442, %v1011
        %v1013 = vpop.f32.mrb[0].mxu0
        %1014 = vmatprep.mubr.bf16.mxu0 %v643
        %1015 = vmatmul.mubr.bf16.gmra.mrb[0].mxu0 %v642
        %v1016 = vpop.f32.mrb[0].mxu0
        %v1017 = vadd.f32 %v442, %v1016
        %v1018 = vpop.f32.mrb[0].mxu0
        %v1019 = vpop.f32.mrb[0].mxu0
        %v1020 = vadd.f32 %v442, %v1019
        %v1021 = vpop.f32.mrb[0].mxu0
        %1022 = vdwg.mxu0
        %v1023 = vmax.f32 %v825, 0.0
        %v1024 = vmax.f32 %v828, 0.0
        %v1025 = vmax.f32 %v833, 0.0
        %v1026 = vmax.f32 %v836, 0.0
        %v1027 = vmax.f32 %v841, 0.0
        %v1028 = vmax.f32 %v844, 0.0
        %v1029 = vmax.f32 %v849, 0.0
        %v1030 = vmax.f32 %v852, 0.0
        %v1031 = vmax.f32 %v857, 0.0
        %v1032 = vmax.f32 %v860, 0.0
        %v1033 = vmax.f32 %v865, 0.0
        %v1034 = vmax.f32 %v868, 0.0
        %v1035 = vmax.f32 %v873, 0.0
        %v1036 = vmax.f32 %v876, 0.0
        %v1037 = vmax.f32 %v881, 0.0
        %v1038 = vmax.f32 %v884, 0.0
        %v1039 = vmax.f32 %v889, 0.0
        %v1040 = vmax.f32 %v892, 0.0
        %v1041 = vmax.f32 %v897, 0.0
        %v1042 = vmax.f32 %v900, 0.0
        %v1043 = vmax.f32 %v905, 0.0
        %v1044 = vmax.f32 %v908, 0.0
        %v1045 = vmax.f32 %v913, 0.0
        %v1046 = vmax.f32 %v916, 0.0
        %v1047 = vmax.f32 %v921, 0.0
        %v1048 = vmax.f32 %v924, 0.0
        %v1049 = vmax.f32 %v929, 0.0
        %v1050 = vmax.f32 %v932, 0.0
        %v1051 = vmax.f32 %v937, 0.0
        %v1052 = vmax.f32 %v940, 0.0
        %v1053 = vmax.f32 %v945, 0.0
        %v1054 = vmax.f32 %v948, 0.0
        %v1055 = vmax.f32 %v953, 0.0
        %v1056 = vmax.f32 %v956, 0.0
        %v1057 = vmax.f32 %v961, 0.0
        %v1058 = vmax.f32 %v964, 0.0
        %v1059 = vmax.f32 %v969, 0.0
        %v1060 = vmax.f32 %v972, 0.0
        %v1061 = vmax.f32 %v977, 0.0
        %v1062 = vmax.f32 %v980, 0.0
        %v1063 = vmax.f32 %v985, 0.0
        %v1064 = vmax.f32 %v988, 0.0
        %v1065 = vmax.f32 %v993, 0.0
        %v1066 = vmax.f32 %v996, 0.0
        %v1067 = vmax.f32 %v1001, 0.0
        %v1068 = vmax.f32 %v1004, 0.0
        %v1069 = vmax.f32 %v1009, 0.0
        %v1070 = vmax.f32 %v1012, 0.0
        %v1071 = vmax.f32 %v1017, 0.0
        %v1072 = vmax.f32 %v1020, 0.0
        %vm1073 = vcmask 130048
        %1074 = vst.msk [vmem:[#allocation2] sm:$0xff] %vm1073, %v1023
        %1075 = vst.msk [vmem:[#allocation2 + $0x8] sm:$0xff] %vm1073, %v1024
        %1076 = vst.msk [vmem:[#allocation2 + $0x10] sm:$0xff] %vm1073, %v1025
        %1077 = vst.msk [vmem:[#allocation2 + $0x18] sm:$0xff] %vm1073, %v1026
        %1078 = vst.msk [vmem:[#allocation2 + $0x20] sm:$0xff] %vm1073, %v1027
        %1079 = vst.msk [vmem:[#allocation2 + $0x28] sm:$0xff] %vm1073, %v1028
        %1080 = vst.msk [vmem:[#allocation2 + $0x30] sm:$0xff] %vm1073, %v1029
        %1081 = vst.msk [vmem:[#allocation2 + $0x38] sm:$0xff] %vm1073, %v1030
        %1082 = vst.msk [vmem:[#allocation2 + $0x40] sm:$0xff] %vm1073, %v1031
        %1083 = vst.msk [vmem:[#allocation2 + $0x48] sm:$0xff] %vm1073, %v1032
        %1084 = vst.msk [vmem:[#allocation2 + $0x50] sm:$0xff] %vm1073, %v1033
        %1085 = vst.msk [vmem:[#allocation2 + $0x58] sm:$0xff] %vm1073, %v1034
        %1086 = vst.msk [vmem:[#allocation2 + $0x60] sm:$0xff] %vm1073, %v1035
        %1087 = vst.msk [vmem:[#allocation2 + $0x68] sm:$0xff] %vm1073, %v1036
        %1088 = vst.msk [vmem:[#allocation2 + $0x70] sm:$0xff] %vm1073, %v1037
        %1089 = vst.msk [vmem:[#allocation2 + $0x78] sm:$0xff] %vm1073, %v1038
        %1090 = vst.msk [vmem:[#allocation2 + $0x80] sm:$0xff] %vm1073, %v1039
        %1091 = vst.msk [vmem:[#allocation2 + $0x88] sm:$0xff] %vm1073, %v1040
        %1092 = vst.msk [vmem:[#allocation2 + $0x90] sm:$0xff] %vm1073, %v1041
        %1093 = vst.msk [vmem:[#allocation2 + $0x98] sm:$0xff] %vm1073, %v1042
        %1094 = vst.msk [vmem:[#allocation2 + $0xa0] sm:$0xff] %vm1073, %v1043
        %1095 = vst.msk [vmem:[#allocation2 + $0xa8] sm:$0xff] %vm1073, %v1044
        %1096 = vst.msk [vmem:[#allocation2 + $0xb0] sm:$0xff] %vm1073, %v1045
        %1097 = vst.msk [vmem:[#allocation2 + $0xb8] sm:$0xff] %vm1073, %v1046
        %1098 = vst.msk [vmem:[#allocation2 + $0xc0] sm:$0xff] %vm1073, %v1047
        %1099 = vst.msk [vmem:[#allocation2 + $0xc8] sm:$0xff] %vm1073, %v1048
        %1100 = vst.msk [vmem:[#allocation2 + $0xd0] sm:$0xff] %vm1073, %v1049
        %1101 = vst.msk [vmem:[#allocation2 + $0xd8] sm:$0xff] %vm1073, %v1050
        %1102 = vst.msk [vmem:[#allocation2 + $0xe0] sm:$0xff] %vm1073, %v1051
        %1103 = vst.msk [vmem:[#allocation2 + $0xe8] sm:$0xff] %vm1073, %v1052
        %1104 = vst.msk [vmem:[#allocation2 + $0xf0] sm:$0xff] %vm1073, %v1053
        %1105 = vst.msk [vmem:[#allocation2 + $0xf8] sm:$0xff] %vm1073, %v1054
        %1106 = vst.msk [vmem:[#allocation2 + $0x100] sm:$0xff] %vm1073, %v1055
        %1107 = vst.msk [vmem:[#allocation2 + $0x108] sm:$0xff] %vm1073, %v1056
        %1108 = vst.msk [vmem:[#allocation2 + $0x110] sm:$0xff] %vm1073, %v1057
        %1109 = vst.msk [vmem:[#allocation2 + $0x118] sm:$0xff] %vm1073, %v1058
        %1110 = vst.msk [vmem:[#allocation2 + $0x120] sm:$0xff] %vm1073, %v1059
        %1111 = vst.msk [vmem:[#allocation2 + $0x128] sm:$0xff] %vm1073, %v1060
        %1112 = vst.msk [vmem:[#allocation2 + $0x130] sm:$0xff] %vm1073, %v1061
        %1113 = vst.msk [vmem:[#allocation2 + $0x138] sm:$0xff] %vm1073, %v1062
        %1114 = vst.msk [vmem:[#allocation2 + $0x140] sm:$0xff] %vm1073, %v1063
        %1115 = vst.msk [vmem:[#allocation2 + $0x148] sm:$0xff] %vm1073, %v1064
        %1116 = vst.msk [vmem:[#allocation2 + $0x150] sm:$0xff] %vm1073, %v1065
        %1117 = vst.msk [vmem:[#allocation2 + $0x158] sm:$0xff] %vm1073, %v1066
        %1118 = vst.msk [vmem:[#allocation2 + $0x160] sm:$0xff] %vm1073, %v1067
        %1119 = vst.msk [vmem:[#allocation2 + $0x168] sm:$0xff] %vm1073, %v1068
        %1120 = vst.msk [vmem:[#allocation2 + $0x170] sm:$0xff] %vm1073, %v1069
        %1121 = vst.msk [vmem:[#allocation2 + $0x178] sm:$0xff] %vm1073, %v1070
        %1122 = vst.msk [vmem:[#allocation2 + $0x180] sm:$0xff] %vm1073, %v1071
        %1123 = vst.msk [vmem:[#allocation2 + $0x188] sm:$0xff] %vm1073, %v1072
        %1124 = vst.msk [vmem:[#allocation2 + $0x190] sm:$0xff] %vm1073, 0.0
        %v1125 = vld [vmem:[#allocation2] sm:$0xff]
        %v1126 = vld [vmem:[#allocation2 + $0x8] sm:$0xff]
        %v1127 = vld [vmem:[#allocation2 + $0x10] sm:$0xff]
        %v1128 = vld [vmem:[#allocation2 + $0x18] sm:$0xff]
        %v1129 = vld [vmem:[#allocation2 + $0x20] sm:$0xff]
        %v1130 = vld [vmem:[#allocation2 + $0x28] sm:$0xff]
        %v1131 = vld [vmem:[#allocation2 + $0x30] sm:$0xff]
        %v1132 = vld [vmem:[#allocation2 + $0x38] sm:$0xff]
        %v1133 = vld [vmem:[#allocation2 + $0x40] sm:$0xff]
        %v1134 = vld [vmem:[#allocation2 + $0x48] sm:$0xff]
        %v1135 = vld [vmem:[#allocation2 + $0x50] sm:$0xff]
        %v1136 = vld [vmem:[#allocation2 + $0x58] sm:$0x3]
        %v1137 = vld [vmem:[#allocation2 + $0x64] sm:$0xff]
        %v1138 = vld [vmem:[#allocation2 + $0x6c] sm:$0xff]
        %v1139 = vld [vmem:[#allocation2 + $0x74] sm:$0xff]
        %v1140 = vld [vmem:[#allocation2 + $0x7c] sm:$0xff]
        %v1141 = vld [vmem:[#allocation2 + $0x84] sm:$0xff]
        %v1142 = vld [vmem:[#allocation2 + $0x8c] sm:$0xff]
        %v1143 = vld [vmem:[#allocation2 + $0x94] sm:$0xff]
        %v1144 = vld [vmem:[#allocation2 + $0x9c] sm:$0xff]
        %v1145 = vld [vmem:[#allocation2 + $0xa4] sm:$0xff]
        %v1146 = vld [vmem:[#allocation2 + $0xac] sm:$0xff]
        %v1147 = vld [vmem:[#allocation2 + $0xb4] sm:$0xff]
        %v1148 = vld [vmem:[#allocation2 + $0xbc] sm:$0x3]
        %v1149 = vld [vmem:[#allocation2 + $0x1] sm:$0xff]
        %v1150 = vld [vmem:[#allocation2 + $0x9] sm:$0xff]
        %v1151 = vld [vmem:[#allocation2 + $0x11] sm:$0xff]
        %v1152 = vld [vmem:[#allocation2 + $0x19] sm:$0xff]
        %v1153 = vld [vmem:[#allocation2 + $0x21] sm:$0xff]
        %v1154 = vld [vmem:[#allocation2 + $0x29] sm:$0xff]
        %v1155 = vld [vmem:[#allocation2 + $0x31] sm:$0xff]
        %v1156 = vld [vmem:[#allocation2 + $0x39] sm:$0xff]
        %v1157 = vld [vmem:[#allocation2 + $0x41] sm:$0xff]
        %v1158 = vld [vmem:[#allocation2 + $0x49] sm:$0xff]
        %v1159 = vld [vmem:[#allocation2 + $0x51] sm:$0xff]
        %v1160 = vld [vmem:[#allocation2 + $0x59] sm:$0x3]
        %v1161 = vld [vmem:[#allocation2 + $0x65] sm:$0xff]
        %v1162 = vld [vmem:[#allocation2 + $0x6d] sm:$0xff]
        %v1163 = vld [vmem:[#allocation2 + $0x75] sm:$0xff]
        %v1164 = vld [vmem:[#allocation2 + $0x7d] sm:$0xff]
        %v1165 = vld [vmem:[#allocation2 + $0x85] sm:$0xff]
        %v1166 = vld [vmem:[#allocation2 + $0x8d] sm:$0xff]
        %v1167 = vld [vmem:[#allocation2 + $0x95] sm:$0xff]
        %v1168 = vld [vmem:[#allocation2 + $0x9d] sm:$0xff]
        %v1169 = vld [vmem:[#allocation2 + $0xa5] sm:$0xff]
        %v1170 = vld [vmem:[#allocation2 + $0xad] sm:$0xff]
        %v1171 = vld [vmem:[#allocation2 + $0xb5] sm:$0xff]
        %v1172 = vld [vmem:[#allocation2 + $0xbd] sm:$0x3]
        %v1173 = vld [vmem:[#allocation2 + $0xc8] sm:$0xff]
        %v1174 = vld [vmem:[#allocation2 + $0xd0] sm:$0xff]
        %v1175 = vld [vmem:[#allocation2 + $0xd8] sm:$0xff]
        %v1176 = vld [vmem:[#allocation2 + $0xe0] sm:$0xff]
        %v1177 = vld [vmem:[#allocation2 + $0xe8] sm:$0xff]
        %v1178 = vld [vmem:[#allocation2 + $0xf0] sm:$0xff]
        %v1179 = vld [vmem:[#allocation2 + $0xf8] sm:$0xff]
        %v1180 = vld [vmem:[#allocation2 + $0x100] sm:$0xff]
        %v1181 = vld [vmem:[#allocation2 + $0x108] sm:$0xff]
        %v1182 = vld [vmem:[#allocation2 + $0x110] sm:$0xff]
        %v1183 = vld [vmem:[#allocation2 + $0x118] sm:$0xff]
        %v1184 = vld [vmem:[#allocation2 + $0x120] sm:$0x3]
        %v1185 = vld [vmem:[#allocation2 + $0x12c] sm:$0xff]
        %v1186 = vld [vmem:[#allocation2 + $0x134] sm:$0xff]
        %v1187 = vld [vmem:[#allocation2 + $0x13c] sm:$0xff]
        %v1188 = vld [vmem:[#allocation2 + $0x144] sm:$0xff]
        %v1189 = vld [vmem:[#allocation2 + $0x14c] sm:$0xff]
        %v1190 = vld [vmem:[#allocation2 + $0x154] sm:$0xff]
        %v1191 = vld [vmem:[#allocation2 + $0x15c] sm:$0xff]
        %v1192 = vld [vmem:[#allocation2 + $0x164] sm:$0xff]
        %v1193 = vld [vmem:[#allocation2 + $0x16c] sm:$0xff]
        %v1194 = vld [vmem:[#allocation2 + $0x174] sm:$0xff]
        %v1195 = vld [vmem:[#allocation2 + $0x17c] sm:$0xff]
        %v1196 = vld [vmem:[#allocation2 + $0x184] sm:$0x3]
        %v1197 = vld [vmem:[#allocation2 + $0xc9] sm:$0xff]
        %v1198 = vld [vmem:[#allocation2 + $0xd1] sm:$0xff]
        %v1199 = vld [vmem:[#allocation2 + $0xd9] sm:$0xff]
        %v1200 = vld [vmem:[#allocation2 + $0xe1] sm:$0xff]
        %v1201 = vld [vmem:[#allocation2 + $0xe9] sm:$0xff]
        %v1202 = vld [vmem:[#allocation2 + $0xf1] sm:$0xff]
        %v1203 = vld [vmem:[#allocation2 + $0xf9] sm:$0xff]
        %v1204 = vld [vmem:[#allocation2 + $0x101] sm:$0xff]
        %v1205 = vld [vmem:[#allocation2 + $0x109] sm:$0xff]
        %v1206 = vld [vmem:[#allocation2 + $0x111] sm:$0xff]
        %v1207 = vld [vmem:[#allocation2 + $0x119] sm:$0xff]
        %v1208 = vld [vmem:[#allocation2 + $0x121] sm:$0x3]
        %v1209 = vld [vmem:[#allocation2 + $0x12d] sm:$0xff]
        %v1210 = vld [vmem:[#allocation2 + $0x135] sm:$0xff]
        %v1211 = vld [vmem:[#allocation2 + $0x13d] sm:$0xff]
        %v1212 = vld [vmem:[#allocation2 + $0x145] sm:$0xff]
        %v1213 = vld [vmem:[#allocation2 + $0x14d] sm:$0xff]
        %v1214 = vld [vmem:[#allocation2 + $0x155] sm:$0xff]
        %v1215 = vld [vmem:[#allocation2 + $0x15d] sm:$0xff]
        %v1216 = vld [vmem:[#allocation2 + $0x165] sm:$0xff]
        %v1217 = vld [vmem:[#allocation2 + $0x16d] sm:$0xff]
        %v1218 = vld [vmem:[#allocation2 + $0x175] sm:$0xff]
        %v1219 = vld [vmem:[#allocation2 + $0x17d] sm:$0xff]
        %v1220 = vld [vmem:[#allocation2 + $0x185] sm:$0x3]
        %v1221 = vld [vmem:[#allocation2 + $0xa] sm:$0xff]
        %v1222 = vld [vmem:[#allocation2 + $0x12] sm:$0xff]
        %v1223 = vld [vmem:[#allocation2 + $0x1a] sm:$0xff]
        %v1224 = vld [vmem:[#allocation2 + $0x22] sm:$0xff]
        %v1225 = vld [vmem:[#allocation2 + $0x2a] sm:$0xff]
        %v1226 = vld [vmem:[#allocation2 + $0x32] sm:$0xff]
        %v1227 = vld [vmem:[#allocation2 + $0x3a] sm:$0xff]
        %v1228 = vld [vmem:[#allocation2 + $0x42] sm:$0xff]
        %v1229 = vld [vmem:[#allocation2 + $0x4a] sm:$0xff]
        %v1230 = vld [vmem:[#allocation2 + $0x52] sm:$0xff]
        %v1231 = vld [vmem:[#allocation2 + $0x5a] sm:$0xff]
        %v1232 = vld [vmem:[#allocation2 + $0x62] sm:$0x3]
        %v1233 = vld [vmem:[#allocation2 + $0x6e] sm:$0xff]
        %v1234 = vld [vmem:[#allocation2 + $0x76] sm:$0xff]
        %v1235 = vld [vmem:[#allocation2 + $0x7e] sm:$0xff]
        %v1236 = vld [vmem:[#allocation2 + $0x86] sm:$0xff]
        %v1237 = vld [vmem:[#allocation2 + $0x8e] sm:$0xff]
        %v1238 = vld [vmem:[#allocation2 + $0x96] sm:$0xff]
        %v1239 = vld [vmem:[#allocation2 + $0x9e] sm:$0xff]
        %v1240 = vld [vmem:[#allocation2 + $0xa6] sm:$0xff]
        %v1241 = vld [vmem:[#allocation2 + $0xae] sm:$0xff]
        %v1242 = vld [vmem:[#allocation2 + $0xb6] sm:$0xff]
        %v1243 = vld [vmem:[#allocation2 + $0xbe] sm:$0xff]
        %v1244 = vld [vmem:[#allocation2 + $0xc6] sm:$0x3]
        %v1245 = vld [vmem:[#allocation2 + $0xb] sm:$0xff]
        %v1246 = vld [vmem:[#allocation2 + $0x13] sm:$0xff]
        %v1247 = vld [vmem:[#allocation2 + $0x1b] sm:$0xff]
        %v1248 = vld [vmem:[#allocation2 + $0x23] sm:$0xff]
        %v1249 = vld [vmem:[#allocation2 + $0x2b] sm:$0xff]
        %v1250 = vld [vmem:[#allocation2 + $0x33] sm:$0xff]
        %v1251 = vld [vmem:[#allocation2 + $0x3b] sm:$0xff]
        %v1252 = vld [vmem:[#allocation2 + $0x43] sm:$0xff]
        %v1253 = vld [vmem:[#allocation2 + $0x4b] sm:$0xff]
        %v1254 = vld [vmem:[#allocation2 + $0x53] sm:$0xff]
        %v1255 = vld [vmem:[#allocation2 + $0x5b] sm:$0xff]
        %v1256 = vld [vmem:[#allocation2 + $0x63] sm:$0x3]
        %v1257 = vld [vmem:[#allocation2 + $0x6f] sm:$0xff]
        %v1258 = vld [vmem:[#allocation2 + $0x77] sm:$0xff]
        %v1259 = vld [vmem:[#allocation2 + $0x7f] sm:$0xff]
        %v1260 = vld [vmem:[#allocation2 + $0x87] sm:$0xff]
        %v1261 = vld [vmem:[#allocation2 + $0x8f] sm:$0xff]
        %v1262 = vld [vmem:[#allocation2 + $0x97] sm:$0xff]
        %v1263 = vld [vmem:[#allocation2 + $0x9f] sm:$0xff]
        %v1264 = vld [vmem:[#allocation2 + $0xa7] sm:$0xff]
        %v1265 = vld [vmem:[#allocation2 + $0xaf] sm:$0xff]
        %v1266 = vld [vmem:[#allocation2 + $0xb7] sm:$0xff]
        %v1267 = vld [vmem:[#allocation2 + $0xbf] sm:$0xff]
        %v1268 = vld [vmem:[#allocation2 + $0xc7] sm:$0x3]
        %v1269 = vld [vmem:[#allocation2 + $0xd2] sm:$0xff]
        %v1270 = vld [vmem:[#allocation2 + $0xda] sm:$0xff]
        %v1271 = vld [vmem:[#allocation2 + $0xe2] sm:$0xff]
        %v1272 = vld [vmem:[#allocation2 + $0xea] sm:$0xff]
        %v1273 = vld [vmem:[#allocation2 + $0xf2] sm:$0xff]
        %v1274 = vld [vmem:[#allocation2 + $0xfa] sm:$0xff]
        %v1275 = vld [vmem:[#allocation2 + $0x102] sm:$0xff]
        %v1276 = vld [vmem:[#allocation2 + $0x10a] sm:$0xff]
        %v1277 = vld [vmem:[#allocation2 + $0x112] sm:$0xff]
        %v1278 = vld [vmem:[#allocation2 + $0x11a] sm:$0xff]
        %v1279 = vld [vmem:[#allocation2 + $0x122] sm:$0xff]
        %v1280 = vld [vmem:[#allocation2 + $0x12a] sm:$0x3]
        %v1281 = vld [vmem:[#allocation2 + $0x136] sm:$0xff]
        %v1282 = vld [vmem:[#allocation2 + $0x13e] sm:$0xff]
        %v1283 = vld [vmem:[#allocation2 + $0x146] sm:$0xff]
        %v1284 = vld [vmem:[#allocation2 + $0x14e] sm:$0xff]
        %v1285 = vld [vmem:[#allocation2 + $0x156] sm:$0xff]
        %v1286 = vld [vmem:[#allocation2 + $0x15e] sm:$0xff]
        %v1287 = vld [vmem:[#allocation2 + $0x166] sm:$0xff]
        %v1288 = vld [vmem:[#allocation2 + $0x16e] sm:$0xff]
        %v1289 = vld [vmem:[#allocation2 + $0x176] sm:$0xff]
        %v1290 = vld [vmem:[#allocation2 + $0x17e] sm:$0xff]
        %v1291 = vld [vmem:[#allocation2 + $0x186] sm:$0xff]
        %v1292 = vld [vmem:[#allocation2 + $0x18e] sm:$0x3]
        %v1293 = vld [vmem:[#allocation2 + $0xd3] sm:$0xff]
        %v1294 = vld [vmem:[#allocation2 + $0xdb] sm:$0xff]
        %v1295 = vld [vmem:[#allocation2 + $0xe3] sm:$0xff]
        %v1296 = vld [vmem:[#allocation2 + $0xeb] sm:$0xff]
        %v1297 = vld [vmem:[#allocation2 + $0xf3] sm:$0xff]
        %v1298 = vld [vmem:[#allocation2 + $0xfb] sm:$0xff]
        %v1299 = vld [vmem:[#allocation2 + $0x103] sm:$0xff]
        %v1300 = vld [vmem:[#allocation2 + $0x10b] sm:$0xff]
        %v1301 = vld [vmem:[#allocation2 + $0x113] sm:$0xff]
        %v1302 = vld [vmem:[#allocation2 + $0x11b] sm:$0xff]
        %v1303 = vld [vmem:[#allocation2 + $0x123] sm:$0xff]
        %v1304 = vld [vmem:[#allocation2 + $0x12b] sm:$0x3]
        %v1305 = vld [vmem:[#allocation2 + $0x137] sm:$0xff]
        %v1306 = vld [vmem:[#allocation2 + $0x13f] sm:$0xff]
        %v1307 = vld [vmem:[#allocation2 + $0x147] sm:$0xff]
        %v1308 = vld [vmem:[#allocation2 + $0x14f] sm:$0xff]
        %v1309 = vld [vmem:[#allocation2 + $0x157] sm:$0xff]
        %v1310 = vld [vmem:[#allocation2 + $0x15f] sm:$0xff]
        %v1311 = vld [vmem:[#allocation2 + $0x167] sm:$0xff]
        %v1312 = vld [vmem:[#allocation2 + $0x16f] sm:$0xff]
        %v1313 = vld [vmem:[#allocation2 + $0x177] sm:$0xff]
        %v1314 = vld [vmem:[#allocation2 + $0x17f] sm:$0xff]
        %v1315 = vld [vmem:[#allocation2 + $0x187] sm:$0xff]
        %v1316 = vld [vmem:[#allocation2 + $0x18f] sm:$0x3]
        %1329 = vrot.lane.b32.xlu0 %v1137, 16
        %v1330 = vpop.permute.xlu0 %1329
        %1331 = vrot.lane.b32.xlu0 %v1138, 16
        %v1332 = vpop.permute.xlu0 %1331
        %1333 = vrot.lane.b32.xlu0 %v1139, 16
        %v1334 = vpop.permute.xlu0 %1333
        %1335 = vrot.lane.b32.xlu0 %v1140, 16
        %v1336 = vpop.permute.xlu0 %1335
        %1337 = vrot.lane.b32.xlu0 %v1141, 16
        %v1338 = vpop.permute.xlu0 %1337
        %1339 = vrot.lane.b32.xlu0 %v1142, 16
        %v1340 = vpop.permute.xlu0 %1339
        %1341 = vrot.lane.b32.xlu0 %v1143, 16
        %v1342 = vpop.permute.xlu0 %1341
        %1343 = vrot.lane.b32.xlu0 %v1144, 16
        %v1344 = vpop.permute.xlu0 %1343
        %1345 = vrot.lane.b32.xlu0 %v1145, 16
        %v1346 = vpop.permute.xlu0 %1345
        %1347 = vrot.lane.b32.xlu0 %v1146, 16
        %v1348 = vpop.permute.xlu0 %1347
        %1349 = vrot.lane.b32.xlu0 %v1147, 16
        %v1350 = vpop.permute.xlu0 %1349
        %1351 = vrot.lane.b32.xlu0 %v1148, 16
        %v1352 = vpop.permute.xlu0 %1351
        %1377 = vrot.lane.b32.xlu0 %v1149, 32
        %v1378 = vpop.permute.xlu0 %1377
        %1379 = vrot.lane.b32.xlu0 %v1150, 32
        %v1380 = vpop.permute.xlu0 %1379
        %1381 = vrot.lane.b32.xlu0 %v1151, 32
        %v1382 = vpop.permute.xlu0 %1381
        %1383 = vrot.lane.b32.xlu0 %v1152, 32
        %v1384 = vpop.permute.xlu0 %1383
        %1385 = vrot.lane.b32.xlu0 %v1153, 32
        %v1386 = vpop.permute.xlu0 %1385
        %1387 = vrot.lane.b32.xlu0 %v1154, 32
        %v1388 = vpop.permute.xlu0 %1387
        %1389 = vrot.lane.b32.xlu0 %v1155, 32
        %v1390 = vpop.permute.xlu0 %1389
        %1391 = vrot.lane.b32.xlu0 %v1156, 32
        %v1392 = vpop.permute.xlu0 %1391
        %1393 = vrot.lane.b32.xlu0 %v1157, 32
        %v1394 = vpop.permute.xlu0 %1393
        %1395 = vrot.lane.b32.xlu0 %v1158, 32
        %v1396 = vpop.permute.xlu0 %1395
        %1397 = vrot.lane.b32.xlu0 %v1159, 32
        %v1398 = vpop.permute.xlu0 %1397
        %1399 = vrot.lane.b32.xlu0 %v1160, 32
        %v1400 = vpop.permute.xlu0 %1399
        %1425 = vrot.lane.b32.xlu0 %v1161, 48
        %v1426 = vpop.permute.xlu0 %1425
        %1427 = vrot.lane.b32.xlu0 %v1162, 48
        %v1428 = vpop.permute.xlu0 %1427
        %1429 = vrot.lane.b32.xlu0 %v1163, 48
        %v1430 = vpop.permute.xlu0 %1429
        %1431 = vrot.lane.b32.xlu0 %v1164, 48
        %v1432 = vpop.permute.xlu0 %1431
        %1433 = vrot.lane.b32.xlu0 %v1165, 48
        %v1434 = vpop.permute.xlu0 %1433
        %1435 = vrot.lane.b32.xlu0 %v1166, 48
        %v1436 = vpop.permute.xlu0 %1435
        %1437 = vrot.lane.b32.xlu0 %v1167, 48
        %v1438 = vpop.permute.xlu0 %1437
        %1439 = vrot.lane.b32.xlu0 %v1168, 48
        %v1440 = vpop.permute.xlu0 %1439
        %1441 = vrot.lane.b32.xlu0 %v1169, 48
        %v1442 = vpop.permute.xlu0 %1441
        %1443 = vrot.lane.b32.xlu0 %v1170, 48
        %v1444 = vpop.permute.xlu0 %1443
        %1445 = vrot.lane.b32.xlu0 %v1171, 48
        %v1446 = vpop.permute.xlu0 %1445
        %1447 = vrot.lane.b32.xlu0 %v1172, 48
        %v1448 = vpop.permute.xlu0 %1447
        %1473 = vrot.lane.b32.xlu0 %v1173, 64
        %v1474 = vpop.permute.xlu0 %1473
        %1475 = vrot.lane.b32.xlu0 %v1174, 64
        %v1476 = vpop.permute.xlu0 %1475
        %1477 = vrot.lane.b32.xlu0 %v1175, 64
        %v1478 = vpop.permute.xlu0 %1477
        %1479 = vrot.lane.b32.xlu0 %v1176, 64
        %v1480 = vpop.permute.xlu0 %1479
        %1481 = vrot.lane.b32.xlu0 %v1177, 64
        %v1482 = vpop.permute.xlu0 %1481
        %1483 = vrot.lane.b32.xlu0 %v1178, 64
        %v1484 = vpop.permute.xlu0 %1483
        %1485 = vrot.lane.b32.xlu0 %v1179, 64
        %v1486 = vpop.permute.xlu0 %1485
        %1487 = vrot.lane.b32.xlu0 %v1180, 64
        %v1488 = vpop.permute.xlu0 %1487
        %1489 = vrot.lane.b32.xlu0 %v1181, 64
        %v1490 = vpop.permute.xlu0 %1489
        %1491 = vrot.lane.b32.xlu0 %v1182, 64
        %v1492 = vpop.permute.xlu0 %1491
        %1493 = vrot.lane.b32.xlu0 %v1183, 64
        %v1494 = vpop.permute.xlu0 %1493
        %1495 = vrot.lane.b32.xlu0 %v1184, 64
        %v1496 = vpop.permute.xlu0 %1495
        %1521 = vrot.lane.b32.xlu0 %v1185, 80
        %v1522 = vpop.permute.xlu0 %1521
        %1523 = vrot.lane.b32.xlu0 %v1186, 80
        %v1524 = vpop.permute.xlu0 %1523
        %1525 = vrot.lane.b32.xlu0 %v1187, 80
        %v1526 = vpop.permute.xlu0 %1525
        %1527 = vrot.lane.b32.xlu0 %v1188, 80
        %v1528 = vpop.permute.xlu0 %1527
        %1529 = vrot.lane.b32.xlu0 %v1189, 80
        %v1530 = vpop.permute.xlu0 %1529
        %1531 = vrot.lane.b32.xlu0 %v1190, 80
        %v1532 = vpop.permute.xlu0 %1531
        %1533 = vrot.lane.b32.xlu0 %v1191, 80
        %v1534 = vpop.permute.xlu0 %1533
        %1535 = vrot.lane.b32.xlu0 %v1192, 80
        %v1536 = vpop.permute.xlu0 %1535
        %1537 = vrot.lane.b32.xlu0 %v1193, 80
        %v1538 = vpop.permute.xlu0 %1537
        %1539 = vrot.lane.b32.xlu0 %v1194, 80
        %v1540 = vpop.permute.xlu0 %1539
        %1541 = vrot.lane.b32.xlu0 %v1195, 80
        %v1542 = vpop.permute.xlu0 %1541
        %1543 = vrot.lane.b32.xlu0 %v1196, 80
        %v1544 = vpop.permute.xlu0 %1543
        %1569 = vrot.lane.b32.xlu0 %v1197, 96
        %v1570 = vpop.permute.xlu0 %1569
        %1571 = vrot.lane.b32.xlu0 %v1198, 96
        %v1572 = vpop.permute.xlu0 %1571
        %1573 = vrot.lane.b32.xlu0 %v1199, 96
        %v1574 = vpop.permute.xlu0 %1573
        %1575 = vrot.lane.b32.xlu0 %v1200, 96
        %v1576 = vpop.permute.xlu0 %1575
        %1577 = vrot.lane.b32.xlu0 %v1201, 96
        %v1578 = vpop.permute.xlu0 %1577
        %1579 = vrot.lane.b32.xlu0 %v1202, 96
        %v1580 = vpop.permute.xlu0 %1579
        %1581 = vrot.lane.b32.xlu0 %v1203, 96
        %v1582 = vpop.permute.xlu0 %1581
        %1583 = vrot.lane.b32.xlu0 %v1204, 96
        %v1584 = vpop.permute.xlu0 %1583
        %1585 = vrot.lane.b32.xlu0 %v1205, 96
        %v1586 = vpop.permute.xlu0 %1585
        %1587 = vrot.lane.b32.xlu0 %v1206, 96
        %v1588 = vpop.permute.xlu0 %1587
        %1589 = vrot.lane.b32.xlu0 %v1207, 96
        %v1590 = vpop.permute.xlu0 %1589
        %1591 = vrot.lane.b32.xlu0 %v1208, 96
        %v1592 = vpop.permute.xlu0 %1591
        %1617 = vrot.lane.b32.xlu0 %v1209, 112
        %v1618 = vpop.permute.xlu0 %1617
        %1619 = vrot.lane.b32.xlu0 %v1210, 112
        %v1620 = vpop.permute.xlu0 %1619
        %1621 = vrot.lane.b32.xlu0 %v1211, 112
        %v1622 = vpop.permute.xlu0 %1621
        %1623 = vrot.lane.b32.xlu0 %v1212, 112
        %v1624 = vpop.permute.xlu0 %1623
        %1625 = vrot.lane.b32.xlu0 %v1213, 112
        %v1626 = vpop.permute.xlu0 %1625
        %1627 = vrot.lane.b32.xlu0 %v1214, 112
        %v1628 = vpop.permute.xlu0 %1627
        %1629 = vrot.lane.b32.xlu0 %v1215, 112
        %v1630 = vpop.permute.xlu0 %1629
        %1631 = vrot.lane.b32.xlu0 %v1216, 112
        %v1632 = vpop.permute.xlu0 %1631
        %1633 = vrot.lane.b32.xlu0 %v1217, 112
        %v1634 = vpop.permute.xlu0 %1633
        %1635 = vrot.lane.b32.xlu0 %v1218, 112
        %v1636 = vpop.permute.xlu0 %1635
        %1637 = vrot.lane.b32.xlu0 %v1219, 112
        %v1638 = vpop.permute.xlu0 %1637
        %1639 = vrot.lane.b32.xlu0 %v1220, 112
        %v1640 = vpop.permute.xlu0 %1639
        %1665 = vrot.lane.b32.xlu0 %v1233, 16
        %v1666 = vpop.permute.xlu0 %1665
        %1667 = vrot.lane.b32.xlu0 %v1234, 16
        %v1668 = vpop.permute.xlu0 %1667
        %1669 = vrot.lane.b32.xlu0 %v1235, 16
        %v1670 = vpop.permute.xlu0 %1669
        %1671 = vrot.lane.b32.xlu0 %v1236, 16
        %v1672 = vpop.permute.xlu0 %1671
        %1673 = vrot.lane.b32.xlu0 %v1237, 16
        %v1674 = vpop.permute.xlu0 %1673
        %1675 = vrot.lane.b32.xlu0 %v1238, 16
        %v1676 = vpop.permute.xlu0 %1675
        %1677 = vrot.lane.b32.xlu0 %v1239, 16
        %v1678 = vpop.permute.xlu0 %1677
        %1679 = vrot.lane.b32.xlu0 %v1240, 16
        %v1680 = vpop.permute.xlu0 %1679
        %1681 = vrot.lane.b32.xlu0 %v1241, 16
        %v1682 = vpop.permute.xlu0 %1681
        %1683 = vrot.lane.b32.xlu0 %v1242, 16
        %v1684 = vpop.permute.xlu0 %1683
        %1685 = vrot.lane.b32.xlu0 %v1243, 16
        %v1686 = vpop.permute.xlu0 %1685
        %1687 = vrot.lane.b32.xlu0 %v1244, 16
        %v1688 = vpop.permute.xlu0 %1687
        %1713 = vrot.lane.b32.xlu0 %v1245, 32
        %v1714 = vpop.permute.xlu0 %1713
        %1715 = vrot.lane.b32.xlu0 %v1246, 32
        %v1716 = vpop.permute.xlu0 %1715
        %1717 = vrot.lane.b32.xlu0 %v1247, 32
        %v1718 = vpop.permute.xlu0 %1717
        %1719 = vrot.lane.b32.xlu0 %v1248, 32
        %v1720 = vpop.permute.xlu0 %1719
        %1721 = vrot.lane.b32.xlu0 %v1249, 32
        %v1722 = vpop.permute.xlu0 %1721
        %1723 = vrot.lane.b32.xlu0 %v1250, 32
        %v1724 = vpop.permute.xlu0 %1723
        %1725 = vrot.lane.b32.xlu0 %v1251, 32
        %v1726 = vpop.permute.xlu0 %1725
        %1727 = vrot.lane.b32.xlu0 %v1252, 32
        %v1728 = vpop.permute.xlu0 %1727
        %1729 = vrot.lane.b32.xlu0 %v1253, 32
        %v1730 = vpop.permute.xlu0 %1729
        %1731 = vrot.lane.b32.xlu0 %v1254, 32
        %v1732 = vpop.permute.xlu0 %1731
        %1733 = vrot.lane.b32.xlu0 %v1255, 32
        %v1734 = vpop.permute.xlu0 %1733
        %1735 = vrot.lane.b32.xlu0 %v1256, 32
        %v1736 = vpop.permute.xlu0 %1735
        %1761 = vrot.lane.b32.xlu0 %v1257, 48
        %v1762 = vpop.permute.xlu0 %1761
        %1763 = vrot.lane.b32.xlu0 %v1258, 48
        %v1764 = vpop.permute.xlu0 %1763
        %1765 = vrot.lane.b32.xlu0 %v1259, 48
        %v1766 = vpop.permute.xlu0 %1765
        %1767 = vrot.lane.b32.xlu0 %v1260, 48
        %v1768 = vpop.permute.xlu0 %1767
        %1769 = vrot.lane.b32.xlu0 %v1261, 48
        %v1770 = vpop.permute.xlu0 %1769
        %1771 = vrot.lane.b32.xlu0 %v1262, 48
        %v1772 = vpop.permute.xlu0 %1771
        %1773 = vrot.lane.b32.xlu0 %v1263, 48
        %v1774 = vpop.permute.xlu0 %1773
        %1775 = vrot.lane.b32.xlu0 %v1264, 48
        %v1776 = vpop.permute.xlu0 %1775
        %1777 = vrot.lane.b32.xlu0 %v1265, 48
        %v1778 = vpop.permute.xlu0 %1777
        %1779 = vrot.lane.b32.xlu0 %v1266, 48
        %v1780 = vpop.permute.xlu0 %1779
        %1781 = vrot.lane.b32.xlu0 %v1267, 48
        %v1782 = vpop.permute.xlu0 %1781
        %1783 = vrot.lane.b32.xlu0 %v1268, 48
        %v1784 = vpop.permute.xlu0 %1783
        %1809 = vrot.lane.b32.xlu0 %v1269, 64
        %v1810 = vpop.permute.xlu0 %1809
        %1811 = vrot.lane.b32.xlu0 %v1270, 64
        %v1812 = vpop.permute.xlu0 %1811
        %1813 = vrot.lane.b32.xlu0 %v1271, 64
        %v1814 = vpop.permute.xlu0 %1813
        %1815 = vrot.lane.b32.xlu0 %v1272, 64
        %v1816 = vpop.permute.xlu0 %1815
        %1817 = vrot.lane.b32.xlu0 %v1273, 64
        %v1818 = vpop.permute.xlu0 %1817
        %1819 = vrot.lane.b32.xlu0 %v1274, 64
        %v1820 = vpop.permute.xlu0 %1819
        %1821 = vrot.lane.b32.xlu0 %v1275, 64
        %v1822 = vpop.permute.xlu0 %1821
        %1823 = vrot.lane.b32.xlu0 %v1276, 64
        %v1824 = vpop.permute.xlu0 %1823
        %1825 = vrot.lane.b32.xlu0 %v1277, 64
        %v1826 = vpop.permute.xlu0 %1825
        %1827 = vrot.lane.b32.xlu0 %v1278, 64
        %v1828 = vpop.permute.xlu0 %1827
        %1829 = vrot.lane.b32.xlu0 %v1279, 64
        %v1830 = vpop.permute.xlu0 %1829
        %1831 = vrot.lane.b32.xlu0 %v1280, 64
        %v1832 = vpop.permute.xlu0 %1831
        %1857 = vrot.lane.b32.xlu0 %v1281, 80
        %v1858 = vpop.permute.xlu0 %1857
        %1859 = vrot.lane.b32.xlu0 %v1282, 80
        %v1860 = vpop.permute.xlu0 %1859
        %1861 = vrot.lane.b32.xlu0 %v1283, 80
        %v1862 = vpop.permute.xlu0 %1861
        %1863 = vrot.lane.b32.xlu0 %v1284, 80
        %v1864 = vpop.permute.xlu0 %1863
        %1865 = vrot.lane.b32.xlu0 %v1285, 80
        %v1866 = vpop.permute.xlu0 %1865
        %1867 = vrot.lane.b32.xlu0 %v1286, 80
        %v1868 = vpop.permute.xlu0 %1867
        %1869 = vrot.lane.b32.xlu0 %v1287, 80
        %v1870 = vpop.permute.xlu0 %1869
        %1871 = vrot.lane.b32.xlu0 %v1288, 80
        %v1872 = vpop.permute.xlu0 %1871
        %1873 = vrot.lane.b32.xlu0 %v1289, 80
        %v1874 = vpop.permute.xlu0 %1873
        %1875 = vrot.lane.b32.xlu0 %v1290, 80
        %v1876 = vpop.permute.xlu0 %1875
        %1877 = vrot.lane.b32.xlu0 %v1291, 80
        %v1878 = vpop.permute.xlu0 %1877
        %1879 = vrot.lane.b32.xlu0 %v1292, 80
        %v1880 = vpop.permute.xlu0 %1879
        %1905 = vrot.lane.b32.xlu0 %v1293, 96
        %v1906 = vpop.permute.xlu0 %1905
        %1907 = vrot.lane.b32.xlu0 %v1294, 96
        %v1908 = vpop.permute.xlu0 %1907
        %1909 = vrot.lane.b32.xlu0 %v1295, 96
        %v1910 = vpop.permute.xlu0 %1909
        %1911 = vrot.lane.b32.xlu0 %v1296, 96
        %v1912 = vpop.permute.xlu0 %1911
        %1913 = vrot.lane.b32.xlu0 %v1297, 96
        %v1914 = vpop.permute.xlu0 %1913
        %1915 = vrot.lane.b32.xlu0 %v1298, 96
        %v1916 = vpop.permute.xlu0 %1915
        %1917 = vrot.lane.b32.xlu0 %v1299, 96
        %v1918 = vpop.permute.xlu0 %1917
        %1919 = vrot.lane.b32.xlu0 %v1300, 96
        %v1920 = vpop.permute.xlu0 %1919
        %1921 = vrot.lane.b32.xlu0 %v1301, 96
        %v1922 = vpop.permute.xlu0 %1921
        %1923 = vrot.lane.b32.xlu0 %v1302, 96
        %v1924 = vpop.permute.xlu0 %1923
        %1925 = vrot.lane.b32.xlu0 %v1303, 96
        %v1926 = vpop.permute.xlu0 %1925
        %1927 = vrot.lane.b32.xlu0 %v1304, 96
        %v1928 = vpop.permute.xlu0 %1927
        %1953 = vrot.lane.b32.xlu0 %v1305, 112
        %v1954 = vpop.permute.xlu0 %1953
        %1955 = vrot.lane.b32.xlu0 %v1306, 112
        %v1956 = vpop.permute.xlu0 %1955
        %1957 = vrot.lane.b32.xlu0 %v1307, 112
        %v1958 = vpop.permute.xlu0 %1957
        %1959 = vrot.lane.b32.xlu0 %v1308, 112
        %v1960 = vpop.permute.xlu0 %1959
        %1961 = vrot.lane.b32.xlu0 %v1309, 112
        %v1962 = vpop.permute.xlu0 %1961
        %1963 = vrot.lane.b32.xlu0 %v1310, 112
        %v1964 = vpop.permute.xlu0 %1963
        %1965 = vrot.lane.b32.xlu0 %v1311, 112
        %v1966 = vpop.permute.xlu0 %1965
        %1967 = vrot.lane.b32.xlu0 %v1312, 112
        %v1968 = vpop.permute.xlu0 %1967
        %1969 = vrot.lane.b32.xlu0 %v1313, 112
        %v1970 = vpop.permute.xlu0 %1969
        %1971 = vrot.lane.b32.xlu0 %v1314, 112
        %v1972 = vpop.permute.xlu0 %1971
        %1973 = vrot.lane.b32.xlu0 %v1315, 112
        %v1974 = vpop.permute.xlu0 %1973
        %1975 = vrot.lane.b32.xlu0 %v1316, 112
        %v1976 = vpop.permute.xlu0 %1975
        %v1989 = vsel %vm1073, %v1125, %v1330
        %v1990 = vsel %vm1073, %v1126, %v1332
        %v1991 = vsel %vm1073, %v1127, %v1334
        %v1992 = vsel %vm1073, %v1128, %v1336
        %v1993 = vsel %vm1073, %v1129, %v1338
        %v1994 = vsel %vm1073, %v1130, %v1340
        %v1995 = vsel %vm1073, %v1131, %v1342
        %v1996 = vsel %vm1073, %v1132, %v1344
        %v1997 = vsel %vm1073, %v1133, %v1346
        %v1998 = vsel %vm1073, %v1134, %v1348
        %v1999 = vsel %vm1073, %v1135, %v1350
        %v2000 = vsel %vm1073, %v1136, %v1352
        %vm2001 = vcmask 261120
        %v2002 = vsel %vm2001, %v1989, %v1378
        %v2003 = vsel %vm2001, %v1990, %v1380
        %v2004 = vsel %vm2001, %v1991, %v1382
        %v2005 = vsel %vm2001, %v1992, %v1384
        %v2006 = vsel %vm2001, %v1993, %v1386
        %v2007 = vsel %vm2001, %v1994, %v1388
        %v2008 = vsel %vm2001, %v1995, %v1390
        %v2009 = vsel %vm2001, %v1996, %v1392
        %v2010 = vsel %vm2001, %v1997, %v1394
        %v2011 = vsel %vm2001, %v1998, %v1396
        %v2012 = vsel %vm2001, %v1999, %v1398
        %v2013 = vsel %vm2001, %v2000, %v1400
        %vm2014 = vcmask 392192
        %v2015 = vsel %vm2014, %v2002, %v1426
        %v2016 = vsel %vm2014, %v2003, %v1428
        %v2017 = vsel %vm2014, %v2004, %v1430
        %v2018 = vsel %vm2014, %v2005, %v1432
        %v2019 = vsel %vm2014, %v2006, %v1434
        %v2020 = vsel %vm2014, %v2007, %v1436
        %v2021 = vsel %vm2014, %v2008, %v1438
        %v2022 = vsel %vm2014, %v2009, %v1440
        %v2023 = vsel %vm2014, %v2010, %v1442
        %v2024 = vsel %vm2014, %v2011, %v1444
        %v2025 = vsel %vm2014, %v2012, %v1446
        %v2026 = vsel %vm2014, %v2013, %v1448
        %vm2027 = vcmask 523264
        %v2028 = vsel %vm2027, %v2015, %v1474
        %v2029 = vsel %vm2027, %v2016, %v1476
        %v2030 = vsel %vm2027, %v2017, %v1478
        %v2031 = vsel %vm2027, %v2018, %v1480
        %v2032 = vsel %vm2027, %v2019, %v1482
        %v2033 = vsel %vm2027, %v2020, %v1484
        %v2034 = vsel %vm2027, %v2021, %v1486
        %v2035 = vsel %vm2027, %v2022, %v1488
        %v2036 = vsel %vm2027, %v2023, %v1490
        %v2037 = vsel %vm2027, %v2024, %v1492
        %v2038 = vsel %vm2027, %v2025, %v1494
        %v2039 = vsel %vm2027, %v2026, %v1496
        %vm2040 = vcmask 654336
        %v2041 = vsel %vm2040, %v2028, %v1522
        %v2042 = vsel %vm2040, %v2029, %v1524
        %v2043 = vsel %vm2040, %v2030, %v1526
        %v2044 = vsel %vm2040, %v2031, %v1528
        %v2045 = vsel %vm2040, %v2032, %v1530
        %v2046 = vsel %vm2040, %v2033, %v1532
        %v2047 = vsel %vm2040, %v2034, %v1534
        %v2048 = vsel %vm2040, %v2035, %v1536
        %v2049 = vsel %vm2040, %v2036, %v1538
        %v2050 = vsel %vm2040, %v2037, %v1540
        %v2051 = vsel %vm2040, %v2038, %v1542
        %v2052 = vsel %vm2040, %v2039, %v1544
        %vm2053 = vcmask 785408
        %v2054 = vsel %vm2053, %v2041, %v1570
        %v2055 = vsel %vm2053, %v2042, %v1572
        %v2056 = vsel %vm2053, %v2043, %v1574
        %v2057 = vsel %vm2053, %v2044, %v1576
        %v2058 = vsel %vm2053, %v2045, %v1578
        %v2059 = vsel %vm2053, %v2046, %v1580
        %v2060 = vsel %vm2053, %v2047, %v1582
        %v2061 = vsel %vm2053, %v2048, %v1584
        %v2062 = vsel %vm2053, %v2049, %v1586
        %v2063 = vsel %vm2053, %v2050, %v1588
        %v2064 = vsel %vm2053, %v2051, %v1590
        %v2065 = vsel %vm2053, %v2052, %v1592
        %vm2066 = vcmask 916480
        %v2067 = vsel %vm2066, %v2054, %v1618
        %v2068 = vsel %vm2066, %v2055, %v1620
        %v2069 = vsel %vm2066, %v2056, %v1622
        %v2070 = vsel %vm2066, %v2057, %v1624
        %v2071 = vsel %vm2066, %v2058, %v1626
        %v2072 = vsel %vm2066, %v2059, %v1628
        %v2073 = vsel %vm2066, %v2060, %v1630
        %v2074 = vsel %vm2066, %v2061, %v1632
        %v2075 = vsel %vm2066, %v2062, %v1634
        %v2076 = vsel %vm2066, %v2063, %v1636
        %v2077 = vsel %vm2066, %v2064, %v1638
        %v2078 = vsel %vm2066, %v2065, %v1640
        %v2079 = vsel %vm1073, %v1221, %v1666
        %v2080 = vsel %vm1073, %v1222, %v1668
        %v2081 = vsel %vm1073, %v1223, %v1670
        %v2082 = vsel %vm1073, %v1224, %v1672
        %v2083 = vsel %vm1073, %v1225, %v1674
        %v2084 = vsel %vm1073, %v1226, %v1676
        %v2085 = vsel %vm1073, %v1227, %v1678
        %v2086 = vsel %vm1073, %v1228, %v1680
        %v2087 = vsel %vm1073, %v1229, %v1682
        %v2088 = vsel %vm1073, %v1230, %v1684
        %v2089 = vsel %vm1073, %v1231, %v1686
        %v2090 = vsel %vm1073, %v1232, %v1688
        %v2091 = vsel %vm2001, %v2079, %v1714
        %v2092 = vsel %vm2001, %v2080, %v1716
        %v2093 = vsel %vm2001, %v2081, %v1718
        %v2094 = vsel %vm2001, %v2082, %v1720
        %v2095 = vsel %vm2001, %v2083, %v1722
        %v2096 = vsel %vm2001, %v2084, %v1724
        %v2097 = vsel %vm2001, %v2085, %v1726
        %v2098 = vsel %vm2001, %v2086, %v1728
        %v2099 = vsel %vm2001, %v2087, %v1730
        %v2100 = vsel %vm2001, %v2088, %v1732
        %v2101 = vsel %vm2001, %v2089, %v1734
        %v2102 = vsel %vm2001, %v2090, %v1736
        %v2103 = vsel %vm2014, %v2091, %v1762
        %v2104 = vsel %vm2014, %v2092, %v1764
        %v2105 = vsel %vm2014, %v2093, %v1766
        %v2106 = vsel %vm2014, %v2094, %v1768
        %v2107 = vsel %vm2014, %v2095, %v1770
        %v2108 = vsel %vm2014, %v2096, %v1772
        %v2109 = vsel %vm2014, %v2097, %v1774
        %v2110 = vsel %vm2014, %v2098, %v1776
        %v2111 = vsel %vm2014, %v2099, %v1778
        %v2112 = vsel %vm2014, %v2100, %v1780
        %v2113 = vsel %vm2014, %v2101, %v1782
        %v2114 = vsel %vm2014, %v2102, %v1784
        %v2115 = vsel %vm2027, %v2103, %v1810
        %v2116 = vsel %vm2027, %v2104, %v1812
        %v2117 = vsel %vm2027, %v2105, %v1814
        %v2118 = vsel %vm2027, %v2106, %v1816
        %v2119 = vsel %vm2027, %v2107, %v1818
        %v2120 = vsel %vm2027, %v2108, %v1820
        %v2121 = vsel %vm2027, %v2109, %v1822
        %v2122 = vsel %vm2027, %v2110, %v1824
        %v2123 = vsel %vm2027, %v2111, %v1826
        %v2124 = vsel %vm2027, %v2112, %v1828
        %v2125 = vsel %vm2027, %v2113, %v1830
        %v2126 = vsel %vm2027, %v2114, %v1832
        %v2127 = vsel %vm2040, %v2115, %v1858
        %v2128 = vsel %vm2040, %v2116, %v1860
        %v2129 = vsel %vm2040, %v2117, %v1862
        %v2130 = vsel %vm2040, %v2118, %v1864
        %v2131 = vsel %vm2040, %v2119, %v1866
        %v2132 = vsel %vm2040, %v2120, %v1868
        %v2133 = vsel %vm2040, %v2121, %v1870
        %v2134 = vsel %vm2040, %v2122, %v1872
        %v2135 = vsel %vm2040, %v2123, %v1874
        %v2136 = vsel %vm2040, %v2124, %v1876
        %v2137 = vsel %vm2040, %v2125, %v1878
        %v2138 = vsel %vm2040, %v2126, %v1880
        %v2139 = vsel %vm2053, %v2127, %v1906
        %v2140 = vsel %vm2053, %v2128, %v1908
        %v2141 = vsel %vm2053, %v2129, %v1910
        %v2142 = vsel %vm2053, %v2130, %v1912
        %v2143 = vsel %vm2053, %v2131, %v1914
        %v2144 = vsel %vm2053, %v2132, %v1916
        %v2145 = vsel %vm2053, %v2133, %v1918
        %v2146 = vsel %vm2053, %v2134, %v1920
        %v2147 = vsel %vm2053, %v2135, %v1922
        %v2148 = vsel %vm2053, %v2136, %v1924
        %v2149 = vsel %vm2053, %v2137, %v1926
        %v2150 = vsel %vm2053, %v2138, %v1928
        %v2151 = vsel %vm2066, %v2139, %v1954
        %v2152 = vsel %vm2066, %v2140, %v1956
        %v2153 = vsel %vm2066, %v2141, %v1958
        %v2154 = vsel %vm2066, %v2142, %v1960
        %v2155 = vsel %vm2066, %v2143, %v1962
        %v2156 = vsel %vm2066, %v2144, %v1964
        %v2157 = vsel %vm2066, %v2145, %v1966
        %v2158 = vsel %vm2066, %v2146, %v1968
        %v2159 = vsel %vm2066, %v2147, %v1970
        %v2160 = vsel %vm2066, %v2148, %v1972
        %v2161 = vsel %vm2066, %v2149, %v1974
        %v2162 = vsel %vm2066, %v2150, %v1976
        %v2163 = vpack.c.bf16 %v2068, %v2067
        %v2164 = vpack.c.bf16 %v2152, %v2151
        %v2165 = vpack.c.bf16 %v2070, %v2069
        %v2166 = vpack.c.bf16 %v2154, %v2153
        %v2167 = vpack.c.bf16 %v2072, %v2071
        %v2168 = vpack.c.bf16 %v2156, %v2155
        %v2169 = vpack.c.bf16 %v2074, %v2073
        %v2170 = vpack.c.bf16 %v2158, %v2157
        %v2171 = vpack.c.bf16 %v2076, %v2075
        %v2172 = vpack.c.bf16 %v2160, %v2159
        %v2173 = vpack.c.bf16 %v2078, %v2077
        %v2174 = vpack.c.bf16 %v2162, %v2161
        %v2175 = vld [vmem:[%s3] sm:$0xf]
        %v2176 = vld [vmem:[%s3 + $0x4] sm:$0xf]
        %v2177 = vld [vmem:[%s3 + $0x8] sm:$0xf]
        %v2178 = vld [vmem:[%s3 + $0xc] sm:$0xf]
        %v2179 = vld [vmem:[%s3 + $0x10] sm:$0xf]
        %v2180 = vld [vmem:[%s3 + $0x14] sm:$0xf]
        %v2181 = vld [vmem:[%s3 + $0x18] sm:$0xf]
        %v2182 = vld [vmem:[%s3 + $0x1c] sm:$0xf]
        %v2183 = vld [vmem:[%s3 + $0x20] sm:$0xf]
        %v2184 = vld [vmem:[%s3 + $0x24] sm:$0xf]
        %v2185 = vld [vmem:[%s3 + $0x28] sm:$0xf]
        %v2186 = vld [vmem:[%s3 + $0x2c] sm:$0xf]
        %v2187 = vld [vmem:[%s3 + $0x30] sm:$0xf]
        %v2188 = vld [vmem:[%s3 + $0x34] sm:$0xf]
        %v2189 = vld [vmem:[%s3 + $0x38] sm:$0xf]
        %v2190 = vld [vmem:[%s3 + $0x3c] sm:$0xf]
        %v2191 = vld [vmem:[%s3 + $0x40] sm:$0xf]
        %v2192 = vld [vmem:[%s3 + $0x44] sm:$0xf]
        %v2193 = vld [vmem:[%s3 + $0x48] sm:$0xf]
        %v2194 = vld [vmem:[%s3 + $0x4c] sm:$0xf]
        %v2195 = vld [vmem:[%s3 + $0x50] sm:$0xf]
        %v2196 = vld [vmem:[%s3 + $0x54] sm:$0xf]
        %v2197 = vld [vmem:[%s3 + $0x58] sm:$0xf]
        %v2198 = vld [vmem:[%s3 + $0x5c] sm:$0xf]
        %v2199 = vld [vmem:[%s3 + $0x60] sm:$0xf]
        %v2200 = vld [vmem:[%s3 + $0x64] sm:$0xf]
        %v2201 = vld [vmem:[%s3 + $0x68] sm:$0xf]
        %v2202 = vld [vmem:[%s3 + $0x6c] sm:$0xf]
        %v2203 = vld [vmem:[%s3 + $0x70] sm:$0xf]
        %v2204 = vld [vmem:[%s3 + $0x74] sm:$0xf]
        %v2205 = vld [vmem:[%s3 + $0x78] sm:$0xf]
        %v2206 = vld [vmem:[%s3 + $0x7c] sm:$0xf]
        %v2207 = vld [vmem:[%s4] sm:$0x1]
        %v2209 = vlaneseq
        %v2210 = vshrl.u32 %v2209, 7
        %v2211 = vsub.s32 0, %v2210
        %v2212 = vrot.slane %v2207, %v2211
        %v2246 = vunpack.c.l.b16 %v2175
        %v2247 = vunpack.c.l.b16 %v2176
        %v2248 = vunpack.c.l.b16 %v2177
        %v2249 = vunpack.c.l.b16 %v2178
        %v2250 = vunpack.c.l.b16 %v2179
        %v2251 = vunpack.c.l.b16 %v2180
        %v2252 = vunpack.c.l.b16 %v2181
        %v2253 = vunpack.c.l.b16 %v2182
        %v2254 = vunpack.c.l.b16 %v2183
        %v2255 = vunpack.c.l.b16 %v2184
        %v2256 = vunpack.c.l.b16 %v2185
        %v2257 = vunpack.c.l.b16 %v2186
        %v2258 = vunpack.c.l.b16 %v2187
        %v2259 = vunpack.c.l.b16 %v2188
        %v2260 = vunpack.c.l.b16 %v2189
        %v2261 = vunpack.c.l.b16 %v2190
        %v2262 = vunpack.c.l.b16 %v2191
        %v2263 = vunpack.c.l.b16 %v2192
        %v2264 = vunpack.c.l.b16 %v2193
        %v2265 = vunpack.c.l.b16 %v2194
        %v2266 = vunpack.c.l.b16 %v2195
        %v2267 = vunpack.c.l.b16 %v2196
        %v2268 = vunpack.c.l.b16 %v2197
        %v2269 = vunpack.c.l.b16 %v2198
        %v2270 = vunpack.c.l.b16 %v2199
        %v2271 = vunpack.c.l.b16 %v2200
        %v2272 = vunpack.c.l.b16 %v2201
        %v2273 = vunpack.c.l.b16 %v2202
        %v2274 = vunpack.c.l.b16 %v2203
        %v2275 = vunpack.c.l.b16 %v2204
        %v2276 = vunpack.c.l.b16 %v2205
        %v2277 = vunpack.c.l.b16 %v2206
        %v2278 = vpack.c.b16 %v2247, %v2246
        %v2279 = vpack.c.b16 %v2249, %v2248
        %v2280 = vpack.c.b16 %v2251, %v2250
        %v2281 = vpack.c.b16 %v2253, %v2252
        %v2282 = vpack.c.b16 %v2255, %v2254
        %v2283 = vpack.c.b16 %v2257, %v2256
        %v2284 = vpack.c.b16 %v2259, %v2258
        %v2285 = vpack.c.b16 %v2261, %v2260
        %v2286 = vpack.c.b16 %v2263, %v2262
        %v2287 = vpack.c.b16 %v2265, %v2264
        %v2288 = vpack.c.b16 %v2267, %v2266
        %v2289 = vpack.c.b16 %v2269, %v2268
        %v2290 = vpack.c.b16 %v2271, %v2270
        %v2291 = vpack.c.b16 %v2273, %v2272
        %v2292 = vpack.c.b16 %v2275, %v2274
        %v2293 = vpack.c.b16 %v2277, %v2276
        %2310 = vmatprep.subr.bf16.mxu0 0
        %2311 = vmatpush1.bf16.msra.mxu0 %v2278
        %2312 = vmatprep.subr.bf16.mxu0 0
        %2313 = vmatpush1.bf16.msra.mxu0 %v2279
        %2314 = vmatprep.subr.bf16.mxu0 0
        %2315 = vmatpush1.bf16.msra.mxu0 %v2280
        %2316 = vmatprep.subr.bf16.mxu0 0
        %2317 = vmatpush1.bf16.msra.mxu0 %v2281
        %2318 = vmatprep.subr.bf16.mxu0 0
        %2319 = vmatpush1.bf16.msra.mxu0 %v2282
        %2320 = vmatprep.subr.bf16.mxu0 0
        %2321 = vmatpush1.bf16.msra.mxu0 %v2283
        %2322 = vmatprep.subr.bf16.mxu0 0
        %2323 = vmatpush1.bf16.msra.mxu0 %v2284
        %2324 = vmatprep.subr.bf16.mxu0 0
        %2325 = vmatpush1.bf16.msra.mxu0 %v2285
        %2326 = vmatprep.subr.bf16.mxu0 0
        %2327 = vmatpush1.bf16.msra.mxu0 %v2286
        %2328 = vmatprep.subr.bf16.mxu0 0
        %2329 = vmatpush1.bf16.msra.mxu0 %v2287
        %2330 = vmatprep.subr.bf16.mxu0 0
        %2331 = vmatpush1.bf16.msra.mxu0 %v2288
        %2332 = vmatprep.subr.bf16.mxu0 0
        %2333 = vmatpush1.bf16.msra.mxu0 %v2289
        %2334 = vmatprep.subr.bf16.mxu0 0
        %2335 = vmatpush1.bf16.msra.mxu0 %v2290
        %2336 = vmatprep.subr.bf16.mxu0 0
        %2337 = vmatpush1.bf16.msra.mxu0 %v2291
        %2338 = vmatprep.subr.bf16.mxu0 0
        %2339 = vmatpush1.bf16.msra.mxu0 %v2292
        %2340 = vmatprep.subr.bf16.mxu0 0
        %2341 = vmatpush1.bf16.msra.mxu0 %v2293
        %2342 = vmatprep.mubr.bf16.mxu0 %v2164
        %2343 = vmatmul.mubr.bf16.gmra.mrb[0].mxu0 %v2163
        %v2344 = vpop.f32.mrb[0].mxu0
        %v2345 = vadd.f32 %v2212, %v2344
        %v2346 = vpop.f32.mrb[0].mxu0
        %v2347 = vpop.f32.mrb[0].mxu0
        %v2348 = vadd.f32 %v2212, %v2347
        %v2349 = vpop.f32.mrb[0].mxu0
        %2350 = vmatprep.mubr.bf16.mxu0 %v2166
        %2351 = vmatmul.mubr.bf16.gmra.mrb[0].mxu0 %v2165
        %v2352 = vpop.f32.mrb[0].mxu0
        %v2353 = vadd.f32 %v2212, %v2352
        %v2354 = vpop.f32.mrb[0].mxu0
        %v2355 = vpop.f32.mrb[0].mxu0
        %v2356 = vadd.f32 %v2212, %v2355
        %v2357 = vpop.f32.mrb[0].mxu0
        %2358 = vmatprep.mubr.bf16.mxu0 %v2168
        %2359 = vmatmul.mubr.bf16.gmra.mrb[0].mxu0 %v2167
        %v2360 = vpop.f32.mrb[0].mxu0
        %v2361 = vadd.f32 %v2212, %v2360
        %v2362 = vpop.f32.mrb[0].mxu0
        %v2363 = vpop.f32.mrb[0].mxu0
        %v2364 = vadd.f32 %v2212, %v2363
        %v2365 = vpop.f32.mrb[0].mxu0
        %2366 = vmatprep.mubr.bf16.mxu0 %v2170
        %2367 = vmatmul.mubr.bf16.gmra.mrb[0].mxu0 %v2169
        %v2368 = vpop.f32.mrb[0].mxu0
        %v2369 = vadd.f32 %v2212, %v2368
        %v2370 = vpop.f32.mrb[0].mxu0
        %v2371 = vpop.f32.mrb[0].mxu0
        %v2372 = vadd.f32 %v2212, %v2371
        %v2373 = vpop.f32.mrb[0].mxu0
        %2374 = vmatprep.mubr.bf16.mxu0 %v2172
        %2375 = vmatmul.mubr.bf16.gmra.mrb[0].mxu0 %v2171
        %v2376 = vpop.f32.mrb[0].mxu0
        %v2377 = vadd.f32 %v2212, %v2376
        %v2378 = vpop.f32.mrb[0].mxu0
        %v2379 = vpop.f32.mrb[0].mxu0
        %v2380 = vadd.f32 %v2212, %v2379
        %v2381 = vpop.f32.mrb[0].mxu0
        %2382 = vmatprep.mubr.bf16.mxu0 %v2174
        %2383 = vmatmul.mubr.bf16.gmra.mrb[0].mxu0 %v2173
        %v2384 = vpop.f32.mrb[0].mxu0
        %v2385 = vadd.f32 %v2212, %v2384
        %v2386 = vpop.f32.mrb[0].mxu0
        %v2387 = vpop.f32.mrb[0].mxu0
        %v2388 = vadd.f32 %v2212, %v2387
        %v2389 = vpop.f32.mrb[0].mxu0
        %2390 = vdwg.mxu0
        %v2391 = vmax.f32 %v2345, 0.0
        %v2392 = vmax.f32 %v2348, 0.0
        %v2393 = vmax.f32 %v2353, 0.0
        %v2394 = vmax.f32 %v2356, 0.0
        %v2395 = vmax.f32 %v2361, 0.0
        %v2396 = vmax.f32 %v2364, 0.0
        %v2397 = vmax.f32 %v2369, 0.0
        %v2398 = vmax.f32 %v2372, 0.0
        %v2399 = vmax.f32 %v2377, 0.0
        %v2400 = vmax.f32 %v2380, 0.0
        %v2401 = vmax.f32 %v2385, 0.0
        %v2402 = vmax.f32 %v2388, 0.0
        %vm2403 = vcmask 253952
        %2404 = vst.msk [vmem:[#allocation3] sm:$0x1] %vm2403, %v2391
        %v2406 = vrot.slane %v2391, 5
        %v2407 = vrot.slane %v2406, 4
        %2408 = vrot.lane.b32.xlu0 %v2407, 32
        %v2409 = vpop.permute.xlu0 %2408
        %vm2411 = vcmask 516352
        %2412 = vst.msk [vmem:[#allocation3] sm:$0x1] %vm2411, %v2409
        %v2413 = vrot.slane %v2391, 6
        %v2414 = vrot.slane %v2413, 4
        %2415 = vrot.lane.b32.xlu0 %v2414, 64
        %v2416 = vpop.permute.xlu0 %2415
        %vm2418 = vcmask 778752
        %2419 = vst.msk [vmem:[#allocation3] sm:$0x1] %vm2418, %v2416
        %v2420 = vrot.slane %v2391, 7
        %v2421 = vrot.slane %v2420, 4
        %2422 = vrot.lane.b32.xlu0 %v2421, 96
        %v2423 = vpop.permute.xlu0 %2422
        %vm2425 = vcmask 1041152
        %2426 = vst.msk [vmem:[#allocation3] sm:$0x1] %vm2425, %v2423
        %v2427 = vcombine.high %v2391, %v2391
        %2429 = vst.msk [vmem:[#allocation3 + $0x4] sm:$0x1] %vm2403, %v2427
        %v2430 = vrot.slane %v2427, 5
        %v2431 = vrot.slane %v2430, 4
        %2432 = vrot.lane.b32.xlu0 %v2431, 32
        %v2433 = vpop.permute.xlu0 %2432
        %2435 = vst.msk [vmem:[#allocation3 + $0x4] sm:$0x1] %vm2411, %v2433
        %v2436 = vrot.slane %v2427, 6
        %v2437 = vrot.slane %v2436, 4
        %2438 = vrot.lane.b32.xlu0 %v2437, 64
        %v2439 = vpop.permute.xlu0 %2438
        %2441 = vst.msk [vmem:[#allocation3 + $0x4] sm:$0x1] %vm2418, %v2439
        %v2442 = vrot.slane %v2427, 7
        %v2443 = vrot.slane %v2442, 4
        %2444 = vrot.lane.b32.xlu0 %v2443, 96
        %v2445 = vpop.permute.xlu0 %2444
        %2447 = vst.msk [vmem:[#allocation3 + $0x4] sm:$0x1] %vm2425, %v2445
        %2448 = vst.msk [vmem:[#allocation3 + $0x8] sm:$0x1] %vm2403, %v2392
        %v2450 = vrot.slane %v2392, 6
        %v2451 = vrot.slane %v2450, 4
        %2452 = vrot.lane.b32.xlu0 %v2451, 32
        %v2453 = vpop.permute.xlu0 %2452
        %2455 = vst.msk [vmem:[#allocation3 + $0x8] sm:$0x1] %vm2411, %v2453
        %v2456 = vrot.slane %v2392, 7
        %v2457 = vrot.slane %v2456, 4
        %2458 = vrot.lane.b32.xlu0 %v2457, 64
        %v2459 = vpop.permute.xlu0 %2458
        %2461 = vst.msk [vmem:[#allocation3 + $0x8] sm:$0x1] %vm2418, %v2459
        %v2462 = vcombine.high %v2392, %v2392
        %2463 = vrot.lane.b32.xlu0 %v2462, 96
        %v2464 = vpop.permute.xlu0 %2463
        %2466 = vst.msk [vmem:[#allocation3 + $0x8] sm:$0x1] %vm2425, %v2464
        %v2467 = vrot.slane %v2462, 5
        %v2468 = vrot.slane %v2467, 4
        %2470 = vst.msk [vmem:[#allocation3 + $0xc] sm:$0x1] %vm2403, %v2468
        %v2471 = vrot.slane %v2462, 6
        %v2472 = vrot.slane %v2471, 4
        %2473 = vrot.lane.b32.xlu0 %v2472, 32
        %v2474 = vpop.permute.xlu0 %2473
        %2476 = vst.msk [vmem:[#allocation3 + $0xc] sm:$0x1] %vm2411, %v2474
        %v2477 = vrot.slane %v2462, 7
        %v2478 = vrot.slane %v2477, 4
        %2479 = vrot.lane.b32.xlu0 %v2478, 64
        %v2480 = vpop.permute.xlu0 %2479
        %2482 = vst.msk [vmem:[#allocation3 + $0xc] sm:$0x1] %vm2418, %v2480
        %2484 = vrot.lane.b32.xlu0 %v2393, 96
        %v2485 = vpop.permute.xlu0 %2484
        %2487 = vst.msk [vmem:[#allocation3 + $0xc] sm:$0x1] %vm2425, %v2485
        %v2488 = vrot.slane %v2393, 5
        %v2489 = vrot.slane %v2488, 4
        %2491 = vst.msk [vmem:[#allocation3 + $0x10] sm:$0x1] %vm2403, %v2489
        %v2492 = vrot.slane %v2393, 6
        %v2493 = vrot.slane %v2492, 4
        %2494 = vrot.lane.b32.xlu0 %v2493, 32
        %v2495 = vpop.permute.xlu0 %2494
        %2497 = vst.msk [vmem:[#allocation3 + $0x10] sm:$0x1] %vm2411, %v2495
        %v2498 = vcombine.high %v2393, %v2393
        %2499 = vrot.lane.b32.xlu0 %v2498, 64
        %v2500 = vpop.permute.xlu0 %2499
        %2502 = vst.msk [vmem:[#allocation3 + $0x10] sm:$0x1] %vm2418, %v2500
        %v2503 = vrot.slane %v2498, 5
        %v2504 = vrot.slane %v2503, 4
        %2505 = vrot.lane.b32.xlu0 %v2504, 96
        %v2506 = vpop.permute.xlu0 %2505
        %2508 = vst.msk [vmem:[#allocation3 + $0x10] sm:$0x1] %vm2425, %v2506
        %v2509 = vrot.slane %v2498, 6
        %v2510 = vrot.slane %v2509, 4
        %2512 = vst.msk [vmem:[#allocation3 + $0x14] sm:$0x1] %vm2403, %v2510
        %v2513 = vrot.slane %v2498, 7
        %v2514 = vrot.slane %v2513, 4
        %2515 = vrot.lane.b32.xlu0 %v2514, 32
        %v2516 = vpop.permute.xlu0 %2515
        %2518 = vst.msk [vmem:[#allocation3 + $0x14] sm:$0x1] %vm2411, %v2516
        %2520 = vrot.lane.b32.xlu0 %v2394, 64
        %v2521 = vpop.permute.xlu0 %2520
        %2523 = vst.msk [vmem:[#allocation3 + $0x14] sm:$0x1] %vm2418, %v2521
        %v2524 = vrot.slane %v2394, 5
        %v2525 = vrot.slane %v2524, 4
        %2526 = vrot.lane.b32.xlu0 %v2525, 96
        %v2527 = vpop.permute.xlu0 %2526
        %2529 = vst.msk [vmem:[#allocation3 + $0x14] sm:$0x1] %vm2425, %v2527
        %v2530 = vrot.slane %v2394, 6
        %v2531 = vrot.slane %v2530, 4
        %2533 = vst.msk [vmem:[#allocation3 + $0x18] sm:$0x1] %vm2403, %v2531
        %v2534 = vrot.slane %v2394, 7
        %v2535 = vrot.slane %v2534, 4
        %2536 = vrot.lane.b32.xlu0 %v2535, 32
        %v2537 = vpop.permute.xlu0 %2536
        %2539 = vst.msk [vmem:[#allocation3 + $0x18] sm:$0x1] %vm2411, %v2537
        %v2540 = vcombine.high %v2394, %v2394
        %2541 = vrot.lane.b32.xlu0 %v2540, 64
        %v2542 = vpop.permute.xlu0 %2541
        %2544 = vst.msk [vmem:[#allocation3 + $0x18] sm:$0x1] %vm2418, %v2542
        %v2545 = vrot.slane %v2540, 6
        %v2546 = vrot.slane %v2545, 4
        %2548 = vst.msk [vmem:[#allocation3 + $0x1] sm:$0x1] %vm2403, %v2546
        %v2549 = vrot.slane %v2540, 7
        %v2550 = vrot.slane %v2549, 4
        %2551 = vrot.lane.b32.xlu0 %v2550, 32
        %v2552 = vpop.permute.xlu0 %2551
        %2554 = vst.msk [vmem:[#allocation3 + $0x1] sm:$0x1] %vm2411, %v2552
        %2556 = vrot.lane.b32.xlu0 %v2395, 64
        %v2557 = vpop.permute.xlu0 %2556
        %2559 = vst.msk [vmem:[#allocation3 + $0x1] sm:$0x1] %vm2418, %v2557
        %v2560 = vrot.slane %v2395, 5
        %v2561 = vrot.slane %v2560, 4
        %2562 = vrot.lane.b32.xlu0 %v2561, 96
        %v2563 = vpop.permute.xlu0 %2562
        %2565 = vst.msk [vmem:[#allocation3 + $0x1] sm:$0x1] %vm2425, %v2563
        %v2566 = vrot.slane %v2395, 6
        %v2567 = vrot.slane %v2566, 4
        %2569 = vst.msk [vmem:[#allocation3 + $0x5] sm:$0x1] %vm2403, %v2567
        %v2570 = vrot.slane %v2395, 7
        %v2571 = vrot.slane %v2570, 4
        %2572 = vrot.lane.b32.xlu0 %v2571, 32
        %v2573 = vpop.permute.xlu0 %2572
        %2575 = vst.msk [vmem:[#allocation3 + $0x5] sm:$0x1] %vm2411, %v2573
        %v2576 = vcombine.high %v2395, %v2395
        %2577 = vrot.lane.b32.xlu0 %v2576, 64
        %v2578 = vpop.permute.xlu0 %2577
        %2580 = vst.msk [vmem:[#allocation3 + $0x5] sm:$0x1] %vm2418, %v2578
        %v2581 = vrot.slane %v2576, 5
        %v2582 = vrot.slane %v2581, 4
        %2583 = vrot.lane.b32.xlu0 %v2582, 96
        %v2584 = vpop.permute.xlu0 %2583
        %2586 = vst.msk [vmem:[#allocation3 + $0x5] sm:$0x1] %vm2425, %v2584
        %v2587 = vrot.slane %v2576, 6
        %v2588 = vrot.slane %v2587, 4
        %2590 = vst.msk [vmem:[#allocation3 + $0x9] sm:$0x1] %vm2403, %v2588
        %2592 = vrot.lane.b32.xlu0 %v2396, 32
        %v2593 = vpop.permute.xlu0 %2592
        %2595 = vst.msk [vmem:[#allocation3 + $0x9] sm:$0x1] %vm2411, %v2593
        %v2596 = vrot.slane %v2396, 5
        %v2597 = vrot.slane %v2596, 4
        %2598 = vrot.lane.b32.xlu0 %v2597, 64
        %v2599 = vpop.permute.xlu0 %2598
        %2601 = vst.msk [vmem:[#allocation3 + $0x9] sm:$0x1] %vm2418, %v2599
        %v2602 = vrot.slane %v2396, 6
        %v2603 = vrot.slane %v2602, 4
        %2604 = vrot.lane.b32.xlu0 %v2603, 96
        %v2605 = vpop.permute.xlu0 %2604
        %2607 = vst.msk [vmem:[#allocation3 + $0x9] sm:$0x1] %vm2425, %v2605
        %v2608 = vrot.slane %v2396, 7
        %v2609 = vrot.slane %v2608, 4
        %2611 = vst.msk [vmem:[#allocation3 + $0xd] sm:$0x1] %vm2403, %v2609
        %v2612 = vcombine.high %v2396, %v2396
        %2613 = vrot.lane.b32.xlu0 %v2612, 32
        %v2614 = vpop.permute.xlu0 %2613
        %2616 = vst.msk [vmem:[#allocation3 + $0xd] sm:$0x1] %vm2411, %v2614
        %v2617 = vrot.slane %v2612, 5
        %v2618 = vrot.slane %v2617, 4
        %2619 = vrot.lane.b32.xlu0 %v2618, 64
        %v2620 = vpop.permute.xlu0 %2619
        %2622 = vst.msk [vmem:[#allocation3 + $0xd] sm:$0x1] %vm2418, %v2620
        %v2623 = vrot.slane %v2612, 6
        %v2624 = vrot.slane %v2623, 4
        %2625 = vrot.lane.b32.xlu0 %v2624, 96
        %v2626 = vpop.permute.xlu0 %2625
        %2628 = vst.msk [vmem:[#allocation3 + $0xd] sm:$0x1] %vm2425, %v2626
        %v2629 = vrot.slane %v2612, 7
        %v2630 = vrot.slane %v2629, 4
        %2632 = vst.msk [vmem:[#allocation3 + $0x11] sm:$0x1] %vm2403, %v2630
        %2634 = vrot.lane.b32.xlu0 %v2397, 32
        %v2635 = vpop.permute.xlu0 %2634
        %2637 = vst.msk [vmem:[#allocation3 + $0x11] sm:$0x1] %vm2411, %v2635
        %v2638 = vrot.slane %v2397, 6
        %v2639 = vrot.slane %v2638, 4
        %2640 = vrot.lane.b32.xlu0 %v2639, 64
        %v2641 = vpop.permute.xlu0 %2640
        %2643 = vst.msk [vmem:[#allocation3 + $0x11] sm:$0x1] %vm2418, %v2641
        %v2644 = vrot.slane %v2397, 7
        %v2645 = vrot.slane %v2644, 4
        %2646 = vrot.lane.b32.xlu0 %v2645, 96
        %v2647 = vpop.permute.xlu0 %2646
        %2649 = vst.msk [vmem:[#allocation3 + $0x11] sm:$0x1] %vm2425, %v2647
        %v2650 = vcombine.high %v2397, %v2397
        %2652 = vst.msk [vmem:[#allocation3 + $0x15] sm:$0x1] %vm2403, %v2650
        %v2653 = vrot.slane %v2650, 5
        %v2654 = vrot.slane %v2653, 4
        %2655 = vrot.lane.b32.xlu0 %v2654, 32
        %v2656 = vpop.permute.xlu0 %2655
        %2658 = vst.msk [vmem:[#allocation3 + $0x15] sm:$0x1] %vm2411, %v2656
        %v2659 = vrot.slane %v2650, 6
        %v2660 = vrot.slane %v2659, 4
        %2661 = vrot.lane.b32.xlu0 %v2660, 64
        %v2662 = vpop.permute.xlu0 %2661
        %2664 = vst.msk [vmem:[#allocation3 + $0x15] sm:$0x1] %vm2418, %v2662
        %v2665 = vrot.slane %v2650, 7
        %v2666 = vrot.slane %v2665, 4
        %2667 = vrot.lane.b32.xlu0 %v2666, 96
        %v2668 = vpop.permute.xlu0 %2667
        %2670 = vst.msk [vmem:[#allocation3 + $0x15] sm:$0x1] %vm2425, %v2668
        %2671 = vst.msk [vmem:[#allocation3 + $0x19] sm:$0x1] %vm2403, %v2398
        %v2673 = vrot.slane %v2398, 5
        %v2674 = vrot.slane %v2673, 4
        %2675 = vrot.lane.b32.xlu0 %v2674, 32
        %v2676 = vpop.permute.xlu0 %2675
        %2678 = vst.msk [vmem:[#allocation3 + $0x19] sm:$0x1] %vm2411, %v2676
        %v2679 = vrot.slane %v2398, 6
        %v2680 = vrot.slane %v2679, 4
        %2681 = vrot.lane.b32.xlu0 %v2680, 64
        %v2682 = vpop.permute.xlu0 %2681
        %2684 = vst.msk [vmem:[#allocation3 + $0x19] sm:$0x1] %vm2418, %v2682
        %v2685 = vcombine.high %v2398, %v2398
        %2687 = vst.msk [vmem:[#allocation3 + $0x2] sm:$0x1] %vm2403, %v2685
        %v2688 = vrot.slane %v2685, 5
        %v2689 = vrot.slane %v2688, 4
        %2690 = vrot.lane.b32.xlu0 %v2689, 32
        %v2691 = vpop.permute.xlu0 %2690
        %2693 = vst.msk [vmem:[#allocation3 + $0x2] sm:$0x1] %vm2411, %v2691
        %v2694 = vrot.slane %v2685, 6
        %v2695 = vrot.slane %v2694, 4
        %2696 = vrot.lane.b32.xlu0 %v2695, 64
        %v2697 = vpop.permute.xlu0 %2696
        %2699 = vst.msk [vmem:[#allocation3 + $0x2] sm:$0x1] %vm2418, %v2697
        %v2700 = vrot.slane %v2685, 7
        %v2701 = vrot.slane %v2700, 4
        %2702 = vrot.lane.b32.xlu0 %v2701, 96
        %v2703 = vpop.permute.xlu0 %2702
        %2705 = vst.msk [vmem:[#allocation3 + $0x2] sm:$0x1] %vm2425, %v2703
        %2706 = vst.msk [vmem:[#allocation3 + $0x6] sm:$0x1] %vm2403, %v2399
        %v2708 = vrot.slane %v2399, 5
        %v2709 = vrot.slane %v2708, 4
        %2710 = vrot.lane.b32.xlu0 %v2709, 32
        %v2711 = vpop.permute.xlu0 %2710
        %2713 = vst.msk [vmem:[#allocation3 + $0x6] sm:$0x1] %vm2411, %v2711
        %v2714 = vrot.slane %v2399, 6
        %v2715 = vrot.slane %v2714, 4
        %2716 = vrot.lane.b32.xlu0 %v2715, 64
        %v2717 = vpop.permute.xlu0 %2716
        %2719 = vst.msk [vmem:[#allocation3 + $0x6] sm:$0x1] %vm2418, %v2717
        %v2720 = vrot.slane %v2399, 7
        %v2721 = vrot.slane %v2720, 4
        %2722 = vrot.lane.b32.xlu0 %v2721, 96
        %v2723 = vpop.permute.xlu0 %2722
        %2725 = vst.msk [vmem:[#allocation3 + $0x6] sm:$0x1] %vm2425, %v2723
        %v2726 = vcombine.high %v2399, %v2399
        %2728 = vst.msk [vmem:[#allocation3 + $0xa] sm:$0x1] %vm2403, %v2726
        %v2729 = vrot.slane %v2726, 6
        %v2730 = vrot.slane %v2729, 4
        %2731 = vrot.lane.b32.xlu0 %v2730, 32
        %v2732 = vpop.permute.xlu0 %2731
        %2734 = vst.msk [vmem:[#allocation3 + $0xa] sm:$0x1] %vm2411, %v2732
        %v2735 = vrot.slane %v2726, 7
        %v2736 = vrot.slane %v2735, 4
        %2737 = vrot.lane.b32.xlu0 %v2736, 64
        %v2738 = vpop.permute.xlu0 %2737
        %2740 = vst.msk [vmem:[#allocation3 + $0xa] sm:$0x1] %vm2418, %v2738
        %2742 = vrot.lane.b32.xlu0 %v2400, 96
        %v2743 = vpop.permute.xlu0 %2742
        %2745 = vst.msk [vmem:[#allocation3 + $0xa] sm:$0x1] %vm2425, %v2743
        %v2746 = vrot.slane %v2400, 5
        %v2747 = vrot.slane %v2746, 4
        %2749 = vst.msk [vmem:[#allocation3 + $0xe] sm:$0x1] %vm2403, %v2747
        %v2750 = vrot.slane %v2400, 6
        %v2751 = vrot.slane %v2750, 4
        %2752 = vrot.lane.b32.xlu0 %v2751, 32
        %v2753 = vpop.permute.xlu0 %2752
        %2755 = vst.msk [vmem:[#allocation3 + $0xe] sm:$0x1] %vm2411, %v2753
        %v2756 = vrot.slane %v2400, 7
        %v2757 = vrot.slane %v2756, 4
        %2758 = vrot.lane.b32.xlu0 %v2757, 64
        %v2759 = vpop.permute.xlu0 %2758
        %2761 = vst.msk [vmem:[#allocation3 + $0xe] sm:$0x1] %vm2418, %v2759
        %v2762 = vcombine.high %v2400, %v2400
        %2763 = vrot.lane.b32.xlu0 %v2762, 96
        %v2764 = vpop.permute.xlu0 %2763
        %2766 = vst.msk [vmem:[#allocation3 + $0xe] sm:$0x1] %vm2425, %v2764
        %v2767 = vrot.slane %v2762, 5
        %v2768 = vrot.slane %v2767, 4
        %2770 = vst.msk [vmem:[#allocation3 + $0x12] sm:$0x1] %vm2403, %v2768
        %v2771 = vrot.slane %v2762, 6
        %v2772 = vrot.slane %v2771, 4
        %2773 = vrot.lane.b32.xlu0 %v2772, 32
        %v2774 = vpop.permute.xlu0 %2773
        %2776 = vst.msk [vmem:[#allocation3 + $0x12] sm:$0x1] %vm2411, %v2774
        %2778 = vrot.lane.b32.xlu0 %v2401, 64
        %v2779 = vpop.permute.xlu0 %2778
        %2781 = vst.msk [vmem:[#allocation3 + $0x12] sm:$0x1] %vm2418, %v2779
        %v2782 = vrot.slane %v2401, 5
        %v2783 = vrot.slane %v2782, 4
        %2784 = vrot.lane.b32.xlu0 %v2783, 96
        %v2785 = vpop.permute.xlu0 %2784
        %2787 = vst.msk [vmem:[#allocation3 + $0x12] sm:$0x1] %vm2425, %v2785
        %v2788 = vrot.slane %v2401, 6
        %v2789 = vrot.slane %v2788, 4
        %2791 = vst.msk [vmem:[#allocation3 + $0x16] sm:$0x1] %vm2403, %v2789
        %v2792 = vrot.slane %v2401, 7
        %v2793 = vrot.slane %v2792, 4
        %2794 = vrot.lane.b32.xlu0 %v2793, 32
        %v2795 = vpop.permute.xlu0 %2794
        %2797 = vst.msk [vmem:[#allocation3 + $0x16] sm:$0x1] %vm2411, %v2795
        %v2798 = vcombine.high %v2401, %v2401
        %2799 = vrot.lane.b32.xlu0 %v2798, 64
        %v2800 = vpop.permute.xlu0 %2799
        %2802 = vst.msk [vmem:[#allocation3 + $0x16] sm:$0x1] %vm2418, %v2800
        %v2803 = vrot.slane %v2798, 5
        %v2804 = vrot.slane %v2803, 4
        %2805 = vrot.lane.b32.xlu0 %v2804, 96
        %v2806 = vpop.permute.xlu0 %2805
        %2808 = vst.msk [vmem:[#allocation3 + $0x16] sm:$0x1] %vm2425, %v2806
        %v2809 = vrot.slane %v2798, 6
        %v2810 = vrot.slane %v2809, 4
        %2812 = vst.msk [vmem:[#allocation3 + $0x1a] sm:$0x1] %vm2403, %v2810
        %v2813 = vrot.slane %v2798, 7
        %v2814 = vrot.slane %v2813, 4
        %2815 = vrot.lane.b32.xlu0 %v2814, 32
        %v2816 = vpop.permute.xlu0 %2815
        %2818 = vst.msk [vmem:[#allocation3 + $0x1a] sm:$0x1] %vm2411, %v2816
        %2820 = vrot.lane.b32.xlu0 %v2402, 64
        %v2821 = vpop.permute.xlu0 %2820
        %2823 = vst.msk [vmem:[#allocation3 + $0x1a] sm:$0x1] %vm2418, %v2821
        %v2824 = vlaneseq
        %vm2825 = vcmp.ge.s32.totalorder %v2824, 0
        %vm2826 = vcmp.lt.s32.totalorder %v2824, 256
        %vm2827 = vmand %vm2825, %vm2826
        %2828 = vst.msk [vmem:[#allocation4] sm:$0x3] %vm2827, 0.0
      $region64: #{network_forward.1} parent=59 // pred_fallthru
        _
      %s2829 = sshra.s32 %s21, 2
      %s2830 = sand.u32 %s21, 3
      %s2831 = sshra.s32 %s21, 2
      %s2832 = sand.u32 %s21, 3
      %s2833 = smul.u32 %s2829, 7
      %s2834 = smul.u32 %s2833, 4
      %s2835 = sadd.s32 %s2834, %s2832
      %s2836 = scalar_lea.vmem [#allocation3], %s2835
      %v2837 = vld [vmem:[%s2836] ss:$4 sm:$0x7f]
      %v2839 = vlaneseq
      %v2840 = vshrl.u32 %v2839, 7
      %v2841 = vsub.s32 0, %v2840
      %v2842 = vrot.slane %v2837, %v2841
      %v2843 = vlaneseq
      %v2844 = vshrl.u32 %v2843, 7
      %v2845 = vsub.s32 1, %v2844
      %v2846 = vrot.slane %v2837, %v2845
      %v2847 = vlaneseq
      %v2848 = vshrl.u32 %v2847, 7
      %v2849 = vsub.s32 2, %v2848
      %v2850 = vrot.slane %v2837, %v2849
      %v2851 = vlaneseq
      %v2852 = vshrl.u32 %v2851, 7
      %v2853 = vsub.s32 3, %v2852
      %v2854 = vrot.slane %v2837, %v2853
      %v2855 = vlaneseq
      %v2856 = vshrl.u32 %v2855, 7
      %v2857 = vsub.s32 4, %v2856
      %v2858 = vrot.slane %v2837, %v2857
      %v2859 = vlaneseq
      %v2860 = vshrl.u32 %v2859, 7
      %v2861 = vsub.s32 5, %v2860
      %v2862 = vrot.slane %v2837, %v2861
      %v2863 = vlaneseq
      %v2864 = vshrl.u32 %v2863, 7
      %v2865 = vsub.s32 6, %v2864
      %v2866 = vrot.slane %v2837, %v2865
      %v2874 = vpack.c.bf16 %v2842, %v2842
      %v2875 = vpack.c.bf16 %v2846, %v2846
      %v2876 = vpack.c.bf16 %v2850, %v2850
      %v2877 = vpack.c.bf16 %v2854, %v2854
      %v2878 = vpack.c.bf16 %v2858, %v2858
      %v2879 = vpack.c.bf16 %v2862, %v2862
      %v2880 = vpack.c.bf16 %v2866, %v2866
      %v2881 = vld [vmem:[%s348] sm:$0xff]
      %v2882 = vld [vmem:[%s348 + $0x8] sm:$0xff]
      %v2883 = vld [vmem:[%s348 + $0x10] sm:$0xff]
      %v2884 = vld [vmem:[%s348 + $0x18] sm:$0xff]
      %v2885 = vld [vmem:[%s348 + $0x20] sm:$0xff]
      %v2886 = vld [vmem:[%s348 + $0x28] sm:$0xff]
      %v2887 = vld [vmem:[%s348 + $0x30] sm:$0xff]
      %v2888 = vld [vmem:[%s348 + $0x38] sm:$0xff]
      %v2889 = vld [vmem:[%s348 + $0x40] sm:$0xff]
      %v2890 = vld [vmem:[%s348 + $0x48] sm:$0xff]
      %v2891 = vld [vmem:[%s348 + $0x50] sm:$0xff]
      %v2892 = vld [vmem:[%s348 + $0x58] sm:$0xff]
      %v2893 = vld [vmem:[%s348 + $0x60] sm:$0xff]
      %v2894 = vld [vmem:[%s348 + $0x68] sm:$0xff]
      %v2895 = vld [vmem:[%s348 + $0x70] sm:$0xff]
      %v2896 = vld [vmem:[%s348 + $0x78] sm:$0xff]
      %v2897 = vld [vmem:[%s348 + $0x80] sm:$0xff]
      %v2898 = vld [vmem:[%s348 + $0x88] sm:$0xff]
      %v2899 = vld [vmem:[%s348 + $0x90] sm:$0xff]
      %v2900 = vld [vmem:[%s348 + $0x98] sm:$0xff]
      %v2901 = vld [vmem:[%s348 + $0xa0] sm:$0xff]
      %v2902 = vld [vmem:[%s348 + $0xa8] sm:$0xff]
      %v2903 = vld [vmem:[%s348 + $0xb0] sm:$0xff]
      %v2904 = vld [vmem:[%s348 + $0xb8] sm:$0xff]
      %v2905 = vld [vmem:[%s348 + $0xc0] sm:$0xff]
      %v2906 = vld [vmem:[%s348 + $0xc8] sm:$0xff]
      %v2907 = vld [vmem:[%s348 + $0xd0] sm:$0xff]
      %v2908 = vld [vmem:[%s348 + $0xd8] sm:$0xff]
      %v2909 = vld [vmem:[%s348 + $0xe0] sm:$0xff]
      %v2910 = vld [vmem:[%s348 + $0xe8] sm:$0xff]
      %v2911 = vld [vmem:[%s348 + $0xf0] sm:$0xff]
      %v2912 = vld [vmem:[%s348 + $0xf8] sm:$0xff]
      %v2913 = vld [vmem:[%s348 + $0x100] sm:$0xff]
      %v2914 = vld [vmem:[%s348 + $0x108] sm:$0xff]
      %v2915 = vld [vmem:[%s348 + $0x110] sm:$0xff]
      %v2916 = vld [vmem:[%s348 + $0x118] sm:$0xff]
      %v2917 = vld [vmem:[%s348 + $0x120] sm:$0xff]
      %v2918 = vld [vmem:[%s348 + $0x128] sm:$0xff]
      %v2919 = vld [vmem:[%s348 + $0x130] sm:$0xff]
      %v2920 = vld [vmem:[%s348 + $0x138] sm:$0xff]
      %v2921 = vld [vmem:[%s348 + $0x140] sm:$0xff]
      %v2922 = vld [vmem:[%s348 + $0x148] sm:$0xff]
      %v2923 = vld [vmem:[%s348 + $0x150] sm:$0xff]
      %v2924 = vld [vmem:[%s348 + $0x158] sm:$0xff]
      %v2925 = vld [vmem:[%s348 + $0x160] sm:$0xff]
      %v2926 = vld [vmem:[%s348 + $0x168] sm:$0xff]
      %v2927 = vld [vmem:[%s348 + $0x170] sm:$0xff]
      %v2928 = vld [vmem:[%s348 + $0x178] sm:$0xff]
      %v2929 = vld [vmem:[%s348 + $0x180] sm:$0xff]
      %v2930 = vld [vmem:[%s348 + $0x188] sm:$0xff]
      %v2931 = vld [vmem:[%s348 + $0x190] sm:$0xff]
      %v2932 = vld [vmem:[%s348 + $0x198] sm:$0xff]
      %v2933 = vld [vmem:[%s348 + $0x1a0] sm:$0xff]
      %v2934 = vld [vmem:[%s348 + $0x1a8] sm:$0xff]
      %v2935 = vunpack.c.l.s8.bf16 %v2881
      %v2936 = vunpack.c.l.s8.bf16 %v2882
      %v2937 = vunpack.c.h.s8.bf16 %v2881
      %v2938 = vunpack.c.h.s8.bf16 %v2882
      %v2939 = vunpack.c.l.s8.bf16 %v2883
      %v2940 = vunpack.c.l.s8.bf16 %v2884
      %v2941 = vunpack.c.h.s8.bf16 %v2883
      %v2942 = vunpack.c.h.s8.bf16 %v2884
      %v2943 = vunpack.c.l.s8.bf16 %v2885
      %v2944 = vunpack.c.l.s8.bf16 %v2886
      %v2945 = vunpack.c.h.s8.bf16 %v2885
      %v2946 = vunpack.c.h.s8.bf16 %v2886
      %v2947 = vunpack.c.l.s8.bf16 %v2887
      %v2948 = vunpack.c.l.s8.bf16 %v2888
      %v2949 = vunpack.c.h.s8.bf16 %v2887
      %v2950 = vunpack.c.h.s8.bf16 %v2888
      %v2951 = vunpack.c.l.s8.bf16 %v2889
      %v2952 = vunpack.c.l.s8.bf16 %v2890
      %v2953 = vunpack.c.h.s8.bf16 %v2889
      %v2954 = vunpack.c.h.s8.bf16 %v2890
      %v2955 = vunpack.c.l.s8.bf16 %v2891
      %v2956 = vunpack.c.l.s8.bf16 %v2892
      %v2957 = vunpack.c.h.s8.bf16 %v2891
      %v2958 = vunpack.c.h.s8.bf16 %v2892
      %v2959 = vunpack.c.l.s8.bf16 %v2893
      %v2960 = vunpack.c.l.s8.bf16 %v2894
      %v2961 = vunpack.c.h.s8.bf16 %v2893
      %v2962 = vunpack.c.h.s8.bf16 %v2894
      %v2963 = vunpack.c.l.s8.bf16 %v2895
      %v2964 = vunpack.c.l.s8.bf16 %v2896
      %v2965 = vunpack.c.h.s8.bf16 %v2895
      %v2966 = vunpack.c.h.s8.bf16 %v2896
      %v2967 = vunpack.c.l.s8.bf16 %v2897
      %v2968 = vunpack.c.l.s8.bf16 %v2898
      %v2969 = vunpack.c.h.s8.bf16 %v2897
      %v2970 = vunpack.c.h.s8.bf16 %v2898
      %v2971 = vunpack.c.l.s8.bf16 %v2899
      %v2972 = vunpack.c.l.s8.bf16 %v2900
      %v2973 = vunpack.c.h.s8.bf16 %v2899
      %v2974 = vunpack.c.h.s8.bf16 %v2900
      %v2975 = vunpack.c.l.s8.bf16 %v2901
      %v2976 = vunpack.c.l.s8.bf16 %v2902
      %v2977 = vunpack.c.h.s8.bf16 %v2901
      %v2978 = vunpack.c.h.s8.bf16 %v2902
      %v2979 = vunpack.c.l.s8.bf16 %v2903
      %v2980 = vunpack.c.l.s8.bf16 %v2904
      %v2981 = vunpack.c.h.s8.bf16 %v2903
      %v2982 = vunpack.c.h.s8.bf16 %v2904
      %v2983 = vunpack.c.l.s8.bf16 %v2905
      %v2984 = vunpack.c.l.s8.bf16 %v2906
      %v2985 = vunpack.c.h.s8.bf16 %v2905
      %v2986 = vunpack.c.h.s8.bf16 %v2906
      %v2987 = vunpack.c.l.s8.bf16 %v2907
      %v2988 = vunpack.c.l.s8.bf16 %v2908
      %v2989 = vunpack.c.h.s8.bf16 %v2907
      %v2990 = vunpack.c.h.s8.bf16 %v2908
      %v2991 = vunpack.c.l.s8.bf16 %v2909
      %v2992 = vunpack.c.l.s8.bf16 %v2910
      %v2993 = vunpack.c.h.s8.bf16 %v2909
      %v2994 = vunpack.c.h.s8.bf16 %v2910
      %v2995 = vunpack.c.l.s8.bf16 %v2911
      %v2996 = vunpack.c.l.s8.bf16 %v2912
      %v2997 = vunpack.c.h.s8.bf16 %v2911
      %v2998 = vunpack.c.h.s8.bf16 %v2912
      %v2999 = vunpack.c.l.s8.bf16 %v2913
      %v3000 = vunpack.c.l.s8.bf16 %v2914
      %v3001 = vunpack.c.h.s8.bf16 %v2913
      %v3002 = vunpack.c.h.s8.bf16 %v2914
      %v3003 = vunpack.c.l.s8.bf16 %v2915
      %v3004 = vunpack.c.l.s8.bf16 %v2916
      %v3005 = vunpack.c.h.s8.bf16 %v2915
      %v3006 = vunpack.c.h.s8.bf16 %v2916
      %v3007 = vunpack.c.l.s8.bf16 %v2917
      %v3008 = vunpack.c.l.s8.bf16 %v2918
      %v3009 = vunpack.c.h.s8.bf16 %v2917
      %v3010 = vunpack.c.h.s8.bf16 %v2918
      %v3011 = vunpack.c.l.s8.bf16 %v2919
      %v3012 = vunpack.c.l.s8.bf16 %v2920
      %v3013 = vunpack.c.h.s8.bf16 %v2919
      %v3014 = vunpack.c.h.s8.bf16 %v2920
      %v3015 = vunpack.c.l.s8.bf16 %v2921
      %v3016 = vunpack.c.l.s8.bf16 %v2922
      %v3017 = vunpack.c.h.s8.bf16 %v2921
      %v3018 = vunpack.c.h.s8.bf16 %v2922
      %v3019 = vunpack.c.l.s8.bf16 %v2923
      %v3020 = vunpack.c.l.s8.bf16 %v2924
      %v3021 = vunpack.c.h.s8.bf16 %v2923
      %v3022 = vunpack.c.h.s8.bf16 %v2924
      %v3023 = vunpack.c.l.s8.bf16 %v2925
      %v3024 = vunpack.c.l.s8.bf16 %v2926
      %v3025 = vunpack.c.h.s8.bf16 %v2925
      %v3026 = vunpack.c.h.s8.bf16 %v2926
      %v3027 = vunpack.c.l.s8.bf16 %v2927
      %v3028 = vunpack.c.l.s8.bf16 %v2928
      %v3029 = vunpack.c.h.s8.bf16 %v2927
      %v3030 = vunpack.c.h.s8.bf16 %v2928
      %v3031 = vunpack.c.l.s8.bf16 %v2929
      %v3032 = vunpack.c.l.s8.bf16 %v2930
      %v3033 = vunpack.c.h.s8.bf16 %v2929
      %v3034 = vunpack.c.h.s8.bf16 %v2930
      %v3035 = vunpack.c.l.s8.bf16 %v2931
      %v3036 = vunpack.c.l.s8.bf16 %v2932
      %v3037 = vunpack.c.h.s8.bf16 %v2931
      %v3038 = vunpack.c.h.s8.bf16 %v2932
      %v3039 = vunpack.c.l.s8.bf16 %v2933
      %v3040 = vunpack.c.l.s8.bf16 %v2934
      %v3041 = vunpack.c.h.s8.bf16 %v2933
      %v3042 = vunpack.c.h.s8.bf16 %v2934
      %v3043 = vld [vmem:[#allocation4] sm:$0x3]
      %vm3044 = vcmask 785408
      %v3046 = vsel %vm3044, %v2880, 0
      %3048 = vmatprep.subr.bf16.mxu0 %v2936
      %3049 = vmatpush1.bf16.msra.mxu0 %v2935
      %3050 = vmatprep.subr.bf16.mxu0 %v2938
      %3051 = vmatpush1.bf16.msra.mxu0 %v2937
      %3052 = vmatprep.subr.bf16.mxu0 %v2940
      %3053 = vmatpush1.bf16.msra.mxu0 %v2939
      %3054 = vmatprep.subr.bf16.mxu0 %v2942
      %3055 = vmatpush1.bf16.msra.mxu0 %v2941
      %3056 = vmatprep.subr.bf16.mxu0 %v2944
      %3057 = vmatpush1.bf16.msra.mxu0 %v2943
      %3058 = vmatprep.subr.bf16.mxu0 %v2946
      %3059 = vmatpush1.bf16.msra.mxu0 %v2945
      %3060 = vmatprep.subr.bf16.mxu0 %v2948
      %3061 = vmatpush1.bf16.msra.mxu0 %v2947
      %3062 = vmatprep.subr.bf16.mxu0 %v2950
      %3063 = vmatpush1.bf16.msra.mxu0 %v2949
      %3064 = vmatprep.subr.bf16.mxu0 %v2952
      %3065 = vmatpush1.bf16.msra.mxu0 %v2951
      %3066 = vmatprep.subr.bf16.mxu0 %v2954
      %3067 = vmatpush1.bf16.msra.mxu0 %v2953
      %3068 = vmatprep.subr.bf16.mxu0 %v2956
      %3069 = vmatpush1.bf16.msra.mxu0 %v2955
      %3070 = vmatprep.subr.bf16.mxu0 %v2958
      %3071 = vmatpush1.bf16.msra.mxu0 %v2957
      %3072 = vmatprep.subr.bf16.mxu0 %v2960
      %3073 = vmatpush1.bf16.msra.mxu0 %v2959
      %3074 = vmatprep.subr.bf16.mxu0 %v2962
      %3075 = vmatpush1.bf16.msra.mxu0 %v2961
      %3076 = vmatprep.subr.bf16.mxu0 %v2964
      %3077 = vmatpush1.bf16.msra.mxu0 %v2963
      %3078 = vmatprep.subr.bf16.mxu0 %v2966
      %3079 = vmatpush1.bf16.msra.mxu0 %v2965
      %3080 = vmatprep.mubr.bf16.mxu0 %v2875
      %3081 = vmatmul.mubr.bf16.gmra.mrb[0].mxu0 %v2874
      %v3082 = vpop.f32.mrb[0].mxu0
      %v3083 = vadd.f32 0.0, %v3082
      %v3084 = vpop.f32.mrb[0].mxu0
      %v3085 = vadd.f32 0.0, %v3084
      %v3086 = vpop.f32.mrb[0].mxu0
      %v3087 = vpop.f32.mrb[0].mxu0
      %3088 = vdwg.mxu0
      %3089 = vmatprep.subr.bf16.mxu0 %v2968
      %3090 = vmatpush1.bf16.msra.mxu0 %v2967
      %3091 = vmatprep.subr.bf16.mxu0 %v2970
      %3092 = vmatpush1.bf16.msra.mxu0 %v2969
      %3093 = vmatprep.subr.bf16.mxu0 %v2972
      %3094 = vmatpush1.bf16.msra.mxu0 %v2971
      %3095 = vmatprep.subr.bf16.mxu0 %v2974
      %3096 = vmatpush1.bf16.msra.mxu0 %v2973
      %3097 = vmatprep.subr.bf16.mxu0 %v2976
      %3098 = vmatpush1.bf16.msra.mxu0 %v2975
      %3099 = vmatprep.subr.bf16.mxu0 %v2978
      %3100 = vmatpush1.bf16.msra.mxu0 %v2977
      %3101 = vmatprep.subr.bf16.mxu0 %v2980
      %3102 = vmatpush1.bf16.msra.mxu0 %v2979
      %3103 = vmatprep.subr.bf16.mxu0 %v2982
      %3104 = vmatpush1.bf16.msra.mxu0 %v2981
      %3105 = vmatprep.subr.bf16.mxu0 %v2984
      %3106 = vmatpush1.bf16.msra.mxu0 %v2983
      %3107 = vmatprep.subr.bf16.mxu0 %v2986
      %3108 = vmatpush1.bf16.msra.mxu0 %v2985
      %3109 = vmatprep.subr.bf16.mxu0 %v2988
      %3110 = vmatpush1.bf16.msra.mxu0 %v2987
      %3111 = vmatprep.subr.bf16.mxu0 %v2990
      %3112 = vmatpush1.bf16.msra.mxu0 %v2989
      %3113 = vmatprep.subr.bf16.mxu0 %v2992
      %3114 = vmatpush1.bf16.msra.mxu0 %v2991
      %3115 = vmatprep.subr.bf16.mxu0 %v2994
      %3116 = vmatpush1.bf16.msra.mxu0 %v2993
      %3117 = vmatprep.subr.bf16.mxu0 %v2996
      %3118 = vmatpush1.bf16.msra.mxu0 %v2995
      %3119 = vmatprep.subr.bf16.mxu0 %v2998
      %3120 = vmatpush1.bf16.msra.mxu0 %v2997
      %3121 = vmatprep.mubr.bf16.mxu0 %v2877
      %3122 = vmatmul.mubr.bf16.gmra.mrb[0].mxu0 %v2876
      %v3123 = vpop.f32.mrb[0].mxu0
      %v3124 = vadd.f32 %v3083, %v3123
      %v3125 = vpop.f32.mrb[0].mxu0
      %v3126 = vadd.f32 %v3085, %v3125
      %v3127 = vpop.f32.mrb[0].mxu0
      %v3128 = vpop.f32.mrb[0].mxu0
      %3129 = vdwg.mxu0
      %3130 = vmatprep.subr.bf16.mxu0 %v3000
      %3131 = vmatpush1.bf16.msra.mxu0 %v2999
      %3132 = vmatprep.subr.bf16.mxu0 %v3002
      %3133 = vmatpush1.bf16.msra.mxu0 %v3001
      %3134 = vmatprep.subr.bf16.mxu0 %v3004
      %3135 = vmatpush1.bf16.msra.mxu0 %v3003
      %3136 = vmatprep.subr.bf16.mxu0 %v3006
      %3137 = vmatpush1.bf16.msra.mxu0 %v3005
      %3138 = vmatprep.subr.bf16.mxu0 %v3008
      %3139 = vmatpush1.bf16.msra.mxu0 %v3007
      %3140 = vmatprep.subr.bf16.mxu0 %v3010
      %3141 = vmatpush1.bf16.msra.mxu0 %v3009
      %3142 = vmatprep.subr.bf16.mxu0 %v3012
      %3143 = vmatpush1.bf16.msra.mxu0 %v3011
      %3144 = vmatprep.subr.bf16.mxu0 %v3014
      %3145 = vmatpush1.bf16.msra.mxu0 %v3013
      %3146 = vmatprep.subr.bf16.mxu0 %v3016
      %3147 = vmatpush1.bf16.msra.mxu0 %v3015
      %3148 = vmatprep.subr.bf16.mxu0 %v3018
      %3149 = vmatpush1.bf16.msra.mxu0 %v3017
      %3150 = vmatprep.subr.bf16.mxu0 %v3020
      %3151 = vmatpush1.bf16.msra.mxu0 %v3019
      %3152 = vmatprep.subr.bf16.mxu0 %v3022
      %3153 = vmatpush1.bf16.msra.mxu0 %v3021
      %3154 = vmatprep.subr.bf16.mxu0 %v3024
      %3155 = vmatpush1.bf16.msra.mxu0 %v3023
      %3156 = vmatprep.subr.bf16.mxu0 %v3026
      %3157 = vmatpush1.bf16.msra.mxu0 %v3025
      %3158 = vmatprep.subr.bf16.mxu0 %v3028
      %3159 = vmatpush1.bf16.msra.mxu0 %v3027
      %3160 = vmatprep.subr.bf16.mxu0 %v3030
      %3161 = vmatpush1.bf16.msra.mxu0 %v3029
      %3162 = vmatprep.mubr.bf16.mxu0 %v2879
      %3163 = vmatmul.mubr.bf16.gmra.mrb[0].mxu0 %v2878
      %v3164 = vpop.f32.mrb[0].mxu0
      %v3165 = vadd.f32 %v3124, %v3164
      %v3166 = vpop.f32.mrb[0].mxu0
      %v3167 = vadd.f32 %v3126, %v3166
      %v3168 = vpop.f32.mrb[0].mxu0
      %v3169 = vpop.f32.mrb[0].mxu0
      %3170 = vdwg.mxu0
      %3171 = vmatprep.subr.bf16.mxu0 %v3032
      %3172 = vmatpush1.bf16.msra.mxu0 %v3031
      %3173 = vmatprep.subr.bf16.mxu0 %v3034
      %3174 = vmatpush1.bf16.msra.mxu0 %v3033
      %3175 = vmatprep.subr.bf16.mxu0 %v3036
      %3176 = vmatpush1.bf16.msra.mxu0 %v3035
      %3177 = vmatprep.subr.bf16.mxu0 %v3038
      %3178 = vmatpush1.bf16.msra.mxu0 %v3037
      %3179 = vmatprep.subr.bf16.mxu0 %v3040
      %3180 = vmatpush1.bf16.msra.mxu0 %v3039
      %3181 = vmatprep.subr.bf16.mxu0 %v3042
      %3182 = vmatpush1.bf16.msra.mxu0 %v3041
      %3183 = vmatprep.subr.bf16.mxu0 0
      %3184 = vmatpush1.bf16.msra.mxu0 0
      %3185 = vmatprep.subr.bf16.mxu0 0
      %3186 = vmatpush1.bf16.msra.mxu0 0
      %3187 = vmatprep.subr.bf16.mxu0 0
      %3188 = vmatpush1.bf16.msra.mxu0 0
      %3189 = vmatprep.subr.bf16.mxu0 0
      %3190 = vmatpush1.bf16.msra.mxu0 0
      %3191 = vmatprep.subr.bf16.mxu0 0
      %3192 = vmatpush1.bf16.msra.mxu0 0
      %3193 = vmatprep.subr.bf16.mxu0 0
      %3194 = vmatpush1.bf16.msra.mxu0 0
      %3195 = vmatprep.subr.bf16.mxu0 0
      %3196 = vmatpush1.bf16.msra.mxu0 0
      %3197 = vmatprep.subr.bf16.mxu0 0
      %3198 = vmatpush1.bf16.msra.mxu0 0
      %3199 = vmatprep.subr.bf16.mxu0 0
      %3200 = vmatpush1.bf16.msra.mxu0 0
      %3201 = vmatprep.subr.bf16.mxu0 0
      %3202 = vmatpush1.bf16.msra.mxu0 0
      %3203 = vmatprep.mubr.bf16.mxu0 0
      %3204 = vmatmul.mubr.bf16.gmra.mrb[0].mxu0 %v3046
      %v3205 = vpop.f32.mrb[0].mxu0
      %v3206 = vadd.f32 %v3165, %v3205
      %v3207 = vpop.f32.mrb[0].mxu0
      %v3208 = vadd.f32 %v3167, %v3207
      %v3209 = vpop.f32.mrb[0].mxu0
      %v3210 = vpop.f32.mrb[0].mxu0
      %3211 = vdwg.mxu0
      %v3214 = vcombine.low %v3206, %v3208
      %v3216 = vunpack.c.l.s4 1966171168
      %v3217 = vunpack.c.0.s8 %v3216
      %v3218 = vlaneseq
      %v3219 = vshrl.u32 %v3218, 7
      %v3220 = vsub.s32 %v3217, %v3219
      %v3221 = vrot.slane %v3214, %v3220
      %v3223 = vunpack.c.l.s4 1966171168
      %v3224 = vunpack.c.0.s8 %v3223
      %v3225 = vlaneseq
      %v3226 = vshrl.u32 %v3225, 7
      %v3227 = vsub.s32 %v3224, %v3226
      %v3228 = vrot.slane %v3221, %v3227
      %v3230 = vadd.f32 %v3043, %v3228
      %v3231 = vlaneseq
      %vm3232 = vcmp.ge.s32.totalorder %v3231, 0
      %vm3233 = vcmp.lt.s32.totalorder %v3231, 256
      %vm3234 = vmand %vm3232, %vm3233
      %3235 = vst.msk [vmem:[#allocation4] sm:$0x3] %vm3234, %v3230
      %p3236 = scmp.eq.s32.totalorder %s21, 2
      // Predicated region
      $region65: #{network_forward.1} parent=59 // pred_check
        %p3237 = pneg %p3236
      $region66: #{network_forward.1} parent=59 // pred_check_branch
        %3239 = sbr.rel (%p3237) target = $region68
      $region67: #{network_forward.1} parent=59 // pred_region
        %v3240 = vld [vmem:[#allocation4] sm:$0x3]
        %v3241 = vld [vmem:[%s6] sm:$0x3]
        %v3242 = vmul.f32 %v3240, %v3241
        %v3243 = vld [vmem:[%s7] sm:$0x3]
        %v3244 = vadd.f32 %v3242, %v3243
        %v3245 = vmax.f32 %v3244, 0.0
        %v3247 = vlaneseq
        %v3248 = vshrl.u32 %v3247, 7
        %v3249 = vsub.s32 0, %v3248
        %v3250 = vrot.slane %v3245, %v3249
        %v3251 = vlaneseq
        %v3252 = vshrl.u32 %v3251, 7
        %v3253 = vsub.s32 1, %v3252
        %v3254 = vrot.slane %v3245, %v3253
        %v3257 = vpack.c.bf16 %v3250, %v3250
        %v3258 = vpack.c.bf16 %v3254, %v3254
        %v3259 = vld [vmem:[%s8] sm:$0xf]
        %v3260 = vld [vmem:[%s8 + $0x4] sm:$0xf]
        %v3261 = vld [vmem:[%s8 + $0x8] sm:$0xf]
        %v3262 = vld [vmem:[%s8 + $0xc] sm:$0xf]
        %v3263 = vld [vmem:[%s8 + $0x10] sm:$0xf]
        %v3264 = vld [vmem:[%s8 + $0x14] sm:$0xf]
        %v3265 = vld [vmem:[%s8 + $0x18] sm:$0xf]
        %v3266 = vld [vmem:[%s8 + $0x1c] sm:$0xf]
        %v3267 = vld [vmem:[%s8 + $0x20] sm:$0xf]
        %v3268 = vld [vmem:[%s8 + $0x24] sm:$0xf]
        %v3269 = vld [vmem:[%s8 + $0x28] sm:$0xf]
        %v3270 = vld [vmem:[%s8 + $0x2c] sm:$0xf]
        %v3271 = vld [vmem:[%s8 + $0x30] sm:$0xf]
        %v3272 = vld [vmem:[%s8 + $0x34] sm:$0xf]
        %v3273 = vld [vmem:[%s8 + $0x38] sm:$0xf]
        %v3274 = vld [vmem:[%s8 + $0x3c] sm:$0xf]
        %v3275 = vld [vmem:[%s8 + $0x40] sm:$0xf]
        %v3276 = vld [vmem:[%s8 + $0x44] sm:$0xf]
        %v3277 = vld [vmem:[%s8 + $0x48] sm:$0xf]
        %v3278 = vld [vmem:[%s8 + $0x4c] sm:$0xf]
        %v3279 = vld [vmem:[%s8 + $0x50] sm:$0xf]
        %v3280 = vld [vmem:[%s8 + $0x54] sm:$0xf]
        %v3281 = vld [vmem:[%s8 + $0x58] sm:$0xf]
        %v3282 = vld [vmem:[%s8 + $0x5c] sm:$0xf]
        %v3283 = vld [vmem:[%s8 + $0x60] sm:$0xf]
        %v3284 = vld [vmem:[%s8 + $0x64] sm:$0xf]
        %v3285 = vld [vmem:[%s8 + $0x68] sm:$0xf]
        %v3286 = vld [vmem:[%s8 + $0x6c] sm:$0xf]
        %v3287 = vld [vmem:[%s8 + $0x70] sm:$0xf]
        %v3288 = vld [vmem:[%s8 + $0x74] sm:$0xf]
        %v3289 = vld [vmem:[%s8 + $0x78] sm:$0xf]
        %v3290 = vld [vmem:[%s8 + $0x7c] sm:$0xf]
        %v3291 = vld [vmem:[%s9] sm:$0x1]
        %v3324 = vunpack.c.l.b16 %v3259
        %v3325 = vunpack.c.l.b16 %v3260
        %v3326 = vunpack.c.l.b16 %v3261
        %v3327 = vunpack.c.l.b16 %v3262
        %v3328 = vunpack.c.l.b16 %v3263
        %v3329 = vunpack.c.l.b16 %v3264
        %v3330 = vunpack.c.l.b16 %v3265
        %v3331 = vunpack.c.l.b16 %v3266
        %v3332 = vunpack.c.l.b16 %v3267
        %v3333 = vunpack.c.l.b16 %v3268
        %v3334 = vunpack.c.l.b16 %v3269
        %v3335 = vunpack.c.l.b16 %v3270
        %v3336 = vunpack.c.l.b16 %v3271
        %v3337 = vunpack.c.l.b16 %v3272
        %v3338 = vunpack.c.l.b16 %v3273
        %v3339 = vunpack.c.l.b16 %v3274
        %v3340 = vunpack.c.l.b16 %v3275
        %v3341 = vunpack.c.l.b16 %v3276
        %v3342 = vunpack.c.l.b16 %v3277
        %v3343 = vunpack.c.l.b16 %v3278
        %v3344 = vunpack.c.l.b16 %v3279
        %v3345 = vunpack.c.l.b16 %v3280
        %v3346 = vunpack.c.l.b16 %v3281
        %v3347 = vunpack.c.l.b16 %v3282
        %v3348 = vunpack.c.l.b16 %v3283
        %v3349 = vunpack.c.l.b16 %v3284
        %v3350 = vunpack.c.l.b16 %v3285
        %v3351 = vunpack.c.l.b16 %v3286
        %v3352 = vunpack.c.l.b16 %v3287
        %v3353 = vunpack.c.l.b16 %v3288
        %v3354 = vunpack.c.l.b16 %v3289
        %v3355 = vunpack.c.l.b16 %v3290
        %v3356 = vpack.c.b16 %v3325, %v3324
        %v3357 = vpack.c.b16 %v3327, %v3326
        %v3358 = vpack.c.b16 %v3329, %v3328
        %v3359 = vpack.c.b16 %v3331, %v3330
        %v3360 = vpack.c.b16 %v3333, %v3332
        %v3361 = vpack.c.b16 %v3335, %v3334
        %v3362 = vpack.c.b16 %v3337, %v3336
        %v3363 = vpack.c.b16 %v3339, %v3338
        %v3364 = vpack.c.b16 %v3341, %v3340
        %v3365 = vpack.c.b16 %v3343, %v3342
        %v3366 = vpack.c.b16 %v3345, %v3344
        %v3367 = vpack.c.b16 %v3347, %v3346
        %v3368 = vpack.c.b16 %v3349, %v3348
        %v3369 = vpack.c.b16 %v3351, %v3350
        %v3370 = vpack.c.b16 %v3353, %v3352
        %v3371 = vpack.c.b16 %v3355, %v3354
        %3388 = vmatprep.subr.bf16.mxu0 0
        %3389 = vmatpush1.bf16.msra.mxu0 %v3356
        %3390 = vmatprep.subr.bf16.mxu0 0
        %3391 = vmatpush1.bf16.msra.mxu0 %v3357
        %3392 = vmatprep.subr.bf16.mxu0 0
        %3393 = vmatpush1.bf16.msra.mxu0 %v3358
        %3394 = vmatprep.subr.bf16.mxu0 0
        %3395 = vmatpush1.bf16.msra.mxu0 %v3359
        %3396 = vmatprep.subr.bf16.mxu0 0
        %3397 = vmatpush1.bf16.msra.mxu0 %v3360
        %3398 = vmatprep.subr.bf16.mxu0 0
        %3399 = vmatpush1.bf16.msra.mxu0 %v3361
        %3400 = vmatprep.subr.bf16.mxu0 0
        %3401 = vmatpush1.bf16.msra.mxu0 %v3362
        %3402 = vmatprep.subr.bf16.mxu0 0
        %3403 = vmatpush1.bf16.msra.mxu0 %v3363
        %3404 = vmatprep.subr.bf16.mxu0 0
        %3405 = vmatpush1.bf16.msra.mxu0 %v3364
        %3406 = vmatprep.subr.bf16.mxu0 0
        %3407 = vmatpush1.bf16.msra.mxu0 %v3365
        %3408 = vmatprep.subr.bf16.mxu0 0
        %3409 = vmatpush1.bf16.msra.mxu0 %v3366
        %3410 = vmatprep.subr.bf16.mxu0 0
        %3411 = vmatpush1.bf16.msra.mxu0 %v3367
        %3412 = vmatprep.subr.bf16.mxu0 0
        %3413 = vmatpush1.bf16.msra.mxu0 %v3368
        %3414 = vmatprep.subr.bf16.mxu0 0
        %3415 = vmatpush1.bf16.msra.mxu0 %v3369
        %3416 = vmatprep.subr.bf16.mxu0 0
        %3417 = vmatpush1.bf16.msra.mxu0 %v3370
        %3418 = vmatprep.subr.bf16.mxu0 0
        %3419 = vmatpush1.bf16.msra.mxu0 %v3371
        %3420 = vmatprep.mubr.bf16.mxu0 %v3258
        %3421 = vmatmul.mubr.bf16.gmra.mrb[0].mxu0 %v3257
        %v3422 = vpop.f32.mrb[0].mxu0
        %v3423 = vadd.f32 %v3291, %v3422
        %v3424 = vpop.f32.mrb[0].mxu0
        %v3425 = vpop.f32.mrb[0].mxu0
        %v3426 = vpop.f32.mrb[0].mxu0
        %3427 = vdwg.mxu0
        %3428 = vst [vmem:[%s10] sm:$0x1] %v3423
      $region68: #{network_forward.1} parent=59 // pred_fallthru
        _
      // Predicated region
      $region69: #{network_forward.1} parent=59 // pred_check
        %p3429 = pneg %p249
      $region70: #{network_forward.1} parent=59 // pred_check_branch
        %3431 = sbr.rel (%p3429) target = $region72
      $region71: #{network_forward.1} parent=59 // pred_region
        _
      $region72: #{network_forward.1} parent=59 // pred_fallthru
        _
      // Predicated region
      $region73: #{network_forward.1} parent=59 // pred_check
        %p3432 = pneg %p249
      $region74: #{network_forward.1} parent=59 // pred_check_branch
        %3434 = sbr.rel (%p3432) target = $region76
      $region75: #{network_forward.1} parent=59 // pred_region
        _
      $region76: #{network_forward.1} parent=59 // pred_fallthru
        _
    $region60: #{network_forward.1} parent=5 // pred_fallthru
      _
    %p3435 = scmp.le.s32.totalorder 2, %s16
    // Predicated region
    $region77: #{network_forward.1} parent=5 // pred_check
      %p3436 = pneg %p3435
    $region78: #{network_forward.1} parent=5 // pred_check_branch
      %3438 = sbr.rel (%p3436) target = $region80
    $region79: #{network_forward.1} parent=5 // pred_region
      %s3439 = ssub.s32 %s16, 2
    $region80: #{network_forward.1} parent=5 // pred_fallthru
      _
  $region6: #{network_forward.1} parent=0 // loop_footer
    %s20 = sadd.s32 1, %s16
  $region7: #{network_forward.1} parent=0 // loop_footer_branch
    %15 = sbr.rel target = $region3
  $region8: #{network_forward.1} parent=0 // loop_exit
    _

</llo_original>
